<compile_context>
chip_gen: v7x
topology: tpu7x:2x2x1
jax: 0.10.0
libtpu: 0.0.40
codegen_flags: <defaults>
</compile_context>

<pallas_src>
import math

import jax
import jax.numpy as jnp
from jax.experimental import pallas as pl
from jax.experimental.pallas import tpu as pltpu

# ---- small config, consistent with the module's BERT/VinVL structure ----
VOCAB = 100
VOCAB_PAD = 128            # one-hot lane width (>= VOCAB, lane aligned)
TYPE_VOCAB = 2
HIDDEN = 32
NUM_HEADS = 2
HEAD_DIM = HIDDEN // NUM_HEADS
INTERMEDIATE = 4 * HIDDEN
NUM_LAYERS = 2
IMG_FEAT_DIM = 2054        # VinVL default image feature dim (no padding needed)
NUM_LABELS = 2             # MLP head default num_labels
LN_EPS = 1e-12
IMG_LN_EPS = 1e-12

SEQ_TEXT = 8
NUM_REGIONS = 8
BATCH = 2
SEQ_TOTAL = SEQ_TEXT + NUM_REGIONS

# ---- misc slab row offsets (width HIDDEN) ----
M_WORD = 0                                  # [0, 128)   word embedding (padded)
M_TYPE = VOCAB_PAD                          # [128, 136) type embedding (2 rows + pad)
M_POS = M_TYPE + 8                          # [136, 144) position embedding
M_VEC = M_POS + SEQ_TEXT                    # [144, 152) misc (1, H) vectors
M_POOLW = M_VEC + 8                         # [152, 184) pooler weight
M_CLSW = M_POOLW + HIDDEN                   # [184, 216) classifier weight (lane-padded)
M_ROWS = M_CLSW + HIDDEN                    # 216

# ---- per-layer slab layout (width HIDDEN) ----
#   blocks: q_h0 q_h1 k_h0 k_h1 v_h0 v_h1 o_h0 o_h1 (each HIDDEN rows), wf (INTERMEDIATE rows),
#   then a 16-row vector block: bq_h*, bk_h*, bv_h*, bo, ln1_g, ln1_b, bf, ln2_g, ln2_b, pad.
LWF_OFF = 4 * NUM_HEADS * HIDDEN            # 256
LVEC_OFF = LWF_OFF + INTERMEDIATE           # 384
LVEC_ROWS = 16
LSTRIDE_H = LVEC_OFF + LVEC_ROWS            # 400

# ---- per-layer slab layout (width INTERMEDIATE) ----
LSTRIDE_I = HIDDEN + 8                      # wi (HIDDEN rows) + bi (1 row) + pad


def _layer_norm(x, gamma, beta, eps):
    mu = jnp.mean(x, axis=-1, keepdims=True)
    xc = x - mu
    var = jnp.mean(xc * xc, axis=-1, keepdims=True)
    return xc * jax.lax.rsqrt(var + eps) * gamma + beta


# ----------------------- single fused forward kernel -------------------------
def vinvl_fused_kernel(ids_ref, tts_ref, mask_ref, img_ref, img_w_ref,
                       misc_ref, lwh_ref, lwi_ref, logits_ref):
    f32 = jnp.float32
    BT = BATCH * SEQ_TEXT
    BS = BATCH * SEQ_TOTAL

    # ---- text embeddings: in-kernel one-hot word lookup + type select + pos ----
    ids = ids_ref[...]                                            # (BT, 1) int32
    tts = tts_ref[...]                                            # (BT, 1) int32
    vocab_iota = jax.lax.broadcasted_iota(jnp.int32, (BT, VOCAB_PAD), 1)
    onehot = (vocab_iota == ids).astype(f32)                      # (BT, 128)
    we = jnp.dot(onehot, misc_ref[M_WORD:M_WORD + VOCAB_PAD, :],
                 preferred_element_type=f32)                      # (BT, H)
    te = jnp.where(tts == 0,
                   misc_ref[M_TYPE:M_TYPE + 1, :],
                   misc_ref[M_TYPE + 1:M_TYPE + 2, :])            # (BT, H)
    pe = jnp.concatenate([misc_ref[M_POS:M_POS + SEQ_TEXT, :]] * BATCH, axis=0)
    text = _layer_norm(we + te + pe,
                       misc_ref[M_VEC + 0:M_VEC + 1, :],
                       misc_ref[M_VEC + 1:M_VEC + 2, :], LN_EPS)  # (BT, H)

    # ---- image embeddings: bf16 MXU projection (f32 accumulate) + LN ----
    img2d = img_ref[...].reshape(BATCH * NUM_REGIONS, IMG_FEAT_DIM)   # bf16
    img_proj = jnp.dot(img2d, img_w_ref[...], preferred_element_type=f32) \
        + misc_ref[M_VEC + 2:M_VEC + 3, :]
    img = _layer_norm(img_proj,
                      misc_ref[M_VEC + 3:M_VEC + 4, :],
                      misc_ref[M_VEC + 4:M_VEC + 5, :], IMG_LN_EPS)

    # ---- assemble (B, S, H) sequence in registers (no scratch round-trip) ----
    x = jnp.concatenate(
        [text.reshape(BATCH, SEQ_TEXT, HIDDEN),
         img.reshape(BATCH, NUM_REGIONS, HIDDEN)],
        axis=1).reshape(BS, HIDDEN)

    mask_add = (1.0 - mask_ref[...]) * -10000.0                   # (B, S)
    # heads stacked along the batch dim: n = head * BATCH + b
    mask_stack = jnp.concatenate([mask_add] * NUM_HEADS, axis=0)  # (NH*B, S)

    scale = 1.0 / math.sqrt(HEAD_DIM)
    for l in range(NUM_LAYERS):                                   # static unrolled
        base = l * LSTRIDE_H

        def wmat(off, rows=HIDDEN, _b=base):                      # (rows, H) weight tile
            return lwh_ref[_b + off:_b + off + rows, :]

        def vrow(i, _b=base):                                     # (1, H) vector row
            return lwh_ref[_b + LVEC_OFF + i:_b + LVEC_OFF + i + 1, :]

        def proj(block, bias_row):                                # (BS, H), head in lanes [0:HD]
            return jnp.dot(x, wmat(block * HIDDEN),
                           preferred_element_type=f32) + vrow(bias_row)

        # per-head Q/K/V projections (weights pre-split & zero-padded at pack time)
        qs = jnp.concatenate([proj(h, h) for h in range(NUM_HEADS)], axis=0)
        ks = jnp.concatenate([proj(NUM_HEADS + h, NUM_HEADS + h)
                              for h in range(NUM_HEADS)], axis=0)
        vs = jnp.concatenate([proj(2 * NUM_HEADS + h, 2 * NUM_HEADS + h)
                              for h in range(NUM_HEADS)], axis=0)
        qs = qs.reshape(NUM_HEADS * BATCH, SEQ_TOTAL, HIDDEN)
        ks = ks.reshape(NUM_HEADS * BATCH, SEQ_TOTAL, HIDDEN)
        vs = vs.reshape(NUM_HEADS * BATCH, SEQ_TOTAL, HIDDEN)

        # batched attention over n = (head, batch); padded lanes are zero -> no effect
        scores = jnp.einsum('nqd,nkd->nqk', qs, ks,
                            preferred_element_type=f32) * scale
        scores = scores + mask_stack[:, None, :]
        m = jnp.max(scores, axis=-1, keepdims=True)
        p = jnp.exp(scores - m)
        # NOTE: approx reciprocal (EUP slot); not bit-identical to exact softmax.
        p = p * pl.reciprocal(jnp.sum(p, axis=-1, keepdims=True), approx=True)
        ctx = jnp.einsum('nqk,nkd->nqd', p, vs, preferred_element_type=f32)
        ctx = ctx.reshape(NUM_HEADS, BS, HIDDEN)

        # output projection as a sum of per-head matmuls (no lane concat)
        attn = vrow(3 * NUM_HEADS)                                # bo
        for h in range(NUM_HEADS):
            attn = attn + jnp.dot(ctx[h], wmat((3 * NUM_HEADS + h) * HIDDEN),
                                  preferred_element_type=f32)
        x1 = _layer_norm(x + attn, vrow(3 * NUM_HEADS + 1),
                         vrow(3 * NUM_HEADS + 2), LN_EPS)

        ibase = l * LSTRIDE_I
        wi = lwi_ref[ibase:ibase + HIDDEN, :]                     # (H, I)
        bi = lwi_ref[ibase + HIDDEN:ibase + HIDDEN + 1, :]        # (1, I)
        # TODO(synk): HF BERT uses exact erf-GELU; tanh-approximate GELU used here.
        hmid = jax.nn.gelu(jnp.dot(x1, wi, preferred_element_type=f32) + bi,
                           approximate=True)
        ffn = jnp.dot(hmid, wmat(LWF_OFF, rows=INTERMEDIATE),
                      preferred_element_type=f32) + vrow(3 * NUM_HEADS + 3)
        x = _layer_norm(x1 + ffn, vrow(3 * NUM_HEADS + 4),
                        vrow(3 * NUM_HEADS + 5), LN_EPS)

    # ---- bert_pooler (tanh on [CLS]) + classifier linear ----
    cls_tok = x.reshape(BATCH, SEQ_TOTAL, HIDDEN)[:, 0:1, :].reshape(BATCH, HIDDEN)
    pooled = jnp.tanh(
        jnp.dot(cls_tok, misc_ref[M_POOLW:M_POOLW + HIDDEN, :],
                preferred_element_type=f32) + misc_ref[M_VEC + 5:M_VEC + 6, :])
    logits_full = jnp.dot(pooled, misc_ref[M_CLSW:M_CLSW + HIDDEN, :],
                          preferred_element_type=f32) \
        + misc_ref[M_VEC + 6:M_VEC + 7, :]
    logits_ref[...] = logits_full[:, 0:NUM_LABELS]


# ------------------------------ wrapper ---------------------------------------
_VMEM = pl.BlockSpec(memory_space=pltpu.MemorySpace.VMEM)


def vinvl_fused(ids, tts, mask, img_bf16, packed):
    args = (ids, tts, mask, img_bf16,
            packed["img_w"], packed["misc"], packed["lwh"], packed["lwi"])
    return pl.pallas_call(
        vinvl_fused_kernel,
        out_shape=jax.ShapeDtypeStruct((BATCH, NUM_LABELS), jnp.float32),
        in_specs=[_VMEM] * len(args),
        out_specs=_VMEM,
    )(*args)


# ------------------------------ parameters -----------------------------------
def init_params(key):
    """Logical (module-shaped) parameters."""
    def nrm(k, shape):
        return 0.02 * jax.random.normal(k, shape, dtype=jnp.float32)

    keys = iter(jax.random.split(key, 40))
    L, H, I, NL = NUM_LAYERS, HIDDEN, INTERMEDIATE, NUM_LABELS
    return {
        "word_emb": nrm(next(keys), (VOCAB, H)),
        "pos_emb": nrm(next(keys), (SEQ_TEXT, H)),
        "type_emb": nrm(next(keys), (TYPE_VOCAB, H)),
        "emb_ln_g": jnp.ones((1, H), jnp.float32),
        "emb_ln_b": jnp.zeros((1, H), jnp.float32),
        "img_w": nrm(next(keys), (IMG_FEAT_DIM, H)),
        "img_b": nrm(next(keys), (1, H)),
        "img_ln_g": jnp.ones((1, H), jnp.float32),
        "img_ln_b": jnp.zeros((1, H), jnp.float32),
        "wq": nrm(next(keys), (L, H, H)), "bq": nrm(next(keys), (L, 1, H)),
        "wk": nrm(next(keys), (L, H, H)), "bk": nrm(next(keys), (L, 1, H)),
        "wv": nrm(next(keys), (L, H, H)), "bv": nrm(next(keys), (L, 1, H)),
        "wo": nrm(next(keys), (L, H, H)), "bo": nrm(next(keys), (L, 1, H)),
        "ln1_g": jnp.ones((L, 1, H), jnp.float32),
        "ln1_b": jnp.zeros((L, 1, H), jnp.float32),
        "wi": nrm(next(keys), (L, H, I)), "bi": nrm(next(keys), (L, 1, I)),
        "wf": nrm(next(keys), (L, I, H)), "bf": nrm(next(keys), (L, 1, H)),
        "ln2_g": jnp.ones((L, 1, H), jnp.float32),
        "ln2_b": jnp.zeros((L, 1, H), jnp.float32),
        "pool_w": nrm(next(keys), (H, H)),
        "pool_b": nrm(next(keys), (1, H)),
        "cls_w": nrm(next(keys), (H, NL)),
        "cls_b": nrm(next(keys), (1, NL)),
    }


def pack_params(p):
    """Pack logical params into the few VMEM slabs the kernel expects."""
    H, I, L, NH, HD = HIDDEN, INTERMEDIATE, NUM_LAYERS, NUM_HEADS, HEAD_DIM
    z1 = jnp.zeros((1, H), jnp.float32)
    zi = jnp.zeros((1, I), jnp.float32)

    def head_cols(w, h):   # (H,H) -> head-h cols in lanes [0:HD], rest zero
        return jnp.pad(w[:, h * HD:(h + 1) * HD], ((0, 0), (0, H - HD)))

    def head_rows(w, h):   # (H,H) -> head-h rows in rows [0:HD], rest zero
        return jnp.pad(w[h * HD:(h + 1) * HD, :], ((0, H - HD), (0, 0)))

    def head_bias(b, h):   # (1,H) -> head-h slice in lanes [0:HD], rest zero
        return jnp.pad(b[:, h * HD:(h + 1) * HD], ((0, 0), (0, H - HD)))

    # --- misc table (width H) ---
    misc = jnp.concatenate([
        jnp.pad(p["word_emb"], ((0, VOCAB_PAD - VOCAB), (0, 0))),    # [0, 128)
        jnp.pad(p["type_emb"], ((0, 8 - TYPE_VOCAB), (0, 0))),       # [128, 136)
        p["pos_emb"],                                                # [136, 144)
        p["emb_ln_g"], p["emb_ln_b"], p["img_b"],
        p["img_ln_g"], p["img_ln_b"], p["pool_b"],
        jnp.pad(p["cls_b"], ((0, 0), (0, H - NUM_LABELS))), z1,      # [144, 152)
        p["pool_w"],                                                 # [152, 184)
        jnp.pad(p["cls_w"], ((0, 0), (0, H - NUM_LABELS))),          # [184, 216)
    ], axis=0)
    assert misc.shape == (M_ROWS, H)

    # --- per-layer width-H slab ---
    layer_chunks = []
    for l in range(L):
        blocks = []
        for name in ("wq", "wk", "wv"):
            blocks += [head_cols(p[name][l], h) for h in range(NH)]
        blocks += [head_rows(p["wo"][l], h) for h in range(NH)]
        blocks.append(p["wf"][l])                                    # (I, H)
        vec = ([head_bias(p["bq"][l], h) for h in range(NH)]
               + [head_bias(p["bk"][l], h) for h in range(NH)]
               + [head_bias(p["bv"][l], h) for h in range(NH)]
               + [p["bo"][l], p["ln1_g"][l], p["ln1_b"][l], p["bf"][l],
                  p["ln2_g"][l], p["ln2_b"][l]])
        vec += [z1] * (LVEC_ROWS - len(vec))
        layer_chunks.append(jnp.concatenate(blocks + vec, axis=0))
    lwh = jnp.concatenate(layer_chunks, axis=0)
    assert lwh.shape == (L * LSTRIDE_H, H)

    # --- per-layer width-I slab ---
    layer_chunks_i = []
    for l in range(L):
        layer_chunks_i.append(jnp.concatenate(
            [p["wi"][l], p["bi"][l]] + [zi] * (LSTRIDE_I - H - 1), axis=0))
    lwi = jnp.concatenate(layer_chunks_i, axis=0)
    assert lwi.shape == (L * LSTRIDE_I, I)

    return {
        # bf16 MXU operand for the only K-deep matmul (accumulation stays f32)
        "img_w": p["img_w"].astype(jnp.bfloat16),
        "misc": misc.astype(jnp.float32),
        "lwh": lwh.astype(jnp.float32),
        "lwi": lwi.astype(jnp.float32),
    }


# ------------------------------ full forward ----------------------------------
def vinvl_forward(packed, input_ids, token_type_ids, attention_mask, img_feats,
                  labels=None):
    # Only trivial dtype casts / metadata reshapes in the wrapper; gathers,
    # mask arithmetic and sequence assembly all happen inside the kernel.
    ids = input_ids.reshape(-1, 1).astype(jnp.int32)
    tts = token_type_ids.reshape(-1, 1).astype(jnp.int32)
    mask = attention_mask.astype(jnp.float32)
    img_bf16 = img_feats.astype(jnp.bfloat16)

    logits = vinvl_fused(ids, tts, mask, img_bf16, packed)          # (B, num_labels)

    result = {"scores": logits}
    if labels is not None:
        logp = jax.nn.log_softmax(logits, axis=-1)
        ce = -jnp.mean(jnp.take_along_axis(logp, labels[:, None], axis=1))
        result["losses"] = {"ce": ce}
    return result


if __name__ == "__main__":
    key = jax.random.PRNGKey(0)
    kp, k1, k2, k3 = jax.random.split(key, 4)
    params = init_params(kp)
    packed = pack_params(params)

    input_ids = jax.random.randint(k1, (BATCH, SEQ_TEXT), 0, VOCAB, dtype=jnp.int32)
    token_type_ids = jnp.zeros((BATCH, SEQ_TEXT), jnp.int32).at[:, SEQ_TEXT // 2:].set(1)
    # mask out the last two image regions of the second example
    attention_mask = jnp.ones((BATCH, SEQ_TOTAL), jnp.float32)
    attention_mask = attention_mask.at[1, -2:].set(0.0)
    img_feats = jax.random.normal(k2, (BATCH, NUM_REGIONS, IMG_FEAT_DIM), jnp.float32)
    labels = jax.random.randint(k3, (BATCH,), 0, NUM_LABELS, dtype=jnp.int32)

    fwd = jax.jit(vinvl_forward)
    out = fwd(packed, input_ids, token_type_ids, attention_mask, img_feats, labels)
    jax.block_until_ready(out)
    assert out["scores"].shape == (BATCH, NUM_LABELS)
    assert out["losses"]["ce"].shape == ()
    print("KERNEL_OK")
</pallas_src>

<mosaic_0001>
module attributes {stable_mosaic.version = 11 : i64} {
  func.func @vinvl_fused_kernel(%arg0: memref<16x1xi32, #tpu.memory_space<vmem>>, %arg1: memref<16x1xi32, #tpu.memory_space<vmem>>, %arg2: memref<2x16xf32, #tpu.memory_space<vmem>>, %arg3: memref<2x8x2054xbf16, #tpu.memory_space<vmem>>, %arg4: memref<2054x32xbf16, #tpu.memory_space<vmem>>, %arg5: memref<216x32xf32, #tpu.memory_space<vmem>>, %arg6: memref<800x32xf32, #tpu.memory_space<vmem>>, %arg7: memref<80x128xf32, #tpu.memory_space<vmem>>, %arg8: memref<2x2xf32, #tpu.memory_space<vmem>>) attributes {dimension_semantics = [], scalar_prefetch = 0 : i64, scratch_operands = 0 : i64, tpu.core_type = #tpu.core_type<tc>} {
    %c0 = arith.constant 0 : index
    %c0_0 = arith.constant 0 : index
    %0 = vector.load %arg0[%c0, %c0_0] : memref<16x1xi32, #tpu.memory_space<vmem>>, vector<16x1xi32>
    %c0_1 = arith.constant 0 : index
    %c0_2 = arith.constant 0 : index
    %1 = vector.load %arg1[%c0_1, %c0_2] : memref<16x1xi32, #tpu.memory_space<vmem>>, vector<16x1xi32>
    %2 = tpu.iota {dimensions = array<i32: 1>} : vector<16x128xi32>
    %3 = vector.broadcast %0 : vector<16x1xi32> to vector<16x128xi32>
    %4 = arith.cmpi eq, %2, %3 : vector<16x128xi32>
    %5 = arith.extui %4 : vector<16x128xi1> to vector<16x128xi32>
    %6 = arith.sitofp %5 : vector<16x128xi32> to vector<16x128xf32>
    %c0_3 = arith.constant 0 : index
    %c0_4 = arith.constant 0 : index
    %7 = vector.load %arg5[%c0_3, %c0_4] : memref<216x32xf32, #tpu.memory_space<vmem>>, vector<128x32xf32>
    %cst = arith.constant dense<0.000000e+00> : vector<16x32xf32>
    %8 = tpu.matmul %6, %7, %cst {dimension_numbers = #tpu.dot_dimension_numbers<[1], [0], [0], [1], [0, 0, 1, 1], [], []>} : vector<16x128xf32>, vector<128x32xf32>, vector<16x32xf32> -> vector<16x32xf32>
    %c0_i32 = arith.constant 0 : i32
    %9 = vector.broadcast %c0_i32 : i32 to vector<16x1xi32>
    %10 = arith.cmpi eq, %1, %9 : vector<16x1xi32>
    %c128 = arith.constant 128 : index
    %c0_5 = arith.constant 0 : index
    %11 = vector.load %arg5[%c128, %c0_5] : memref<216x32xf32, #tpu.memory_space<vmem>>, vector<1x32xf32>
    %c129 = arith.constant 129 : index
    %c0_6 = arith.constant 0 : index
    %12 = vector.load %arg5[%c129, %c0_6] : memref<216x32xf32, #tpu.memory_space<vmem>>, vector<1x32xf32>
    %13 = vector.shape_cast %10 : vector<16x1xi1> to vector<16x1xi1>
    %14 = vector.broadcast %13 : vector<16x1xi1> to vector<16x32xi1>
    %15 = vector.shape_cast %11 : vector<1x32xf32> to vector<1x32xf32>
    %16 = vector.broadcast %15 : vector<1x32xf32> to vector<16x32xf32>
    %17 = vector.shape_cast %12 : vector<1x32xf32> to vector<1x32xf32>
    %18 = vector.broadcast %17 : vector<1x32xf32> to vector<16x32xf32>
    %19 = arith.select %14, %16, %18 : vector<16x32xi1>, vector<16x32xf32>
    %c136 = arith.constant 136 : index
    %c0_7 = arith.constant 0 : index
    %20 = vector.load %arg5[%c136, %c0_7] : memref<216x32xf32, #tpu.memory_space<vmem>>, vector<8x32xf32>
    %21 = tpu.concatenate %20, %20 in 0 : vector<8x32xf32>, vector<8x32xf32> -> vector<16x32xf32>
    %22 = arith.addf %8, %19 : vector<16x32xf32>
    %23 = arith.addf %22, %21 : vector<16x32xf32>
    %c144 = arith.constant 144 : index
    %c0_8 = arith.constant 0 : index
    %24 = vector.load %arg5[%c144, %c0_8] : memref<216x32xf32, #tpu.memory_space<vmem>>, vector<1x32xf32>
    %c145 = arith.constant 145 : index
    %c0_9 = arith.constant 0 : index
    %25 = vector.load %arg5[%c145, %c0_9] : memref<216x32xf32, #tpu.memory_space<vmem>>, vector<1x32xf32>
    %cst_10 = arith.constant dense<0.000000e+00> : vector<16xf32>
    %26 = vector.multi_reduction <add>, %23, %cst_10 [1] : vector<16x32xf32> to vector<16xf32>
    %27 = vector.shape_cast %26 : vector<16xf32> to vector<16x1xf32>
    %cst_11 = arith.constant 3.200000e+01 : f32
    %28 = vector.broadcast %cst_11 : f32 to vector<16x1xf32>
    %29 = arith.divf %27, %28 : vector<16x1xf32>
    %30 = vector.broadcast %29 : vector<16x1xf32> to vector<16x32xf32>
    %31 = arith.subf %23, %30 : vector<16x32xf32>
    %32 = arith.mulf %31, %31 : vector<16x32xf32>
    %cst_12 = arith.constant dense<0.000000e+00> : vector<16xf32>
    %33 = vector.multi_reduction <add>, %32, %cst_12 [1] : vector<16x32xf32> to vector<16xf32>
    %34 = vector.shape_cast %33 : vector<16xf32> to vector<16x1xf32>
    %cst_13 = arith.constant 3.200000e+01 : f32
    %35 = vector.broadcast %cst_13 : f32 to vector<16x1xf32>
    %36 = arith.divf %34, %35 : vector<16x1xf32>
    %cst_14 = arith.constant 9.99999996E-13 : f32
    %37 = vector.broadcast %cst_14 : f32 to vector<16x1xf32>
    %38 = arith.addf %36, %37 : vector<16x1xf32>
    %39 = math.rsqrt %38 : vector<16x1xf32>
    %40 = vector.broadcast %39 : vector<16x1xf32> to vector<16x32xf32>
    %41 = arith.mulf %31, %40 : vector<16x32xf32>
    %42 = vector.broadcast %24 : vector<1x32xf32> to vector<16x32xf32>
    %43 = arith.mulf %41, %42 : vector<16x32xf32>
    %44 = vector.broadcast %25 : vector<1x32xf32> to vector<16x32xf32>
    %45 = arith.addf %43, %44 : vector<16x32xf32>
    %c0_15 = arith.constant 0 : index
    %c0_16 = arith.constant 0 : index
    %c0_17 = arith.constant 0 : index
    %46 = vector.load %arg3[%c0_15, %c0_16, %c0_17] : memref<2x8x2054xbf16, #tpu.memory_space<vmem>>, vector<2x8x2054xbf16>
    %47 = vector.shape_cast %46 : vector<2x8x2054xbf16> to vector<16x2054xbf16>
    %c0_18 = arith.constant 0 : index
    %c0_19 = arith.constant 0 : index
    %48 = vector.load %arg4[%c0_18, %c0_19] : memref<2054x32xbf16, #tpu.memory_space<vmem>>, vector<2054x32xbf16>
    %cst_20 = arith.constant dense<0.000000e+00> : vector<16x32xf32>
    %49 = tpu.matmul %47, %48, %cst_20 {dimension_numbers = #tpu.dot_dimension_numbers<[1], [0], [0], [1], [0, 0, 1, 1], [], []>} : vector<16x2054xbf16>, vector<2054x32xbf16>, vector<16x32xf32> -> vector<16x32xf32>
    %c146 = arith.constant 146 : index
    %c0_21 = arith.constant 0 : index
    %50 = vector.load %arg5[%c146, %c0_21] : memref<216x32xf32, #tpu.memory_space<vmem>>, vector<1x32xf32>
    %51 = vector.broadcast %50 : vector<1x32xf32> to vector<16x32xf32>
    %52 = arith.addf %49, %51 : vector<16x32xf32>
    %c147 = arith.constant 147 : index
    %c0_22 = arith.constant 0 : index
    %53 = vector.load %arg5[%c147, %c0_22] : memref<216x32xf32, #tpu.memory_space<vmem>>, vector<1x32xf32>
    %c148 = arith.constant 148 : index
    %c0_23 = arith.constant 0 : index
    %54 = vector.load %arg5[%c148, %c0_23] : memref<216x32xf32, #tpu.memory_space<vmem>>, vector<1x32xf32>
    %cst_24 = arith.constant dense<0.000000e+00> : vector<16xf32>
    %55 = vector.multi_reduction <add>, %52, %cst_24 [1] : vector<16x32xf32> to vector<16xf32>
    %56 = vector.shape_cast %55 : vector<16xf32> to vector<16x1xf32>
    %cst_25 = arith.constant 3.200000e+01 : f32
    %57 = vector.broadcast %cst_25 : f32 to vector<16x1xf32>
    %58 = arith.divf %56, %57 : vector<16x1xf32>
    %59 = vector.broadcast %58 : vector<16x1xf32> to vector<16x32xf32>
    %60 = arith.subf %52, %59 : vector<16x32xf32>
    %61 = arith.mulf %60, %60 : vector<16x32xf32>
    %cst_26 = arith.constant dense<0.000000e+00> : vector<16xf32>
    %62 = vector.multi_reduction <add>, %61, %cst_26 [1] : vector<16x32xf32> to vector<16xf32>
    %63 = vector.shape_cast %62 : vector<16xf32> to vector<16x1xf32>
    %cst_27 = arith.constant 3.200000e+01 : f32
    %64 = vector.broadcast %cst_27 : f32 to vector<16x1xf32>
    %65 = arith.divf %63, %64 : vector<16x1xf32>
    %cst_28 = arith.constant 9.99999996E-13 : f32
    %66 = vector.broadcast %cst_28 : f32 to vector<16x1xf32>
    %67 = arith.addf %65, %66 : vector<16x1xf32>
    %68 = math.rsqrt %67 : vector<16x1xf32>
    %69 = vector.broadcast %68 : vector<16x1xf32> to vector<16x32xf32>
    %70 = arith.mulf %60, %69 : vector<16x32xf32>
    %71 = vector.broadcast %53 : vector<1x32xf32> to vector<16x32xf32>
    %72 = arith.mulf %70, %71 : vector<16x32xf32>
    %73 = vector.broadcast %54 : vector<1x32xf32> to vector<16x32xf32>
    %74 = arith.addf %72, %73 : vector<16x32xf32>
    %75 = vector.shape_cast %45 : vector<16x32xf32> to vector<2x8x32xf32>
    %76 = vector.shape_cast %74 : vector<16x32xf32> to vector<2x8x32xf32>
    %77 = tpu.concatenate %75, %76 in 1 : vector<2x8x32xf32>, vector<2x8x32xf32> -> vector<2x16x32xf32>
    %78 = vector.shape_cast %77 : vector<2x16x32xf32> to vector<32x32xf32>
    %c0_29 = arith.constant 0 : index
    %c0_30 = arith.constant 0 : index
    %79 = vector.load %arg2[%c0_29, %c0_30] : memref<2x16xf32, #tpu.memory_space<vmem>>, vector<2x16xf32>
    %cst_31 = arith.constant 1.000000e+00 : f32
    %80 = vector.broadcast %cst_31 : f32 to vector<2x16xf32>
    %81 = arith.subf %80, %79 : vector<2x16xf32>
    %cst_32 = arith.constant -1.000000e+04 : f32
    %82 = vector.broadcast %cst_32 : f32 to vector<2x16xf32>
    %83 = arith.mulf %81, %82 : vector<2x16xf32>
    %84 = tpu.concatenate %83, %83 in 0 : vector<2x16xf32>, vector<2x16xf32> -> vector<4x16xf32>
    %c0_33 = arith.constant 0 : index
    %c0_34 = arith.constant 0 : index
    %85 = vector.load %arg6[%c0_33, %c0_34] : memref<800x32xf32, #tpu.memory_space<vmem>>, vector<32x32xf32>
    %cst_35 = arith.constant dense<0.000000e+00> : vector<32x32xf32>
    %86 = tpu.matmul %78, %85, %cst_35 {dimension_numbers = #tpu.dot_dimension_numbers<[1], [0], [0], [1], [0, 0, 1, 1], [], []>} : vector<32x32xf32>, vector<32x32xf32>, vector<32x32xf32> -> vector<32x32xf32>
    %c384 = arith.constant 384 : index
    %c0_36 = arith.constant 0 : index
    %87 = vector.load %arg6[%c384, %c0_36] : memref<800x32xf32, #tpu.memory_space<vmem>>, vector<1x32xf32>
    %88 = vector.broadcast %87 : vector<1x32xf32> to vector<32x32xf32>
    %89 = arith.addf %86, %88 : vector<32x32xf32>
    %c32 = arith.constant 32 : index
    %c0_37 = arith.constant 0 : index
    %90 = vector.load %arg6[%c32, %c0_37] : memref<800x32xf32, #tpu.memory_space<vmem>>, vector<32x32xf32>
    %cst_38 = arith.constant dense<0.000000e+00> : vector<32x32xf32>
    %91 = tpu.matmul %78, %90, %cst_38 {dimension_numbers = #tpu.dot_dimension_numbers<[1], [0], [0], [1], [0, 0, 1, 1], [], []>} : vector<32x32xf32>, vector<32x32xf32>, vector<32x32xf32> -> vector<32x32xf32>
    %c385 = arith.constant 385 : index
    %c0_39 = arith.constant 0 : index
    %92 = vector.load %arg6[%c385, %c0_39] : memref<800x32xf32, #tpu.memory_space<vmem>>, vector<1x32xf32>
    %93 = vector.broadcast %92 : vector<1x32xf32> to vector<32x32xf32>
    %94 = arith.addf %91, %93 : vector<32x32xf32>
    %95 = tpu.concatenate %89, %94 in 0 : vector<32x32xf32>, vector<32x32xf32> -> vector<64x32xf32>
    %c64 = arith.constant 64 : index
    %c0_40 = arith.constant 0 : index
    %96 = vector.load %arg6[%c64, %c0_40] : memref<800x32xf32, #tpu.memory_space<vmem>>, vector<32x32xf32>
    %cst_41 = arith.constant dense<0.000000e+00> : vector<32x32xf32>
    %97 = tpu.matmul %78, %96, %cst_41 {dimension_numbers = #tpu.dot_dimension_numbers<[1], [0], [0], [1], [0, 0, 1, 1], [], []>} : vector<32x32xf32>, vector<32x32xf32>, vector<32x32xf32> -> vector<32x32xf32>
    %c386 = arith.constant 386 : index
    %c0_42 = arith.constant 0 : index
    %98 = vector.load %arg6[%c386, %c0_42] : memref<800x32xf32, #tpu.memory_space<vmem>>, vector<1x32xf32>
    %99 = vector.broadcast %98 : vector<1x32xf32> to vector<32x32xf32>
    %100 = arith.addf %97, %99 : vector<32x32xf32>
    %c96 = arith.constant 96 : index
    %c0_43 = arith.constant 0 : index
    %101 = vector.load %arg6[%c96, %c0_43] : memref<800x32xf32, #tpu.memory_space<vmem>>, vector<32x32xf32>
    %cst_44 = arith.constant dense<0.000000e+00> : vector<32x32xf32>
    %102 = tpu.matmul %78, %101, %cst_44 {dimension_numbers = #tpu.dot_dimension_numbers<[1], [0], [0], [1], [0, 0, 1, 1], [], []>} : vector<32x32xf32>, vector<32x32xf32>, vector<32x32xf32> -> vector<32x32xf32>
    %c387 = arith.constant 387 : index
    %c0_45 = arith.constant 0 : index
    %103 = vector.load %arg6[%c387, %c0_45] : memref<800x32xf32, #tpu.memory_space<vmem>>, vector<1x32xf32>
    %104 = vector.broadcast %103 : vector<1x32xf32> to vector<32x32xf32>
    %105 = arith.addf %102, %104 : vector<32x32xf32>
    %106 = tpu.concatenate %100, %105 in 0 : vector<32x32xf32>, vector<32x32xf32> -> vector<64x32xf32>
    %c128_46 = arith.constant 128 : index
    %c0_47 = arith.constant 0 : index
    %107 = vector.load %arg6[%c128_46, %c0_47] : memref<800x32xf32, #tpu.memory_space<vmem>>, vector<32x32xf32>
    %cst_48 = arith.constant dense<0.000000e+00> : vector<32x32xf32>
    %108 = tpu.matmul %78, %107, %cst_48 {dimension_numbers = #tpu.dot_dimension_numbers<[1], [0], [0], [1], [0, 0, 1, 1], [], []>} : vector<32x32xf32>, vector<32x32xf32>, vector<32x32xf32> -> vector<32x32xf32>
    %c388 = arith.constant 388 : index
    %c0_49 = arith.constant 0 : index
    %109 = vector.load %arg6[%c388, %c0_49] : memref<800x32xf32, #tpu.memory_space<vmem>>, vector<1x32xf32>
    %110 = vector.broadcast %109 : vector<1x32xf32> to vector<32x32xf32>
    %111 = arith.addf %108, %110 : vector<32x32xf32>
    %c160 = arith.constant 160 : index
    %c0_50 = arith.constant 0 : index
    %112 = vector.load %arg6[%c160, %c0_50] : memref<800x32xf32, #tpu.memory_space<vmem>>, vector<32x32xf32>
    %cst_51 = arith.constant dense<0.000000e+00> : vector<32x32xf32>
    %113 = tpu.matmul %78, %112, %cst_51 {dimension_numbers = #tpu.dot_dimension_numbers<[1], [0], [0], [1], [0, 0, 1, 1], [], []>} : vector<32x32xf32>, vector<32x32xf32>, vector<32x32xf32> -> vector<32x32xf32>
    %c389 = arith.constant 389 : index
    %c0_52 = arith.constant 0 : index
    %114 = vector.load %arg6[%c389, %c0_52] : memref<800x32xf32, #tpu.memory_space<vmem>>, vector<1x32xf32>
    %115 = vector.broadcast %114 : vector<1x32xf32> to vector<32x32xf32>
    %116 = arith.addf %113, %115 : vector<32x32xf32>
    %117 = tpu.concatenate %111, %116 in 0 : vector<32x32xf32>, vector<32x32xf32> -> vector<64x32xf32>
    %118 = vector.shape_cast %95 : vector<64x32xf32> to vector<4x16x32xf32>
    %119 = vector.shape_cast %106 : vector<64x32xf32> to vector<4x16x32xf32>
    %120 = vector.shape_cast %117 : vector<64x32xf32> to vector<4x16x32xf32>
    "tpu.trace_start"() <{level = 10 : i32, message = "nqd,nkd->nqk"}> : () -> ()
    %cst_53 = arith.constant dense<0.000000e+00> : vector<4x16x16xf32>
    %121 = tpu.matmul %118, %119, %cst_53 {dimension_numbers = #tpu.dot_dimension_numbers<[2], [2], [1], [1], [0, 0, 0, 1, 1, 1], [0], [0]>} : vector<4x16x32xf32>, vector<4x16x32xf32>, vector<4x16x16xf32> -> vector<4x16x16xf32>
    "tpu.trace_stop"() : () -> ()
    %cst_54 = arith.constant 2.500000e-01 : f32
    %122 = vector.broadcast %cst_54 : f32 to vector<4x16x16xf32>
    %123 = arith.mulf %121, %122 : vector<4x16x16xf32>
    %124 = vector.shape_cast %84 : vector<4x16xf32> to vector<4x1x16xf32>
    %125 = vector.broadcast %124 : vector<4x1x16xf32> to vector<4x16x16xf32>
    %126 = arith.addf %123, %125 : vector<4x16x16xf32>
    %cst_55 = arith.constant dense<0xFF800000> : vector<4x16xf32>
    %127 = vector.multi_reduction <maximumf>, %126, %cst_55 [2] : vector<4x16x16xf32> to vector<4x16xf32>
    %128 = vector.shape_cast %127 : vector<4x16xf32> to vector<4x16x1xf32>
    %129 = vector.broadcast %128 : vector<4x16x1xf32> to vector<4x16x16xf32>
    %130 = arith.subf %126, %129 : vector<4x16x16xf32>
    %131 = math.exp %130 : vector<4x16x16xf32>
    %cst_56 = arith.constant dense<0.000000e+00> : vector<4x16xf32>
    %132 = vector.multi_reduction <add>, %131, %cst_56 [2] : vector<4x16x16xf32> to vector<4x16xf32>
    %133 = vector.shape_cast %132 : vector<4x16xf32> to vector<4x16x1xf32>
    %134 = tpu.reciprocal %133 {approx = true} : vector<4x16x1xf32> -> vector<4x16x1xf32>
    %135 = vector.broadcast %134 : vector<4x16x1xf32> to vector<4x16x16xf32>
    %136 = arith.mulf %131, %135 : vector<4x16x16xf32>
    "tpu.trace_start"() <{level = 10 : i32, message = "nqk,nkd->nqd"}> : () -> ()
    %cst_57 = arith.constant dense<0.000000e+00> : vector<4x16x32xf32>
    %137 = tpu.matmul %136, %120, %cst_57 {dimension_numbers = #tpu.dot_dimension_numbers<[2], [1], [1], [2], [0, 0, 0, 1, 1, 2], [0], [0]>} : vector<4x16x16xf32>, vector<4x16x32xf32>, vector<4x16x32xf32> -> vector<4x16x32xf32>
    "tpu.trace_stop"() : () -> ()
    %138 = vector.shape_cast %137 : vector<4x16x32xf32> to vector<2x32x32xf32>
    %c390 = arith.constant 390 : index
    %c0_58 = arith.constant 0 : index
    %139 = vector.load %arg6[%c390, %c0_58] : memref<800x32xf32, #tpu.memory_space<vmem>>, vector<1x32xf32>
    %140 = vector.extract_strided_slice %138 {offsets = [0, 0, 0], sizes = [1, 32, 32], strides = [1, 1, 1]} : vector<2x32x32xf32> to vector<1x32x32xf32>
    %141 = vector.shape_cast %140 : vector<1x32x32xf32> to vector<32x32xf32>
    %c192 = arith.constant 192 : index
    %c0_59 = arith.constant 0 : index
    %142 = vector.load %arg6[%c192, %c0_59] : memref<800x32xf32, #tpu.memory_space<vmem>>, vector<32x32xf32>
    %cst_60 = arith.constant dense<0.000000e+00> : vector<32x32xf32>
    %143 = tpu.matmul %141, %142, %cst_60 {dimension_numbers = #tpu.dot_dimension_numbers<[1], [0], [0], [1], [0, 0, 1, 1], [], []>} : vector<32x32xf32>, vector<32x32xf32>, vector<32x32xf32> -> vector<32x32xf32>
    %144 = vector.broadcast %139 : vector<1x32xf32> to vector<32x32xf32>
    %145 = arith.addf %144, %143 : vector<32x32xf32>
    %146 = vector.extract_strided_slice %138 {offsets = [1, 0, 0], sizes = [1, 32, 32], strides = [1, 1, 1]} : vector<2x32x32xf32> to vector<1x32x32xf32>
    %147 = vector.shape_cast %146 : vector<1x32x32xf32> to vector<32x32xf32>
    %c224 = arith.constant 224 : index
    %c0_61 = arith.constant 0 : index
    %148 = vector.load %arg6[%c224, %c0_61] : memref<800x32xf32, #tpu.memory_space<vmem>>, vector<32x32xf32>
    %cst_62 = arith.constant dense<0.000000e+00> : vector<32x32xf32>
    %149 = tpu.matmul %147, %148, %cst_62 {dimension_numbers = #tpu.dot_dimension_numbers<[1], [0], [0], [1], [0, 0, 1, 1], [], []>} : vector<32x32xf32>, vector<32x32xf32>, vector<32x32xf32> -> vector<32x32xf32>
    %150 = arith.addf %145, %149 : vector<32x32xf32>
    %151 = arith.addf %78, %150 : vector<32x32xf32>
    %c391 = arith.constant 391 : index
    %c0_63 = arith.constant 0 : index
    %152 = vector.load %arg6[%c391, %c0_63] : memref<800x32xf32, #tpu.memory_space<vmem>>, vector<1x32xf32>
    %c392 = arith.constant 392 : index
    %c0_64 = arith.constant 0 : index
    %153 = vector.load %arg6[%c392, %c0_64] : memref<800x32xf32, #tpu.memory_space<vmem>>, vector<1x32xf32>
    %cst_65 = arith.constant dense<0.000000e+00> : vector<32xf32>
    %154 = vector.multi_reduction <add>, %151, %cst_65 [1] : vector<32x32xf32> to vector<32xf32>
    %155 = vector.shape_cast %154 : vector<32xf32> to vector<32x1xf32>
    %cst_66 = arith.constant 3.200000e+01 : f32
    %156 = vector.broadcast %cst_66 : f32 to vector<32x1xf32>
    %157 = arith.divf %155, %156 : vector<32x1xf32>
    %158 = vector.broadcast %157 : vector<32x1xf32> to vector<32x32xf32>
    %159 = arith.subf %151, %158 : vector<32x32xf32>
    %160 = arith.mulf %159, %159 : vector<32x32xf32>
    %cst_67 = arith.constant dense<0.000000e+00> : vector<32xf32>
    %161 = vector.multi_reduction <add>, %160, %cst_67 [1] : vector<32x32xf32> to vector<32xf32>
    %162 = vector.shape_cast %161 : vector<32xf32> to vector<32x1xf32>
    %cst_68 = arith.constant 3.200000e+01 : f32
    %163 = vector.broadcast %cst_68 : f32 to vector<32x1xf32>
    %164 = arith.divf %162, %163 : vector<32x1xf32>
    %cst_69 = arith.constant 9.99999996E-13 : f32
    %165 = vector.broadcast %cst_69 : f32 to vector<32x1xf32>
    %166 = arith.addf %164, %165 : vector<32x1xf32>
    %167 = math.rsqrt %166 : vector<32x1xf32>
    %168 = vector.broadcast %167 : vector<32x1xf32> to vector<32x32xf32>
    %169 = arith.mulf %159, %168 : vector<32x32xf32>
    %170 = vector.broadcast %152 : vector<1x32xf32> to vector<32x32xf32>
    %171 = arith.mulf %169, %170 : vector<32x32xf32>
    %172 = vector.broadcast %153 : vector<1x32xf32> to vector<32x32xf32>
    %173 = arith.addf %171, %172 : vector<32x32xf32>
    %c0_70 = arith.constant 0 : index
    %c0_71 = arith.constant 0 : index
    %174 = vector.load %arg7[%c0_70, %c0_71] : memref<80x128xf32, #tpu.memory_space<vmem>>, vector<32x128xf32>
    %c32_72 = arith.constant 32 : index
    %c0_73 = arith.constant 0 : index
    %175 = vector.load %arg7[%c32_72, %c0_73] : memref<80x128xf32, #tpu.memory_space<vmem>>, vector<1x128xf32>
    %cst_74 = arith.constant dense<0.000000e+00> : vector<32x128xf32>
    %176 = tpu.matmul %173, %174, %cst_74 {dimension_numbers = #tpu.dot_dimension_numbers<[1], [0], [0], [1], [0, 0, 1, 1], [], []>} : vector<32x32xf32>, vector<32x128xf32>, vector<32x128xf32> -> vector<32x128xf32>
    %177 = vector.broadcast %175 : vector<1x128xf32> to vector<32x128xf32>
    %178 = arith.addf %176, %177 : vector<32x128xf32>
    %179 = arith.mulf %178, %178 : vector<32x128xf32>
    %180 = arith.mulf %178, %179 : vector<32x128xf32>
    %cst_75 = arith.constant 4.471500e-02 : f32
    %181 = vector.broadcast %cst_75 : f32 to vector<32x128xf32>
    %182 = arith.mulf %181, %180 : vector<32x128xf32>
    %183 = arith.addf %178, %182 : vector<32x128xf32>
    %cst_76 = arith.constant 0.797884583 : f32
    %184 = vector.broadcast %cst_76 : f32 to vector<32x128xf32>
    %185 = arith.mulf %184, %183 : vector<32x128xf32>
    %186 = math.tanh %185 : vector<32x128xf32>
    %cst_77 = arith.constant 1.000000e+00 : f32
    %187 = vector.broadcast %cst_77 : f32 to vector<32x128xf32>
    %188 = arith.addf %187, %186 : vector<32x128xf32>
    %cst_78 = arith.constant 5.000000e-01 : f32
    %189 = vector.broadcast %cst_78 : f32 to vector<32x128xf32>
    %190 = arith.mulf %189, %188 : vector<32x128xf32>
    %191 = arith.mulf %178, %190 : vector<32x128xf32>
    %c256 = arith.constant 256 : index
    %c0_79 = arith.constant 0 : index
    %192 = vector.load %arg6[%c256, %c0_79] : memref<800x32xf32, #tpu.memory_space<vmem>>, vector<128x32xf32>
    %cst_80 = arith.constant dense<0.000000e+00> : vector<32x32xf32>
    %193 = tpu.matmul %191, %192, %cst_80 {dimension_numbers = #tpu.dot_dimension_numbers<[1], [0], [0], [1], [0, 0, 1, 1], [], []>} : vector<32x128xf32>, vector<128x32xf32>, vector<32x32xf32> -> vector<32x32xf32>
    %c393 = arith.constant 393 : index
    %c0_81 = arith.constant 0 : index
    %194 = vector.load %arg6[%c393, %c0_81] : memref<800x32xf32, #tpu.memory_space<vmem>>, vector<1x32xf32>
    %195 = vector.broadcast %194 : vector<1x32xf32> to vector<32x32xf32>
    %196 = arith.addf %193, %195 : vector<32x32xf32>
    %197 = arith.addf %173, %196 : vector<32x32xf32>
    %c394 = arith.constant 394 : index
    %c0_82 = arith.constant 0 : index
    %198 = vector.load %arg6[%c394, %c0_82] : memref<800x32xf32, #tpu.memory_space<vmem>>, vector<1x32xf32>
    %c395 = arith.constant 395 : index
    %c0_83 = arith.constant 0 : index
    %199 = vector.load %arg6[%c395, %c0_83] : memref<800x32xf32, #tpu.memory_space<vmem>>, vector<1x32xf32>
    %cst_84 = arith.constant dense<0.000000e+00> : vector<32xf32>
    %200 = vector.multi_reduction <add>, %197, %cst_84 [1] : vector<32x32xf32> to vector<32xf32>
    %201 = vector.shape_cast %200 : vector<32xf32> to vector<32x1xf32>
    %cst_85 = arith.constant 3.200000e+01 : f32
    %202 = vector.broadcast %cst_85 : f32 to vector<32x1xf32>
    %203 = arith.divf %201, %202 : vector<32x1xf32>
    %204 = vector.broadcast %203 : vector<32x1xf32> to vector<32x32xf32>
    %205 = arith.subf %197, %204 : vector<32x32xf32>
    %206 = arith.mulf %205, %205 : vector<32x32xf32>
    %cst_86 = arith.constant dense<0.000000e+00> : vector<32xf32>
    %207 = vector.multi_reduction <add>, %206, %cst_86 [1] : vector<32x32xf32> to vector<32xf32>
    %208 = vector.shape_cast %207 : vector<32xf32> to vector<32x1xf32>
    %cst_87 = arith.constant 3.200000e+01 : f32
    %209 = vector.broadcast %cst_87 : f32 to vector<32x1xf32>
    %210 = arith.divf %208, %209 : vector<32x1xf32>
    %cst_88 = arith.constant 9.99999996E-13 : f32
    %211 = vector.broadcast %cst_88 : f32 to vector<32x1xf32>
    %212 = arith.addf %210, %211 : vector<32x1xf32>
    %213 = math.rsqrt %212 : vector<32x1xf32>
    %214 = vector.broadcast %213 : vector<32x1xf32> to vector<32x32xf32>
    %215 = arith.mulf %205, %214 : vector<32x32xf32>
    %216 = vector.broadcast %198 : vector<1x32xf32> to vector<32x32xf32>
    %217 = arith.mulf %215, %216 : vector<32x32xf32>
    %218 = vector.broadcast %199 : vector<1x32xf32> to vector<32x32xf32>
    %219 = arith.addf %217, %218 : vector<32x32xf32>
    %c400 = arith.constant 400 : index
    %c0_89 = arith.constant 0 : index
    %220 = vector.load %arg6[%c400, %c0_89] : memref<800x32xf32, #tpu.memory_space<vmem>>, vector<32x32xf32>
    %cst_90 = arith.constant dense<0.000000e+00> : vector<32x32xf32>
    %221 = tpu.matmul %219, %220, %cst_90 {dimension_numbers = #tpu.dot_dimension_numbers<[1], [0], [0], [1], [0, 0, 1, 1], [], []>} : vector<32x32xf32>, vector<32x32xf32>, vector<32x32xf32> -> vector<32x32xf32>
    %c784 = arith.constant 784 : index
    %c0_91 = arith.constant 0 : index
    %222 = vector.load %arg6[%c784, %c0_91] : memref<800x32xf32, #tpu.memory_space<vmem>>, vector<1x32xf32>
    %223 = vector.broadcast %222 : vector<1x32xf32> to vector<32x32xf32>
    %224 = arith.addf %221, %223 : vector<32x32xf32>
    %c432 = arith.constant 432 : index
    %c0_92 = arith.constant 0 : index
    %225 = vector.load %arg6[%c432, %c0_92] : memref<800x32xf32, #tpu.memory_space<vmem>>, vector<32x32xf32>
    %cst_93 = arith.constant dense<0.000000e+00> : vector<32x32xf32>
    %226 = tpu.matmul %219, %225, %cst_93 {dimension_numbers = #tpu.dot_dimension_numbers<[1], [0], [0], [1], [0, 0, 1, 1], [], []>} : vector<32x32xf32>, vector<32x32xf32>, vector<32x32xf32> -> vector<32x32xf32>
    %c785 = arith.constant 785 : index
    %c0_94 = arith.constant 0 : index
    %227 = vector.load %arg6[%c785, %c0_94] : memref<800x32xf32, #tpu.memory_space<vmem>>, vector<1x32xf32>
    %228 = vector.broadcast %227 : vector<1x32xf32> to vector<32x32xf32>
    %229 = arith.addf %226, %228 : vector<32x32xf32>
    %230 = tpu.concatenate %224, %229 in 0 : vector<32x32xf32>, vector<32x32xf32> -> vector<64x32xf32>
    %c464 = arith.constant 464 : index
    %c0_95 = arith.constant 0 : index
    %231 = vector.load %arg6[%c464, %c0_95] : memref<800x32xf32, #tpu.memory_space<vmem>>, vector<32x32xf32>
    %cst_96 = arith.constant dense<0.000000e+00> : vector<32x32xf32>
    %232 = tpu.matmul %219, %231, %cst_96 {dimension_numbers = #tpu.dot_dimension_numbers<[1], [0], [0], [1], [0, 0, 1, 1], [], []>} : vector<32x32xf32>, vector<32x32xf32>, vector<32x32xf32> -> vector<32x32xf32>
    %c786 = arith.constant 786 : index
    %c0_97 = arith.constant 0 : index
    %233 = vector.load %arg6[%c786, %c0_97] : memref<800x32xf32, #tpu.memory_space<vmem>>, vector<1x32xf32>
    %234 = vector.broadcast %233 : vector<1x32xf32> to vector<32x32xf32>
    %235 = arith.addf %232, %234 : vector<32x32xf32>
    %c496 = arith.constant 496 : index
    %c0_98 = arith.constant 0 : index
    %236 = vector.load %arg6[%c496, %c0_98] : memref<800x32xf32, #tpu.memory_space<vmem>>, vector<32x32xf32>
    %cst_99 = arith.constant dense<0.000000e+00> : vector<32x32xf32>
    %237 = tpu.matmul %219, %236, %cst_99 {dimension_numbers = #tpu.dot_dimension_numbers<[1], [0], [0], [1], [0, 0, 1, 1], [], []>} : vector<32x32xf32>, vector<32x32xf32>, vector<32x32xf32> -> vector<32x32xf32>
    %c787 = arith.constant 787 : index
    %c0_100 = arith.constant 0 : index
    %238 = vector.load %arg6[%c787, %c0_100] : memref<800x32xf32, #tpu.memory_space<vmem>>, vector<1x32xf32>
    %239 = vector.broadcast %238 : vector<1x32xf32> to vector<32x32xf32>
    %240 = arith.addf %237, %239 : vector<32x32xf32>
    %241 = tpu.concatenate %235, %240 in 0 : vector<32x32xf32>, vector<32x32xf32> -> vector<64x32xf32>
    %c528 = arith.constant 528 : index
    %c0_101 = arith.constant 0 : index
    %242 = vector.load %arg6[%c528, %c0_101] : memref<800x32xf32, #tpu.memory_space<vmem>>, vector<32x32xf32>
    %cst_102 = arith.constant dense<0.000000e+00> : vector<32x32xf32>
    %243 = tpu.matmul %219, %242, %cst_102 {dimension_numbers = #tpu.dot_dimension_numbers<[1], [0], [0], [1], [0, 0, 1, 1], [], []>} : vector<32x32xf32>, vector<32x32xf32>, vector<32x32xf32> -> vector<32x32xf32>
    %c788 = arith.constant 788 : index
    %c0_103 = arith.constant 0 : index
    %244 = vector.load %arg6[%c788, %c0_103] : memref<800x32xf32, #tpu.memory_space<vmem>>, vector<1x32xf32>
    %245 = vector.broadcast %244 : vector<1x32xf32> to vector<32x32xf32>
    %246 = arith.addf %243, %245 : vector<32x32xf32>
    %c560 = arith.constant 560 : index
    %c0_104 = arith.constant 0 : index
    %247 = vector.load %arg6[%c560, %c0_104] : memref<800x32xf32, #tpu.memory_space<vmem>>, vector<32x32xf32>
    %cst_105 = arith.constant dense<0.000000e+00> : vector<32x32xf32>
    %248 = tpu.matmul %219, %247, %cst_105 {dimension_numbers = #tpu.dot_dimension_numbers<[1], [0], [0], [1], [0, 0, 1, 1], [], []>} : vector<32x32xf32>, vector<32x32xf32>, vector<32x32xf32> -> vector<32x32xf32>
    %c789 = arith.constant 789 : index
    %c0_106 = arith.constant 0 : index
    %249 = vector.load %arg6[%c789, %c0_106] : memref<800x32xf32, #tpu.memory_space<vmem>>, vector<1x32xf32>
    %250 = vector.broadcast %249 : vector<1x32xf32> to vector<32x32xf32>
    %251 = arith.addf %248, %250 : vector<32x32xf32>
    %252 = tpu.concatenate %246, %251 in 0 : vector<32x32xf32>, vector<32x32xf32> -> vector<64x32xf32>
    %253 = vector.shape_cast %230 : vector<64x32xf32> to vector<4x16x32xf32>
    %254 = vector.shape_cast %241 : vector<64x32xf32> to vector<4x16x32xf32>
    %255 = vector.shape_cast %252 : vector<64x32xf32> to vector<4x16x32xf32>
    "tpu.trace_start"() <{level = 10 : i32, message = "nqd,nkd->nqk"}> : () -> ()
    %cst_107 = arith.constant dense<0.000000e+00> : vector<4x16x16xf32>
    %256 = tpu.matmul %253, %254, %cst_107 {dimension_numbers = #tpu.dot_dimension_numbers<[2], [2], [1], [1], [0, 0, 0, 1, 1, 1], [0], [0]>} : vector<4x16x32xf32>, vector<4x16x32xf32>, vector<4x16x16xf32> -> vector<4x16x16xf32>
    "tpu.trace_stop"() : () -> ()
    %cst_108 = arith.constant 2.500000e-01 : f32
    %257 = vector.broadcast %cst_108 : f32 to vector<4x16x16xf32>
    %258 = arith.mulf %256, %257 : vector<4x16x16xf32>
    %259 = vector.shape_cast %84 : vector<4x16xf32> to vector<4x1x16xf32>
    %260 = vector.broadcast %259 : vector<4x1x16xf32> to vector<4x16x16xf32>
    %261 = arith.addf %258, %260 : vector<4x16x16xf32>
    %cst_109 = arith.constant dense<0xFF800000> : vector<4x16xf32>
    %262 = vector.multi_reduction <maximumf>, %261, %cst_109 [2] : vector<4x16x16xf32> to vector<4x16xf32>
    %263 = vector.shape_cast %262 : vector<4x16xf32> to vector<4x16x1xf32>
    %264 = vector.broadcast %263 : vector<4x16x1xf32> to vector<4x16x16xf32>
    %265 = arith.subf %261, %264 : vector<4x16x16xf32>
    %266 = math.exp %265 : vector<4x16x16xf32>
    %cst_110 = arith.constant dense<0.000000e+00> : vector<4x16xf32>
    %267 = vector.multi_reduction <add>, %266, %cst_110 [2] : vector<4x16x16xf32> to vector<4x16xf32>
    %268 = vector.shape_cast %267 : vector<4x16xf32> to vector<4x16x1xf32>
    %269 = tpu.reciprocal %268 {approx = true} : vector<4x16x1xf32> -> vector<4x16x1xf32>
    %270 = vector.broadcast %269 : vector<4x16x1xf32> to vector<4x16x16xf32>
    %271 = arith.mulf %266, %270 : vector<4x16x16xf32>
    "tpu.trace_start"() <{level = 10 : i32, message = "nqk,nkd->nqd"}> : () -> ()
    %cst_111 = arith.constant dense<0.000000e+00> : vector<4x16x32xf32>
    %272 = tpu.matmul %271, %255, %cst_111 {dimension_numbers = #tpu.dot_dimension_numbers<[2], [1], [1], [2], [0, 0, 0, 1, 1, 2], [0], [0]>} : vector<4x16x16xf32>, vector<4x16x32xf32>, vector<4x16x32xf32> -> vector<4x16x32xf32>
    "tpu.trace_stop"() : () -> ()
    %273 = vector.shape_cast %272 : vector<4x16x32xf32> to vector<2x32x32xf32>
    %c790 = arith.constant 790 : index
    %c0_112 = arith.constant 0 : index
    %274 = vector.load %arg6[%c790, %c0_112] : memref<800x32xf32, #tpu.memory_space<vmem>>, vector<1x32xf32>
    %275 = vector.extract_strided_slice %273 {offsets = [0, 0, 0], sizes = [1, 32, 32], strides = [1, 1, 1]} : vector<2x32x32xf32> to vector<1x32x32xf32>
    %276 = vector.shape_cast %275 : vector<1x32x32xf32> to vector<32x32xf32>
    %c592 = arith.constant 592 : index
    %c0_113 = arith.constant 0 : index
    %277 = vector.load %arg6[%c592, %c0_113] : memref<800x32xf32, #tpu.memory_space<vmem>>, vector<32x32xf32>
    %cst_114 = arith.constant dense<0.000000e+00> : vector<32x32xf32>
    %278 = tpu.matmul %276, %277, %cst_114 {dimension_numbers = #tpu.dot_dimension_numbers<[1], [0], [0], [1], [0, 0, 1, 1], [], []>} : vector<32x32xf32>, vector<32x32xf32>, vector<32x32xf32> -> vector<32x32xf32>
    %279 = vector.broadcast %274 : vector<1x32xf32> to vector<32x32xf32>
    %280 = arith.addf %279, %278 : vector<32x32xf32>
    %281 = vector.extract_strided_slice %273 {offsets = [1, 0, 0], sizes = [1, 32, 32], strides = [1, 1, 1]} : vector<2x32x32xf32> to vector<1x32x32xf32>
    %282 = vector.shape_cast %281 : vector<1x32x32xf32> to vector<32x32xf32>
    %c624 = arith.constant 624 : index
    %c0_115 = arith.constant 0 : index
    %283 = vector.load %arg6[%c624, %c0_115] : memref<800x32xf32, #tpu.memory_space<vmem>>, vector<32x32xf32>
    %cst_116 = arith.constant dense<0.000000e+00> : vector<32x32xf32>
    %284 = tpu.matmul %282, %283, %cst_116 {dimension_numbers = #tpu.dot_dimension_numbers<[1], [0], [0], [1], [0, 0, 1, 1], [], []>} : vector<32x32xf32>, vector<32x32xf32>, vector<32x32xf32> -> vector<32x32xf32>
    %285 = arith.addf %280, %284 : vector<32x32xf32>
    %286 = arith.addf %219, %285 : vector<32x32xf32>
    %c791 = arith.constant 791 : index
    %c0_117 = arith.constant 0 : index
    %287 = vector.load %arg6[%c791, %c0_117] : memref<800x32xf32, #tpu.memory_space<vmem>>, vector<1x32xf32>
    %c792 = arith.constant 792 : index
    %c0_118 = arith.constant 0 : index
    %288 = vector.load %arg6[%c792, %c0_118] : memref<800x32xf32, #tpu.memory_space<vmem>>, vector<1x32xf32>
    %cst_119 = arith.constant dense<0.000000e+00> : vector<32xf32>
    %289 = vector.multi_reduction <add>, %286, %cst_119 [1] : vector<32x32xf32> to vector<32xf32>
    %290 = vector.shape_cast %289 : vector<32xf32> to vector<32x1xf32>
    %cst_120 = arith.constant 3.200000e+01 : f32
    %291 = vector.broadcast %cst_120 : f32 to vector<32x1xf32>
    %292 = arith.divf %290, %291 : vector<32x1xf32>
    %293 = vector.broadcast %292 : vector<32x1xf32> to vector<32x32xf32>
    %294 = arith.subf %286, %293 : vector<32x32xf32>
    %295 = arith.mulf %294, %294 : vector<32x32xf32>
    %cst_121 = arith.constant dense<0.000000e+00> : vector<32xf32>
    %296 = vector.multi_reduction <add>, %295, %cst_121 [1] : vector<32x32xf32> to vector<32xf32>
    %297 = vector.shape_cast %296 : vector<32xf32> to vector<32x1xf32>
    %cst_122 = arith.constant 3.200000e+01 : f32
    %298 = vector.broadcast %cst_122 : f32 to vector<32x1xf32>
    %299 = arith.divf %297, %298 : vector<32x1xf32>
    %cst_123 = arith.constant 9.99999996E-13 : f32
    %300 = vector.broadcast %cst_123 : f32 to vector<32x1xf32>
    %301 = arith.addf %299, %300 : vector<32x1xf32>
    %302 = math.rsqrt %301 : vector<32x1xf32>
    %303 = vector.broadcast %302 : vector<32x1xf32> to vector<32x32xf32>
    %304 = arith.mulf %294, %303 : vector<32x32xf32>
    %305 = vector.broadcast %287 : vector<1x32xf32> to vector<32x32xf32>
    %306 = arith.mulf %304, %305 : vector<32x32xf32>
    %307 = vector.broadcast %288 : vector<1x32xf32> to vector<32x32xf32>
    %308 = arith.addf %306, %307 : vector<32x32xf32>
    %c40 = arith.constant 40 : index
    %c0_124 = arith.constant 0 : index
    %309 = vector.load %arg7[%c40, %c0_124] : memref<80x128xf32, #tpu.memory_space<vmem>>, vector<32x128xf32>
    %c72 = arith.constant 72 : index
    %c0_125 = arith.constant 0 : index
    %310 = vector.load %arg7[%c72, %c0_125] : memref<80x128xf32, #tpu.memory_space<vmem>>, vector<1x128xf32>
    %cst_126 = arith.constant dense<0.000000e+00> : vector<32x128xf32>
    %311 = tpu.matmul %308, %309, %cst_126 {dimension_numbers = #tpu.dot_dimension_numbers<[1], [0], [0], [1], [0, 0, 1, 1], [], []>} : vector<32x32xf32>, vector<32x128xf32>, vector<32x128xf32> -> vector<32x128xf32>
    %312 = vector.broadcast %310 : vector<1x128xf32> to vector<32x128xf32>
    %313 = arith.addf %311, %312 : vector<32x128xf32>
    %314 = arith.mulf %313, %313 : vector<32x128xf32>
    %315 = arith.mulf %313, %314 : vector<32x128xf32>
    %cst_127 = arith.constant 4.471500e-02 : f32
    %316 = vector.broadcast %cst_127 : f32 to vector<32x128xf32>
    %317 = arith.mulf %316, %315 : vector<32x128xf32>
    %318 = arith.addf %313, %317 : vector<32x128xf32>
    %cst_128 = arith.constant 0.797884583 : f32
    %319 = vector.broadcast %cst_128 : f32 to vector<32x128xf32>
    %320 = arith.mulf %319, %318 : vector<32x128xf32>
    %321 = math.tanh %320 : vector<32x128xf32>
    %cst_129 = arith.constant 1.000000e+00 : f32
    %322 = vector.broadcast %cst_129 : f32 to vector<32x128xf32>
    %323 = arith.addf %322, %321 : vector<32x128xf32>
    %cst_130 = arith.constant 5.000000e-01 : f32
    %324 = vector.broadcast %cst_130 : f32 to vector<32x128xf32>
    %325 = arith.mulf %324, %323 : vector<32x128xf32>
    %326 = arith.mulf %313, %325 : vector<32x128xf32>
    %c656 = arith.constant 656 : index
    %c0_131 = arith.constant 0 : index
    %327 = vector.load %arg6[%c656, %c0_131] : memref<800x32xf32, #tpu.memory_space<vmem>>, vector<128x32xf32>
    %cst_132 = arith.constant dense<0.000000e+00> : vector<32x32xf32>
    %328 = tpu.matmul %326, %327, %cst_132 {dimension_numbers = #tpu.dot_dimension_numbers<[1], [0], [0], [1], [0, 0, 1, 1], [], []>} : vector<32x128xf32>, vector<128x32xf32>, vector<32x32xf32> -> vector<32x32xf32>
    %c793 = arith.constant 793 : index
    %c0_133 = arith.constant 0 : index
    %329 = vector.load %arg6[%c793, %c0_133] : memref<800x32xf32, #tpu.memory_space<vmem>>, vector<1x32xf32>
    %330 = vector.broadcast %329 : vector<1x32xf32> to vector<32x32xf32>
    %331 = arith.addf %328, %330 : vector<32x32xf32>
    %332 = arith.addf %308, %331 : vector<32x32xf32>
    %c794 = arith.constant 794 : index
    %c0_134 = arith.constant 0 : index
    %333 = vector.load %arg6[%c794, %c0_134] : memref<800x32xf32, #tpu.memory_space<vmem>>, vector<1x32xf32>
    %c795 = arith.constant 795 : index
    %c0_135 = arith.constant 0 : index
    %334 = vector.load %arg6[%c795, %c0_135] : memref<800x32xf32, #tpu.memory_space<vmem>>, vector<1x32xf32>
    %cst_136 = arith.constant dense<0.000000e+00> : vector<32xf32>
    %335 = vector.multi_reduction <add>, %332, %cst_136 [1] : vector<32x32xf32> to vector<32xf32>
    %336 = vector.shape_cast %335 : vector<32xf32> to vector<32x1xf32>
    %cst_137 = arith.constant 3.200000e+01 : f32
    %337 = vector.broadcast %cst_137 : f32 to vector<32x1xf32>
    %338 = arith.divf %336, %337 : vector<32x1xf32>
    %339 = vector.broadcast %338 : vector<32x1xf32> to vector<32x32xf32>
    %340 = arith.subf %332, %339 : vector<32x32xf32>
    %341 = arith.mulf %340, %340 : vector<32x32xf32>
    %cst_138 = arith.constant dense<0.000000e+00> : vector<32xf32>
    %342 = vector.multi_reduction <add>, %341, %cst_138 [1] : vector<32x32xf32> to vector<32xf32>
    %343 = vector.shape_cast %342 : vector<32xf32> to vector<32x1xf32>
    %cst_139 = arith.constant 3.200000e+01 : f32
    %344 = vector.broadcast %cst_139 : f32 to vector<32x1xf32>
    %345 = arith.divf %343, %344 : vector<32x1xf32>
    %cst_140 = arith.constant 9.99999996E-13 : f32
    %346 = vector.broadcast %cst_140 : f32 to vector<32x1xf32>
    %347 = arith.addf %345, %346 : vector<32x1xf32>
    %348 = math.rsqrt %347 : vector<32x1xf32>
    %349 = vector.broadcast %348 : vector<32x1xf32> to vector<32x32xf32>
    %350 = arith.mulf %340, %349 : vector<32x32xf32>
    %351 = vector.broadcast %333 : vector<1x32xf32> to vector<32x32xf32>
    %352 = arith.mulf %350, %351 : vector<32x32xf32>
    %353 = vector.broadcast %334 : vector<1x32xf32> to vector<32x32xf32>
    %354 = arith.addf %352, %353 : vector<32x32xf32>
    %355 = vector.shape_cast %354 : vector<32x32xf32> to vector<2x16x32xf32>
    %356 = vector.extract_strided_slice %355 {offsets = [0, 0, 0], sizes = [2, 1, 32], strides = [1, 1, 1]} : vector<2x16x32xf32> to vector<2x1x32xf32>
    %357 = vector.shape_cast %356 : vector<2x1x32xf32> to vector<2x32xf32>
    %c152 = arith.constant 152 : index
    %c0_141 = arith.constant 0 : index
    %358 = vector.load %arg5[%c152, %c0_141] : memref<216x32xf32, #tpu.memory_space<vmem>>, vector<32x32xf32>
    %cst_142 = arith.constant dense<0.000000e+00> : vector<2x32xf32>
    %359 = tpu.matmul %357, %358, %cst_142 {dimension_numbers = #tpu.dot_dimension_numbers<[1], [0], [0], [1], [0, 0, 1, 1], [], []>} : vector<2x32xf32>, vector<32x32xf32>, vector<2x32xf32> -> vector<2x32xf32>
    %c149 = arith.constant 149 : index
    %c0_143 = arith.constant 0 : index
    %360 = vector.load %arg5[%c149, %c0_143] : memref<216x32xf32, #tpu.memory_space<vmem>>, vector<1x32xf32>
    %361 = vector.broadcast %360 : vector<1x32xf32> to vector<2x32xf32>
    %362 = arith.addf %359, %361 : vector<2x32xf32>
    %363 = math.tanh %362 : vector<2x32xf32>
    %c184 = arith.constant 184 : index
    %c0_144 = arith.constant 0 : index
    %364 = vector.load %arg5[%c184, %c0_144] : memref<216x32xf32, #tpu.memory_space<vmem>>, vector<32x32xf32>
    %cst_145 = arith.constant dense<0.000000e+00> : vector<2x32xf32>
    %365 = tpu.matmul %363, %364, %cst_145 {dimension_numbers = #tpu.dot_dimension_numbers<[1], [0], [0], [1], [0, 0, 1, 1], [], []>} : vector<2x32xf32>, vector<32x32xf32>, vector<2x32xf32> -> vector<2x32xf32>
    %c150 = arith.constant 150 : index
    %c0_146 = arith.constant 0 : index
    %366 = vector.load %arg5[%c150, %c0_146] : memref<216x32xf32, #tpu.memory_space<vmem>>, vector<1x32xf32>
    %367 = vector.broadcast %366 : vector<1x32xf32> to vector<2x32xf32>
    %368 = arith.addf %365, %367 : vector<2x32xf32>
    %369 = vector.extract_strided_slice %368 {offsets = [0, 0], sizes = [2, 2], strides = [1, 1]} : vector<2x32xf32> to vector<2x2xf32>
    %c0_147 = arith.constant 0 : index
    %c0_148 = arith.constant 0 : index
    %370 = vector.load %arg8[%c0_147, %c0_148] : memref<2x2xf32, #tpu.memory_space<vmem>>, vector<2x2xf32>
    tpu.vector_store %arg8[%c0_147, %c0_148], %369 {strides = array<i32>} : memref<2x2xf32, #tpu.memory_space<vmem>>, vector<2x2xf32>,
    return
  }
}

</mosaic_0001>

<llo_original>
// kernel: vinvl_forward.1
$region0: #{vinvl_forward.1}
  #allocation0 [shape = 'u32[]', space=smem, size = 0x4, offset = 0x4, fixed_abs, tag = 'smem constant byte address 0x4 - core index']
  #allocation1 [shape = 'u32[144,128]{1,0:T(1,128)}', space=vmem, size = 0x12000, scoped, tag = 'internal scratch']
  %s0 = inlined_call_operand.vmem [shape: s32[16,1], index: 0, kind: input, shape index: {}]
  %s1 = inlined_call_operand.vmem [shape: s32[16,1], index: 1, kind: input, shape index: {}]
  %s2 = inlined_call_operand.vmem [shape: f32[2,16], index: 2, kind: input, shape index: {}]
  %s3 = inlined_call_operand.vmem [shape: bf16[2,8,2054], index: 3, kind: input, shape index: {}]
  %s4 = inlined_call_operand.vmem [shape: bf16[2054,32], index: 4, kind: input, shape index: {}]
  %s5 = inlined_call_operand.vmem [shape: f32[216,32], index: 5, kind: input, shape index: {}]
  %s6 = inlined_call_operand.vmem [shape: f32[800,32], index: 6, kind: input, shape index: {}]
  %s7 = inlined_call_operand.vmem [shape: f32[80,128], index: 7, kind: input, shape index: {}]
  %s8 = inlined_call_operand.vmem [shape: f32[2,2], index: 8, kind: output, shape index: {}]
  %s9 = sld [smem:[#allocation0]]
  $region42: #{vinvl_forward.1} parent=0
    _
  %s11 = ssub.s32 1, %s9
  %s12 = scalar_select 0, %s11, %s9
  // Predicated region
  $region2: #{vinvl_forward.1} parent=0 // pred_check
    _
  $region3: #{vinvl_forward.1} parent=0 // pred_check_branch
    %14 = sbr.rel (0) target = $region5
  $region4: #{vinvl_forward.1} parent=0 // pred_region
    _
  $region5: #{vinvl_forward.1} parent=0 // pred_fallthru
    _
  // Predicated region
  $region6: #{vinvl_forward.1} parent=0 // pred_check
    _
  $region7: #{vinvl_forward.1} parent=0 // pred_check_branch
    %16 = sbr.rel (0) target = $region9
  $region8: #{vinvl_forward.1} parent=0 // pred_region
    _
  $region9: #{vinvl_forward.1} parent=0 // pred_fallthru
    _
  // Predicated region
  $region10: #{vinvl_forward.1} parent=0 // pred_check
    _
  $region11: #{vinvl_forward.1} parent=0 // pred_check_branch
    %18 = sbr.rel (0) target = $region13
  $region12: #{vinvl_forward.1} parent=0 // pred_region
    _
  $region13: #{vinvl_forward.1} parent=0 // pred_fallthru
    _
  // Predicated region
  $region14: #{vinvl_forward.1} parent=0 // pred_check
    _
  $region15: #{vinvl_forward.1} parent=0 // pred_check_branch
    %20 = sbr.rel (0) target = $region17
  $region16: #{vinvl_forward.1} parent=0 // pred_region
    _
  $region17: #{vinvl_forward.1} parent=0 // pred_fallthru
    _
  // Predicated region
  $region18: #{vinvl_forward.1} parent=0 // pred_check
    _
  $region19: #{vinvl_forward.1} parent=0 // pred_check_branch
    %22 = sbr.rel (0) target = $region21
  $region20: #{vinvl_forward.1} parent=0 // pred_region
    _
  $region21: #{vinvl_forward.1} parent=0 // pred_fallthru
    _
  // Predicated region
  $region22: #{vinvl_forward.1} parent=0 // pred_check
    _
  $region23: #{vinvl_forward.1} parent=0 // pred_check_branch
    %24 = sbr.rel (0) target = $region25
  $region24: #{vinvl_forward.1} parent=0 // pred_region
    _
  $region25: #{vinvl_forward.1} parent=0 // pred_fallthru
    _
  // Predicated region
  $region26: #{vinvl_forward.1} parent=0 // pred_check
    _
  $region27: #{vinvl_forward.1} parent=0 // pred_check_branch
    %26 = sbr.rel (0) target = $region29
  $region28: #{vinvl_forward.1} parent=0 // pred_region
    _
  $region29: #{vinvl_forward.1} parent=0 // pred_fallthru
    _
  // Predicated region
  $region30: #{vinvl_forward.1} parent=0 // pred_check
    _
  $region31: #{vinvl_forward.1} parent=0 // pred_check_branch
    %28 = sbr.rel (0) target = $region33
  $region32: #{vinvl_forward.1} parent=0 // pred_region
    _
  $region33: #{vinvl_forward.1} parent=0 // pred_fallthru
    _
  %v30 = vld [vmem:[%s0] sm:$0xff]
  %v31 = vld [vmem:[%s0 + $0x8] sm:$0xff]
  %v32 = vld [vmem:[%s1] sm:$0xff]
  %v33 = vld [vmem:[%s1 + $0x8] sm:$0xff]
  %v34 = vlaneseq
  %v35 = vand.u32 %v34, 127
  %36 = vset.pattern.permute.xlu0 0
  %37 = vperm.xlu0 %36, %v30
  %v38 = vpop.permute.xlu0 %37
  %39 = vset.pattern.permute.xlu0 0
  %40 = vperm.xlu0 %39, %v31
  %v41 = vpop.permute.xlu0 %40
  %vm42 = vcmp.eq.s32.totalorder %v35, %v38
  %vm43 = vcmp.eq.s32.totalorder %v35, %v41
  %v44 = vsel %vm42, 1, 0
  %v45 = vsel %vm43, 1, 0
  %v46 = vcvt.s32.f32 %v44
  %v47 = vcvt.s32.f32 %v45
  %v48 = vld [vmem:[%s5] sm:$0xff]
  %v49 = vld [vmem:[%s5 + $0x8] sm:$0xff]
  %v50 = vld [vmem:[%s5 + $0x10] sm:$0xff]
  %v51 = vld [vmem:[%s5 + $0x18] sm:$0xff]
  %v52 = vld [vmem:[%s5 + $0x20] sm:$0xff]
  %v53 = vld [vmem:[%s5 + $0x28] sm:$0xff]
  %v54 = vld [vmem:[%s5 + $0x30] sm:$0xff]
  %v55 = vld [vmem:[%s5 + $0x38] sm:$0xff]
  %v56 = vld [vmem:[%s5 + $0x40] sm:$0xff]
  %v57 = vld [vmem:[%s5 + $0x48] sm:$0xff]
  %v58 = vld [vmem:[%s5 + $0x50] sm:$0xff]
  %v59 = vld [vmem:[%s5 + $0x58] sm:$0xff]
  %v60 = vld [vmem:[%s5 + $0x60] sm:$0xff]
  %v61 = vld [vmem:[%s5 + $0x68] sm:$0xff]
  %v62 = vld [vmem:[%s5 + $0x70] sm:$0xff]
  %v63 = vld [vmem:[%s5 + $0x78] sm:$0xff]
  %vm64 = vcmp.eq.s32.totalorder %v32, 0
  %vm65 = vcmp.eq.s32.totalorder %v33, 0
  %v66 = vld [vmem:[%s5 + $0x80] sm:$0x1]
  %v67 = vld [vmem:[%s5 + $0x81] sm:$0x1]
  %v68 = vsel %vm64, 1, 0
  %v69 = vsel %vm65, 1, 0
  %70 = vset.pattern.permute.xlu0 0
  %71 = vperm.xlu0 %70, %v68
  %v72 = vpop.permute.xlu0 %71
  %73 = vset.pattern.permute.xlu0 0
  %74 = vperm.xlu0 %73, %v69
  %v75 = vpop.permute.xlu0 %74
  %vm76 = vcmp.eq.s32.totalorder %v72, 1
  %vm77 = vcmp.eq.s32.totalorder %v75, 1
  %v78 = vlaneseq
  %v79 = vshrl.u32 %v78, 7
  %v80 = vsub.s32 0, %v79
  %v81 = vrot.slane %v66, %v80
  %v82 = vlaneseq
  %v83 = vshrl.u32 %v82, 7
  %v84 = vsub.s32 0, %v83
  %v85 = vrot.slane %v67, %v84
  %v86 = vsel %vm76, %v81, %v85
  %v87 = vsel %vm77, %v81, %v85
  %v88 = vld [vmem:[%s5 + $0x88] sm:$0xff]
  %89 = vmatprep.subr.mxu0 0.0
  %90 = vmatpush1.msra.mxu0 %v48
  %91 = vmatprep.subr.mxu0 0.0
  %92 = vmatpush1.msra.mxu0 %v49
  %93 = vmatprep.subr.mxu0 0.0
  %94 = vmatpush1.msra.mxu0 %v50
  %95 = vmatprep.subr.mxu0 0.0
  %96 = vmatpush1.msra.mxu0 %v51
  %97 = vmatprep.subr.mxu0 0.0
  %98 = vmatpush1.msra.mxu0 %v52
  %99 = vmatprep.subr.mxu0 0.0
  %100 = vmatpush1.msra.mxu0 %v53
  %101 = vmatprep.subr.mxu0 0.0
  %102 = vmatpush1.msra.mxu0 %v54
  %103 = vmatprep.subr.mxu0 0.0
  %104 = vmatpush1.msra.mxu0 %v55
  %105 = vmatprep.subr.mxu0 0.0
  %106 = vmatpush1.msra.mxu0 %v56
  %107 = vmatprep.subr.mxu0 0.0
  %108 = vmatpush1.msra.mxu0 %v57
  %109 = vmatprep.subr.mxu0 0.0
  %110 = vmatpush1.msra.mxu0 %v58
  %111 = vmatprep.subr.mxu0 0.0
  %112 = vmatpush1.msra.mxu0 %v59
  %113 = vmatprep.subr.mxu0 0.0
  %114 = vmatpush1.msra.mxu0 %v60
  %115 = vmatprep.subr.mxu0 0.0
  %116 = vmatpush1.msra.mxu0 %v61
  %117 = vmatprep.subr.mxu0 0.0
  %118 = vmatpush1.msra.mxu0 %v62
  %119 = vmatprep.subr.mxu0 0.0
  %120 = vmatpush1.msra.mxu0 %v63
  %121 = vmatprep.subr.mxu0 0.0
  %122 = vmatpush1.msra.mxu0 0.0
  %123 = vmatprep.subr.mxu0 0.0
  %124 = vmatpush1.msra.mxu0 0.0
  %125 = vmatprep.subr.mxu0 0.0
  %126 = vmatpush1.msra.mxu0 0.0
  %127 = vmatprep.subr.mxu0 0.0
  %128 = vmatpush1.msra.mxu0 0.0
  %129 = vmatprep.subr.mxu0 0.0
  %130 = vmatpush1.msra.mxu0 0.0
  %131 = vmatprep.subr.mxu0 0.0
  %132 = vmatpush1.msra.mxu0 0.0
  %133 = vmatprep.subr.mxu0 0.0
  %134 = vmatpush1.msra.mxu0 0.0
  %135 = vmatprep.subr.mxu0 0.0
  %136 = vmatpush1.msra.mxu0 0.0
  %137 = vmatprep.subr.mxu0 0.0
  %138 = vmatpush1.msra.mxu0 0.0
  %139 = vmatprep.subr.mxu0 0.0
  %140 = vmatpush1.msra.mxu0 0.0
  %141 = vmatprep.subr.mxu0 0.0
  %142 = vmatpush1.msra.mxu0 0.0
  %143 = vmatprep.subr.mxu0 0.0
  %144 = vmatpush1.msra.mxu0 0.0
  %145 = vmatprep.subr.mxu0 0.0
  %146 = vmatpush1.msra.mxu0 0.0
  %147 = vmatprep.subr.mxu0 0.0
  %148 = vmatpush1.msra.mxu0 0.0
  %149 = vmatprep.subr.mxu0 0.0
  %150 = vmatpush1.msra.mxu0 0.0
  %151 = vmatprep.subr.mxu0 0.0
  %152 = vmatpush1.msra.mxu0 0.0
  %153 = vmatprep.mubr.f32.mxu0 0.0
  %154 = vmatmul.mubr.f32.gmra.mrb[0].mxu0 %v46
  %v155 = vpop.f32.mrb[0].mxu0
  %v156 = vadd.f32 %v86, %v155
  %v157 = vpop.f32.mrb[0].mxu0
  %158 = vmatprep.mubr.f32.mxu0 0.0
  %159 = vmatmul.mubr.f32.gmra.mrb[0].mxu0 %v47
  %v160 = vpop.f32.mrb[0].mxu0
  %v161 = vadd.f32 %v87, %v160
  %v162 = vpop.f32.mrb[0].mxu0
  %163 = vdwg.mxu0
  %v164 = vadd.f32 %v156, %v88
  %v165 = vadd.f32 %v161, %v88
  %v166 = vld [vmem:[%s5 + $0x90] sm:$0x1]
  %v167 = vld [vmem:[%s5 + $0x91] sm:$0x1]
  %vm168 = vcmask 261120
  %v169 = vsel %vm168, %v164, 0.0
  %170 = vadd.xlane.f32.xlu0 %v169
  %v171 = vpop.xlane.xlu0 %170
  %v172 = vsel %vm168, %v165, 0.0
  %173 = vadd.xlane.f32.xlu0 %v172
  %v174 = vpop.xlane.xlu0 %173
  %v175 = vrcp.pop 32.0
  %v176 = vmul.f32 %v171, %v175
  %v177 = vmul.f32 %v174, %v175
  %v178 = vsub.f32 %v164, %v176
  %v179 = vsub.f32 %v165, %v177
  %v180 = vmul.f32 %v178, %v178
  %v181 = vmul.f32 %v179, %v179
  %v182 = vsel %vm168, %v180, 0.0
  %183 = vadd.xlane.f32.xlu0 %v182
  %v184 = vpop.xlane.xlu0 %183
  %v185 = vsel %vm168, %v181, 0.0
  %186 = vadd.xlane.f32.xlu0 %v185
  %v187 = vpop.xlane.xlu0 %186
  %v188 = vmul.f32 %v184, %v175
  %v189 = vmul.f32 %v187, %v175
  %v190 = vadd.f32 %v188, 1e-12
  %v191 = vadd.f32 %v189, 1e-12
  %v192 = vrsqrt.pop %v190
  %v193 = vrsqrt.pop %v191
  %v194 = vmul.f32 %v178, %v192
  %v195 = vmul.f32 %v179, %v193
  %v196 = vlaneseq
  %v197 = vshrl.u32 %v196, 7
  %v198 = vsub.s32 0, %v197
  %v199 = vrot.slane %v166, %v198
  %v200 = vmul.f32 %v194, %v199
  %v201 = vmul.f32 %v195, %v199
  %v202 = vlaneseq
  %v203 = vshrl.u32 %v202, 7
  %v204 = vsub.s32 0, %v203
  %v205 = vrot.slane %v167, %v204
  %v206 = vadd.f32 %v200, %v205
  %v207 = vadd.f32 %v201, %v205
  %v208 = vld [vmem:[%s3] sm:$0xff]
  %v209 = vld [vmem:[%s3 + $0x8] sm:$0xff]
  %v210 = vld [vmem:[%s3 + $0x10] sm:$0xff]
  %v211 = vld [vmem:[%s3 + $0x18] sm:$0xff]
  %v212 = vld [vmem:[%s3 + $0x20] sm:$0xff]
  %v213 = vld [vmem:[%s3 + $0x28] sm:$0xff]
  %v214 = vld [vmem:[%s3 + $0x30] sm:$0xff]
  %v215 = vld [vmem:[%s3 + $0x38] sm:$0xff]
  %v216 = vld [vmem:[%s3 + $0x40] sm:$0xf]
  %v217 = vld [vmem:[%s3 + $0x44] sm:$0xff]
  %v218 = vld [vmem:[%s3 + $0x4c] sm:$0xff]
  %v219 = vld [vmem:[%s3 + $0x54] sm:$0xff]
  %v220 = vld [vmem:[%s3 + $0x5c] sm:$0xff]
  %v221 = vld [vmem:[%s3 + $0x64] sm:$0xff]
  %v222 = vld [vmem:[%s3 + $0x6c] sm:$0xff]
  %v223 = vld [vmem:[%s3 + $0x74] sm:$0xff]
  %v224 = vld [vmem:[%s3 + $0x7c] sm:$0xff]
  %v225 = vld [vmem:[%s3 + $0x84] sm:$0xf]
  %v226 = vld [vmem:[%s4] sm:$0xf]
  %v227 = vld [vmem:[%s4 + $0x4] sm:$0xf]
  %v228 = vld [vmem:[%s4 + $0x8] sm:$0xf]
  %v229 = vld [vmem:[%s4 + $0xc] sm:$0xf]
  %v230 = vld [vmem:[%s4 + $0x10] sm:$0xf]
  %v231 = vld [vmem:[%s4 + $0x14] sm:$0xf]
  %v232 = vld [vmem:[%s4 + $0x18] sm:$0xf]
  %v233 = vld [vmem:[%s4 + $0x1c] sm:$0xf]
  %v234 = vld [vmem:[%s4 + $0x20] sm:$0xf]
  %v235 = vld [vmem:[%s4 + $0x24] sm:$0xf]
  %v236 = vld [vmem:[%s4 + $0x28] sm:$0xf]
  %v237 = vld [vmem:[%s4 + $0x2c] sm:$0xf]
  %v238 = vld [vmem:[%s4 + $0x30] sm:$0xf]
  %v239 = vld [vmem:[%s4 + $0x34] sm:$0xf]
  %v240 = vld [vmem:[%s4 + $0x38] sm:$0xf]
  %v241 = vld [vmem:[%s4 + $0x3c] sm:$0xf]
  %v242 = vld [vmem:[%s4 + $0x40] sm:$0xf]
  %v243 = vld [vmem:[%s4 + $0x44] sm:$0xf]
  %v244 = vld [vmem:[%s4 + $0x48] sm:$0xf]
  %v245 = vld [vmem:[%s4 + $0x4c] sm:$0xf]
  %v246 = vld [vmem:[%s4 + $0x50] sm:$0xf]
  %v247 = vld [vmem:[%s4 + $0x54] sm:$0xf]
  %v248 = vld [vmem:[%s4 + $0x58] sm:$0xf]
  %v249 = vld [vmem:[%s4 + $0x5c] sm:$0xf]
  %v250 = vld [vmem:[%s4 + $0x60] sm:$0xf]
  %v251 = vld [vmem:[%s4 + $0x64] sm:$0xf]
  %v252 = vld [vmem:[%s4 + $0x68] sm:$0xf]
  %v253 = vld [vmem:[%s4 + $0x6c] sm:$0xf]
  %v254 = vld [vmem:[%s4 + $0x70] sm:$0xf]
  %v255 = vld [vmem:[%s4 + $0x74] sm:$0xf]
  %v256 = vld [vmem:[%s4 + $0x78] sm:$0xf]
  %v257 = vld [vmem:[%s4 + $0x7c] sm:$0xf]
  %v258 = vld [vmem:[%s4 + $0x80] sm:$0xf]
  %v259 = vld [vmem:[%s4 + $0x84] sm:$0xf]
  %v260 = vld [vmem:[%s4 + $0x88] sm:$0xf]
  %v261 = vld [vmem:[%s4 + $0x8c] sm:$0xf]
  %v262 = vld [vmem:[%s4 + $0x90] sm:$0xf]
  %v263 = vld [vmem:[%s4 + $0x94] sm:$0xf]
  %v264 = vld [vmem:[%s4 + $0x98] sm:$0xf]
  %v265 = vld [vmem:[%s4 + $0x9c] sm:$0xf]
  %v266 = vld [vmem:[%s4 + $0xa0] sm:$0xf]
  %v267 = vld [vmem:[%s4 + $0xa4] sm:$0xf]
  %v268 = vld [vmem:[%s4 + $0xa8] sm:$0xf]
  %v269 = vld [vmem:[%s4 + $0xac] sm:$0xf]
  %v270 = vld [vmem:[%s4 + $0xb0] sm:$0xf]
  %v271 = vld [vmem:[%s4 + $0xb4] sm:$0xf]
  %v272 = vld [vmem:[%s4 + $0xb8] sm:$0xf]
  %v273 = vld [vmem:[%s4 + $0xbc] sm:$0xf]
  %v274 = vld [vmem:[%s4 + $0xc0] sm:$0xf]
  %v275 = vld [vmem:[%s4 + $0xc4] sm:$0xf]
  %v276 = vld [vmem:[%s4 + $0xc8] sm:$0xf]
  %v277 = vld [vmem:[%s4 + $0xcc] sm:$0xf]
  %v278 = vld [vmem:[%s4 + $0xd0] sm:$0xf]
  %v279 = vld [vmem:[%s4 + $0xd4] sm:$0xf]
  %v280 = vld [vmem:[%s4 + $0xd8] sm:$0xf]
  %v281 = vld [vmem:[%s4 + $0xdc] sm:$0xf]
  %v282 = vld [vmem:[%s4 + $0xe0] sm:$0xf]
  %v283 = vld [vmem:[%s4 + $0xe4] sm:$0xf]
  %v284 = vld [vmem:[%s4 + $0xe8] sm:$0xf]
  %v285 = vld [vmem:[%s4 + $0xec] sm:$0xf]
  %v286 = vld [vmem:[%s4 + $0xf0] sm:$0xf]
  %v287 = vld [vmem:[%s4 + $0xf4] sm:$0xf]
  %v288 = vld [vmem:[%s4 + $0xf8] sm:$0xf]
  %v289 = vld [vmem:[%s4 + $0xfc] sm:$0xf]
  %v290 = vld [vmem:[%s4 + $0x100] sm:$0xf]
  %v291 = vld [vmem:[%s4 + $0x104] sm:$0xf]
  %v292 = vld [vmem:[%s4 + $0x108] sm:$0xf]
  %v293 = vld [vmem:[%s4 + $0x10c] sm:$0xf]
  %v294 = vld [vmem:[%s4 + $0x110] sm:$0xf]
  %v295 = vld [vmem:[%s4 + $0x114] sm:$0xf]
  %v296 = vld [vmem:[%s4 + $0x118] sm:$0xf]
  %v297 = vld [vmem:[%s4 + $0x11c] sm:$0xf]
  %v298 = vld [vmem:[%s4 + $0x120] sm:$0xf]
  %v299 = vld [vmem:[%s4 + $0x124] sm:$0xf]
  %v300 = vld [vmem:[%s4 + $0x128] sm:$0xf]
  %v301 = vld [vmem:[%s4 + $0x12c] sm:$0xf]
  %v302 = vld [vmem:[%s4 + $0x130] sm:$0xf]
  %v303 = vld [vmem:[%s4 + $0x134] sm:$0xf]
  %v304 = vld [vmem:[%s4 + $0x138] sm:$0xf]
  %v305 = vld [vmem:[%s4 + $0x13c] sm:$0xf]
  %v306 = vld [vmem:[%s4 + $0x140] sm:$0xf]
  %v307 = vld [vmem:[%s4 + $0x144] sm:$0xf]
  %v308 = vld [vmem:[%s4 + $0x148] sm:$0xf]
  %v309 = vld [vmem:[%s4 + $0x14c] sm:$0xf]
  %v310 = vld [vmem:[%s4 + $0x150] sm:$0xf]
  %v311 = vld [vmem:[%s4 + $0x154] sm:$0xf]
  %v312 = vld [vmem:[%s4 + $0x158] sm:$0xf]
  %v313 = vld [vmem:[%s4 + $0x15c] sm:$0xf]
  %v314 = vld [vmem:[%s4 + $0x160] sm:$0xf]
  %v315 = vld [vmem:[%s4 + $0x164] sm:$0xf]
  %v316 = vld [vmem:[%s4 + $0x168] sm:$0xf]
  %v317 = vld [vmem:[%s4 + $0x16c] sm:$0xf]
  %v318 = vld [vmem:[%s4 + $0x170] sm:$0xf]
  %v319 = vld [vmem:[%s4 + $0x174] sm:$0xf]
  %v320 = vld [vmem:[%s4 + $0x178] sm:$0xf]
  %v321 = vld [vmem:[%s4 + $0x17c] sm:$0xf]
  %v322 = vld [vmem:[%s4 + $0x180] sm:$0xf]
  %v323 = vld [vmem:[%s4 + $0x184] sm:$0xf]
  %v324 = vld [vmem:[%s4 + $0x188] sm:$0xf]
  %v325 = vld [vmem:[%s4 + $0x18c] sm:$0xf]
  %v326 = vld [vmem:[%s4 + $0x190] sm:$0xf]
  %v327 = vld [vmem:[%s4 + $0x194] sm:$0xf]
  %v328 = vld [vmem:[%s4 + $0x198] sm:$0xf]
  %v329 = vld [vmem:[%s4 + $0x19c] sm:$0xf]
  %v330 = vld [vmem:[%s4 + $0x1a0] sm:$0xf]
  %v331 = vld [vmem:[%s4 + $0x1a4] sm:$0xf]
  %v332 = vld [vmem:[%s4 + $0x1a8] sm:$0xf]
  %v333 = vld [vmem:[%s4 + $0x1ac] sm:$0xf]
  %v334 = vld [vmem:[%s4 + $0x1b0] sm:$0xf]
  %v335 = vld [vmem:[%s4 + $0x1b4] sm:$0xf]
  %v336 = vld [vmem:[%s4 + $0x1b8] sm:$0xf]
  %v337 = vld [vmem:[%s4 + $0x1bc] sm:$0xf]
  %v338 = vld [vmem:[%s4 + $0x1c0] sm:$0xf]
  %v339 = vld [vmem:[%s4 + $0x1c4] sm:$0xf]
  %v340 = vld [vmem:[%s4 + $0x1c8] sm:$0xf]
  %v341 = vld [vmem:[%s4 + $0x1cc] sm:$0xf]
  %v342 = vld [vmem:[%s4 + $0x1d0] sm:$0xf]
  %v343 = vld [vmem:[%s4 + $0x1d4] sm:$0xf]
  %v344 = vld [vmem:[%s4 + $0x1d8] sm:$0xf]
  %v345 = vld [vmem:[%s4 + $0x1dc] sm:$0xf]
  %v346 = vld [vmem:[%s4 + $0x1e0] sm:$0xf]
  %v347 = vld [vmem:[%s4 + $0x1e4] sm:$0xf]
  %v348 = vld [vmem:[%s4 + $0x1e8] sm:$0xf]
  %v349 = vld [vmem:[%s4 + $0x1ec] sm:$0xf]
  %v350 = vld [vmem:[%s4 + $0x1f0] sm:$0xf]
  %v351 = vld [vmem:[%s4 + $0x1f4] sm:$0xf]
  %v352 = vld [vmem:[%s4 + $0x1f8] sm:$0xf]
  %v353 = vld [vmem:[%s4 + $0x1fc] sm:$0xf]
  %v354 = vld [vmem:[%s4 + $0x200] sm:$0xf]
  %v355 = vld [vmem:[%s4 + $0x204] sm:$0xf]
  %v356 = vld [vmem:[%s4 + $0x208] sm:$0xf]
  %v357 = vld [vmem:[%s4 + $0x20c] sm:$0xf]
  %v358 = vld [vmem:[%s4 + $0x210] sm:$0xf]
  %v359 = vld [vmem:[%s4 + $0x214] sm:$0xf]
  %v360 = vld [vmem:[%s4 + $0x218] sm:$0xf]
  %v361 = vld [vmem:[%s4 + $0x21c] sm:$0xf]
  %v362 = vld [vmem:[%s4 + $0x220] sm:$0xf]
  %v363 = vld [vmem:[%s4 + $0x224] sm:$0xf]
  %v364 = vld [vmem:[%s4 + $0x228] sm:$0xf]
  %v365 = vld [vmem:[%s4 + $0x22c] sm:$0xf]
  %v366 = vld [vmem:[%s4 + $0x230] sm:$0xf]
  %v367 = vld [vmem:[%s4 + $0x234] sm:$0xf]
  %v368 = vld [vmem:[%s4 + $0x238] sm:$0xf]
  %v369 = vld [vmem:[%s4 + $0x23c] sm:$0xf]
  %v370 = vld [vmem:[%s4 + $0x240] sm:$0xf]
  %v371 = vld [vmem:[%s4 + $0x244] sm:$0xf]
  %v372 = vld [vmem:[%s4 + $0x248] sm:$0xf]
  %v373 = vld [vmem:[%s4 + $0x24c] sm:$0xf]
  %v374 = vld [vmem:[%s4 + $0x250] sm:$0xf]
  %v375 = vld [vmem:[%s4 + $0x254] sm:$0xf]
  %v376 = vld [vmem:[%s4 + $0x258] sm:$0xf]
  %v377 = vld [vmem:[%s4 + $0x25c] sm:$0xf]
  %v378 = vld [vmem:[%s4 + $0x260] sm:$0xf]
  %v379 = vld [vmem:[%s4 + $0x264] sm:$0xf]
  %v380 = vld [vmem:[%s4 + $0x268] sm:$0xf]
  %v381 = vld [vmem:[%s4 + $0x26c] sm:$0xf]
  %v382 = vld [vmem:[%s4 + $0x270] sm:$0xf]
  %v383 = vld [vmem:[%s4 + $0x274] sm:$0xf]
  %v384 = vld [vmem:[%s4 + $0x278] sm:$0xf]
  %v385 = vld [vmem:[%s4 + $0x27c] sm:$0xf]
  %v386 = vld [vmem:[%s4 + $0x280] sm:$0xf]
  %v387 = vld [vmem:[%s4 + $0x284] sm:$0xf]
  %v388 = vld [vmem:[%s4 + $0x288] sm:$0xf]
  %v389 = vld [vmem:[%s4 + $0x28c] sm:$0xf]
  %v390 = vld [vmem:[%s4 + $0x290] sm:$0xf]
  %v391 = vld [vmem:[%s4 + $0x294] sm:$0xf]
  %v392 = vld [vmem:[%s4 + $0x298] sm:$0xf]
  %v393 = vld [vmem:[%s4 + $0x29c] sm:$0xf]
  %v394 = vld [vmem:[%s4 + $0x2a0] sm:$0xf]
  %v395 = vld [vmem:[%s4 + $0x2a4] sm:$0xf]
  %v396 = vld [vmem:[%s4 + $0x2a8] sm:$0xf]
  %v397 = vld [vmem:[%s4 + $0x2ac] sm:$0xf]
  %v398 = vld [vmem:[%s4 + $0x2b0] sm:$0xf]
  %v399 = vld [vmem:[%s4 + $0x2b4] sm:$0xf]
  %v400 = vld [vmem:[%s4 + $0x2b8] sm:$0xf]
  %v401 = vld [vmem:[%s4 + $0x2bc] sm:$0xf]
  %v402 = vld [vmem:[%s4 + $0x2c0] sm:$0xf]
  %v403 = vld [vmem:[%s4 + $0x2c4] sm:$0xf]
  %v404 = vld [vmem:[%s4 + $0x2c8] sm:$0xf]
  %v405 = vld [vmem:[%s4 + $0x2cc] sm:$0xf]
  %v406 = vld [vmem:[%s4 + $0x2d0] sm:$0xf]
  %v407 = vld [vmem:[%s4 + $0x2d4] sm:$0xf]
  %v408 = vld [vmem:[%s4 + $0x2d8] sm:$0xf]
  %v409 = vld [vmem:[%s4 + $0x2dc] sm:$0xf]
  %v410 = vld [vmem:[%s4 + $0x2e0] sm:$0xf]
  %v411 = vld [vmem:[%s4 + $0x2e4] sm:$0xf]
  %v412 = vld [vmem:[%s4 + $0x2e8] sm:$0xf]
  %v413 = vld [vmem:[%s4 + $0x2ec] sm:$0xf]
  %v414 = vld [vmem:[%s4 + $0x2f0] sm:$0xf]
  %v415 = vld [vmem:[%s4 + $0x2f4] sm:$0xf]
  %v416 = vld [vmem:[%s4 + $0x2f8] sm:$0xf]
  %v417 = vld [vmem:[%s4 + $0x2fc] sm:$0xf]
  %v418 = vld [vmem:[%s4 + $0x300] sm:$0xf]
  %v419 = vld [vmem:[%s4 + $0x304] sm:$0xf]
  %v420 = vld [vmem:[%s4 + $0x308] sm:$0xf]
  %v421 = vld [vmem:[%s4 + $0x30c] sm:$0xf]
  %v422 = vld [vmem:[%s4 + $0x310] sm:$0xf]
  %v423 = vld [vmem:[%s4 + $0x314] sm:$0xf]
  %v424 = vld [vmem:[%s4 + $0x318] sm:$0xf]
  %v425 = vld [vmem:[%s4 + $0x31c] sm:$0xf]
  %v426 = vld [vmem:[%s4 + $0x320] sm:$0xf]
  %v427 = vld [vmem:[%s4 + $0x324] sm:$0xf]
  %v428 = vld [vmem:[%s4 + $0x328] sm:$0xf]
  %v429 = vld [vmem:[%s4 + $0x32c] sm:$0xf]
  %v430 = vld [vmem:[%s4 + $0x330] sm:$0xf]
  %v431 = vld [vmem:[%s4 + $0x334] sm:$0xf]
  %v432 = vld [vmem:[%s4 + $0x338] sm:$0xf]
  %v433 = vld [vmem:[%s4 + $0x33c] sm:$0xf]
  %v434 = vld [vmem:[%s4 + $0x340] sm:$0xf]
  %v435 = vld [vmem:[%s4 + $0x344] sm:$0xf]
  %v436 = vld [vmem:[%s4 + $0x348] sm:$0xf]
  %v437 = vld [vmem:[%s4 + $0x34c] sm:$0xf]
  %v438 = vld [vmem:[%s4 + $0x350] sm:$0xf]
  %v439 = vld [vmem:[%s4 + $0x354] sm:$0xf]
  %v440 = vld [vmem:[%s4 + $0x358] sm:$0xf]
  %v441 = vld [vmem:[%s4 + $0x35c] sm:$0xf]
  %v442 = vld [vmem:[%s4 + $0x360] sm:$0xf]
  %v443 = vld [vmem:[%s4 + $0x364] sm:$0xf]
  %v444 = vld [vmem:[%s4 + $0x368] sm:$0xf]
  %v445 = vld [vmem:[%s4 + $0x36c] sm:$0xf]
  %v446 = vld [vmem:[%s4 + $0x370] sm:$0xf]
  %v447 = vld [vmem:[%s4 + $0x374] sm:$0xf]
  %v448 = vld [vmem:[%s4 + $0x378] sm:$0xf]
  %v449 = vld [vmem:[%s4 + $0x37c] sm:$0xf]
  %v450 = vld [vmem:[%s4 + $0x380] sm:$0xf]
  %v451 = vld [vmem:[%s4 + $0x384] sm:$0xf]
  %v452 = vld [vmem:[%s4 + $0x388] sm:$0xf]
  %v453 = vld [vmem:[%s4 + $0x38c] sm:$0xf]
  %v454 = vld [vmem:[%s4 + $0x390] sm:$0xf]
  %v455 = vld [vmem:[%s4 + $0x394] sm:$0xf]
  %v456 = vld [vmem:[%s4 + $0x398] sm:$0xf]
  %v457 = vld [vmem:[%s4 + $0x39c] sm:$0xf]
  %v458 = vld [vmem:[%s4 + $0x3a0] sm:$0xf]
  %v459 = vld [vmem:[%s4 + $0x3a4] sm:$0xf]
  %v460 = vld [vmem:[%s4 + $0x3a8] sm:$0xf]
  %v461 = vld [vmem:[%s4 + $0x3ac] sm:$0xf]
  %v462 = vld [vmem:[%s4 + $0x3b0] sm:$0xf]
  %v463 = vld [vmem:[%s4 + $0x3b4] sm:$0xf]
  %v464 = vld [vmem:[%s4 + $0x3b8] sm:$0xf]
  %v465 = vld [vmem:[%s4 + $0x3bc] sm:$0xf]
  %v466 = vld [vmem:[%s4 + $0x3c0] sm:$0xf]
  %v467 = vld [vmem:[%s4 + $0x3c4] sm:$0xf]
  %v468 = vld [vmem:[%s4 + $0x3c8] sm:$0xf]
  %v469 = vld [vmem:[%s4 + $0x3cc] sm:$0xf]
  %v470 = vld [vmem:[%s4 + $0x3d0] sm:$0xf]
  %v471 = vld [vmem:[%s4 + $0x3d4] sm:$0xf]
  %v472 = vld [vmem:[%s4 + $0x3d8] sm:$0xf]
  %v473 = vld [vmem:[%s4 + $0x3dc] sm:$0xf]
  %v474 = vld [vmem:[%s4 + $0x3e0] sm:$0xf]
  %v475 = vld [vmem:[%s4 + $0x3e4] sm:$0xf]
  %v476 = vld [vmem:[%s4 + $0x3e8] sm:$0xf]
  %v477 = vld [vmem:[%s4 + $0x3ec] sm:$0xf]
  %v478 = vld [vmem:[%s4 + $0x3f0] sm:$0xf]
  %v479 = vld [vmem:[%s4 + $0x3f4] sm:$0xf]
  %v480 = vld [vmem:[%s4 + $0x3f8] sm:$0xf]
  %v481 = vld [vmem:[%s4 + $0x3fc] sm:$0xf]
  %v482 = vld [vmem:[%s4 + $0x400] sm:$0x7]
  %v483 = vld [vmem:[%s5 + $0x92] sm:$0x1]
  %v484 = vlaneseq
  %v485 = vshrl.u32 %v484, 7
  %v486 = vsub.s32 0, %v485
  %v487 = vrot.slane %v483, %v486
  %v506 = vunpack.c.l.b16 %v208
  %v507 = vunpack.c.h.b16 %v208
  %v508 = vunpack.c.l.b16 %v209
  %v509 = vunpack.c.h.b16 %v209
  %v510 = vunpack.c.l.b16 %v210
  %v511 = vunpack.c.h.b16 %v210
  %v512 = vunpack.c.l.b16 %v211
  %v513 = vunpack.c.h.b16 %v211
  %v514 = vunpack.c.l.b16 %v212
  %v515 = vunpack.c.h.b16 %v212
  %v516 = vunpack.c.l.b16 %v213
  %v517 = vunpack.c.h.b16 %v213
  %v518 = vunpack.c.l.b16 %v214
  %v519 = vunpack.c.h.b16 %v214
  %v520 = vunpack.c.l.b16 %v215
  %v521 = vunpack.c.h.b16 %v215
  %v522 = vunpack.c.l.b16 %v216
  %v523 = vunpack.c.l.b16 %v217
  %v524 = vunpack.c.h.b16 %v217
  %v525 = vunpack.c.l.b16 %v218
  %v526 = vunpack.c.h.b16 %v218
  %v527 = vunpack.c.l.b16 %v219
  %v528 = vunpack.c.h.b16 %v219
  %v529 = vunpack.c.l.b16 %v220
  %v530 = vunpack.c.h.b16 %v220
  %v531 = vunpack.c.l.b16 %v221
  %v532 = vunpack.c.h.b16 %v221
  %v533 = vunpack.c.l.b16 %v222
  %v534 = vunpack.c.h.b16 %v222
  %v535 = vunpack.c.l.b16 %v223
  %v536 = vunpack.c.h.b16 %v223
  %v537 = vunpack.c.l.b16 %v224
  %v538 = vunpack.c.h.b16 %v224
  %v539 = vunpack.c.l.b16 %v225
  %v540 = vpack.c.b16 %v523, %v506
  %v541 = vpack.c.b16 %v524, %v507
  %v542 = vpack.c.b16 %v525, %v508
  %v543 = vpack.c.b16 %v526, %v509
  %v544 = vpack.c.b16 %v527, %v510
  %v545 = vpack.c.b16 %v528, %v511
  %v546 = vpack.c.b16 %v529, %v512
  %v547 = vpack.c.b16 %v530, %v513
  %v548 = vpack.c.b16 %v531, %v514
  %v549 = vpack.c.b16 %v532, %v515
  %v550 = vpack.c.b16 %v533, %v516
  %v551 = vpack.c.b16 %v534, %v517
  %v552 = vpack.c.b16 %v535, %v518
  %v553 = vpack.c.b16 %v536, %v519
  %v554 = vpack.c.b16 %v537, %v520
  %v555 = vpack.c.b16 %v538, %v521
  %v556 = vpack.c.b16 %v539, %v522
  %v830 = vunpack.c.l.b16 %v226
  %v831 = vunpack.c.l.b16 %v227
  %v832 = vunpack.c.l.b16 %v228
  %v833 = vunpack.c.l.b16 %v229
  %v834 = vunpack.c.l.b16 %v230
  %v835 = vunpack.c.l.b16 %v231
  %v836 = vunpack.c.l.b16 %v232
  %v837 = vunpack.c.l.b16 %v233
  %v838 = vunpack.c.l.b16 %v234
  %v839 = vunpack.c.l.b16 %v235
  %v840 = vunpack.c.l.b16 %v236
  %v841 = vunpack.c.l.b16 %v237
  %v842 = vunpack.c.l.b16 %v238
  %v843 = vunpack.c.l.b16 %v239
  %v844 = vunpack.c.l.b16 %v240
  %v845 = vunpack.c.l.b16 %v241
  %v846 = vunpack.c.l.b16 %v242
  %v847 = vunpack.c.l.b16 %v243
  %v848 = vunpack.c.l.b16 %v244
  %v849 = vunpack.c.l.b16 %v245
  %v850 = vunpack.c.l.b16 %v246
  %v851 = vunpack.c.l.b16 %v247
  %v852 = vunpack.c.l.b16 %v248
  %v853 = vunpack.c.l.b16 %v249
  %v854 = vunpack.c.l.b16 %v250
  %v855 = vunpack.c.l.b16 %v251
  %v856 = vunpack.c.l.b16 %v252
  %v857 = vunpack.c.l.b16 %v253
  %v858 = vunpack.c.l.b16 %v254
  %v859 = vunpack.c.l.b16 %v255
  %v860 = vunpack.c.l.b16 %v256
  %v861 = vunpack.c.l.b16 %v257
  %v862 = vunpack.c.l.b16 %v258
  %v863 = vunpack.c.l.b16 %v259
  %v864 = vunpack.c.l.b16 %v260
  %v865 = vunpack.c.l.b16 %v261
  %v866 = vunpack.c.l.b16 %v262
  %v867 = vunpack.c.l.b16 %v263
  %v868 = vunpack.c.l.b16 %v264
  %v869 = vunpack.c.l.b16 %v265
  %v870 = vunpack.c.l.b16 %v266
  %v871 = vunpack.c.l.b16 %v267
  %v872 = vunpack.c.l.b16 %v268
  %v873 = vunpack.c.l.b16 %v269
  %v874 = vunpack.c.l.b16 %v270
  %v875 = vunpack.c.l.b16 %v271
  %v876 = vunpack.c.l.b16 %v272
  %v877 = vunpack.c.l.b16 %v273
  %v878 = vunpack.c.l.b16 %v274
  %v879 = vunpack.c.l.b16 %v275
  %v880 = vunpack.c.l.b16 %v276
  %v881 = vunpack.c.l.b16 %v277
  %v882 = vunpack.c.l.b16 %v278
  %v883 = vunpack.c.l.b16 %v279
  %v884 = vunpack.c.l.b16 %v280
  %v885 = vunpack.c.l.b16 %v281
  %v886 = vunpack.c.l.b16 %v282
  %v887 = vunpack.c.l.b16 %v283
  %v888 = vunpack.c.l.b16 %v284
  %v889 = vunpack.c.l.b16 %v285
  %v890 = vunpack.c.l.b16 %v286
  %v891 = vunpack.c.l.b16 %v287
  %v892 = vunpack.c.l.b16 %v288
  %v893 = vunpack.c.l.b16 %v289
  %v894 = vunpack.c.l.b16 %v290
  %v895 = vunpack.c.l.b16 %v291
  %v896 = vunpack.c.l.b16 %v292
  %v897 = vunpack.c.l.b16 %v293
  %v898 = vunpack.c.l.b16 %v294
  %v899 = vunpack.c.l.b16 %v295
  %v900 = vunpack.c.l.b16 %v296
  %v901 = vunpack.c.l.b16 %v297
  %v902 = vunpack.c.l.b16 %v298
  %v903 = vunpack.c.l.b16 %v299
  %v904 = vunpack.c.l.b16 %v300
  %v905 = vunpack.c.l.b16 %v301
  %v906 = vunpack.c.l.b16 %v302
  %v907 = vunpack.c.l.b16 %v303
  %v908 = vunpack.c.l.b16 %v304
  %v909 = vunpack.c.l.b16 %v305
  %v910 = vunpack.c.l.b16 %v306
  %v911 = vunpack.c.l.b16 %v307
  %v912 = vunpack.c.l.b16 %v308
  %v913 = vunpack.c.l.b16 %v309
  %v914 = vunpack.c.l.b16 %v310
  %v915 = vunpack.c.l.b16 %v311
  %v916 = vunpack.c.l.b16 %v312
  %v917 = vunpack.c.l.b16 %v313
  %v918 = vunpack.c.l.b16 %v314
  %v919 = vunpack.c.l.b16 %v315
  %v920 = vunpack.c.l.b16 %v316
  %v921 = vunpack.c.l.b16 %v317
  %v922 = vunpack.c.l.b16 %v318
  %v923 = vunpack.c.l.b16 %v319
  %v924 = vunpack.c.l.b16 %v320
  %v925 = vunpack.c.l.b16 %v321
  %v926 = vunpack.c.l.b16 %v322
  %v927 = vunpack.c.l.b16 %v323
  %v928 = vunpack.c.l.b16 %v324
  %v929 = vunpack.c.l.b16 %v325
  %v930 = vunpack.c.l.b16 %v326
  %v931 = vunpack.c.l.b16 %v327
  %v932 = vunpack.c.l.b16 %v328
  %v933 = vunpack.c.l.b16 %v329
  %v934 = vunpack.c.l.b16 %v330
  %v935 = vunpack.c.l.b16 %v331
  %v936 = vunpack.c.l.b16 %v332
  %v937 = vunpack.c.l.b16 %v333
  %v938 = vunpack.c.l.b16 %v334
  %v939 = vunpack.c.l.b16 %v335
  %v940 = vunpack.c.l.b16 %v336
  %v941 = vunpack.c.l.b16 %v337
  %v942 = vunpack.c.l.b16 %v338
  %v943 = vunpack.c.l.b16 %v339
  %v944 = vunpack.c.l.b16 %v340
  %v945 = vunpack.c.l.b16 %v341
  %v946 = vunpack.c.l.b16 %v342
  %v947 = vunpack.c.l.b16 %v343
  %v948 = vunpack.c.l.b16 %v344
  %v949 = vunpack.c.l.b16 %v345
  %v950 = vunpack.c.l.b16 %v346
  %v951 = vunpack.c.l.b16 %v347
  %v952 = vunpack.c.l.b16 %v348
  %v953 = vunpack.c.l.b16 %v349
  %v954 = vunpack.c.l.b16 %v350
  %v955 = vunpack.c.l.b16 %v351
  %v956 = vunpack.c.l.b16 %v352
  %v957 = vunpack.c.l.b16 %v353
  %v958 = vunpack.c.l.b16 %v354
  %v959 = vunpack.c.l.b16 %v355
  %v960 = vunpack.c.l.b16 %v356
  %v961 = vunpack.c.l.b16 %v357
  %v962 = vunpack.c.l.b16 %v358
  %v963 = vunpack.c.l.b16 %v359
  %v964 = vunpack.c.l.b16 %v360
  %v965 = vunpack.c.l.b16 %v361
  %v966 = vunpack.c.l.b16 %v362
  %v967 = vunpack.c.l.b16 %v363
  %v968 = vunpack.c.l.b16 %v364
  %v969 = vunpack.c.l.b16 %v365
  %v970 = vunpack.c.l.b16 %v366
  %v971 = vunpack.c.l.b16 %v367
  %v972 = vunpack.c.l.b16 %v368
  %v973 = vunpack.c.l.b16 %v369
  %v974 = vunpack.c.l.b16 %v370
  %v975 = vunpack.c.l.b16 %v371
  %v976 = vunpack.c.l.b16 %v372
  %v977 = vunpack.c.l.b16 %v373
  %v978 = vunpack.c.l.b16 %v374
  %v979 = vunpack.c.l.b16 %v375
  %v980 = vunpack.c.l.b16 %v376
  %v981 = vunpack.c.l.b16 %v377
  %v982 = vunpack.c.l.b16 %v378
  %v983 = vunpack.c.l.b16 %v379
  %v984 = vunpack.c.l.b16 %v380
  %v985 = vunpack.c.l.b16 %v381
  %v986 = vunpack.c.l.b16 %v382
  %v987 = vunpack.c.l.b16 %v383
  %v988 = vunpack.c.l.b16 %v384
  %v989 = vunpack.c.l.b16 %v385
  %v990 = vunpack.c.l.b16 %v386
  %v991 = vunpack.c.l.b16 %v387
  %v992 = vunpack.c.l.b16 %v388
  %v993 = vunpack.c.l.b16 %v389
  %v994 = vunpack.c.l.b16 %v390
  %v995 = vunpack.c.l.b16 %v391
  %v996 = vunpack.c.l.b16 %v392
  %v997 = vunpack.c.l.b16 %v393
  %v998 = vunpack.c.l.b16 %v394
  %v999 = vunpack.c.l.b16 %v395
  %v1000 = vunpack.c.l.b16 %v396
  %v1001 = vunpack.c.l.b16 %v397
  %v1002 = vunpack.c.l.b16 %v398
  %v1003 = vunpack.c.l.b16 %v399
  %v1004 = vunpack.c.l.b16 %v400
  %v1005 = vunpack.c.l.b16 %v401
  %v1006 = vunpack.c.l.b16 %v402
  %v1007 = vunpack.c.l.b16 %v403
  %v1008 = vunpack.c.l.b16 %v404
  %v1009 = vunpack.c.l.b16 %v405
  %v1010 = vunpack.c.l.b16 %v406
  %v1011 = vunpack.c.l.b16 %v407
  %v1012 = vunpack.c.l.b16 %v408
  %v1013 = vunpack.c.l.b16 %v409
  %v1014 = vunpack.c.l.b16 %v410
  %v1015 = vunpack.c.l.b16 %v411
  %v1016 = vunpack.c.l.b16 %v412
  %v1017 = vunpack.c.l.b16 %v413
  %v1018 = vunpack.c.l.b16 %v414
  %v1019 = vunpack.c.l.b16 %v415
  %v1020 = vunpack.c.l.b16 %v416
  %v1021 = vunpack.c.l.b16 %v417
  %v1022 = vunpack.c.l.b16 %v418
  %v1023 = vunpack.c.l.b16 %v419
  %v1024 = vunpack.c.l.b16 %v420
  %v1025 = vunpack.c.l.b16 %v421
  %v1026 = vunpack.c.l.b16 %v422
  %v1027 = vunpack.c.l.b16 %v423
  %v1028 = vunpack.c.l.b16 %v424
  %v1029 = vunpack.c.l.b16 %v425
  %v1030 = vunpack.c.l.b16 %v426
  %v1031 = vunpack.c.l.b16 %v427
  %v1032 = vunpack.c.l.b16 %v428
  %v1033 = vunpack.c.l.b16 %v429
  %v1034 = vunpack.c.l.b16 %v430
  %v1035 = vunpack.c.l.b16 %v431
  %v1036 = vunpack.c.l.b16 %v432
  %v1037 = vunpack.c.l.b16 %v433
  %v1038 = vunpack.c.l.b16 %v434
  %v1039 = vunpack.c.l.b16 %v435
  %v1040 = vunpack.c.l.b16 %v436
  %v1041 = vunpack.c.l.b16 %v437
  %v1042 = vunpack.c.l.b16 %v438
  %v1043 = vunpack.c.l.b16 %v439
  %v1044 = vunpack.c.l.b16 %v440
  %v1045 = vunpack.c.l.b16 %v441
  %v1046 = vunpack.c.l.b16 %v442
  %v1047 = vunpack.c.l.b16 %v443
  %v1048 = vunpack.c.l.b16 %v444
  %v1049 = vunpack.c.l.b16 %v445
  %v1050 = vunpack.c.l.b16 %v446
  %v1051 = vunpack.c.l.b16 %v447
  %v1052 = vunpack.c.l.b16 %v448
  %v1053 = vunpack.c.l.b16 %v449
  %v1054 = vunpack.c.l.b16 %v450
  %v1055 = vunpack.c.l.b16 %v451
  %v1056 = vunpack.c.l.b16 %v452
  %v1057 = vunpack.c.l.b16 %v453
  %v1058 = vunpack.c.l.b16 %v454
  %v1059 = vunpack.c.l.b16 %v455
  %v1060 = vunpack.c.l.b16 %v456
  %v1061 = vunpack.c.l.b16 %v457
  %v1062 = vunpack.c.l.b16 %v458
  %v1063 = vunpack.c.l.b16 %v459
  %v1064 = vunpack.c.l.b16 %v460
  %v1065 = vunpack.c.l.b16 %v461
  %v1066 = vunpack.c.l.b16 %v462
  %v1067 = vunpack.c.l.b16 %v463
  %v1068 = vunpack.c.l.b16 %v464
  %v1069 = vunpack.c.l.b16 %v465
  %v1070 = vunpack.c.l.b16 %v466
  %v1071 = vunpack.c.l.b16 %v467
  %v1072 = vunpack.c.l.b16 %v468
  %v1073 = vunpack.c.l.b16 %v469
  %v1074 = vunpack.c.l.b16 %v470
  %v1075 = vunpack.c.l.b16 %v471
  %v1076 = vunpack.c.l.b16 %v472
  %v1077 = vunpack.c.l.b16 %v473
  %v1078 = vunpack.c.l.b16 %v474
  %v1079 = vunpack.c.l.b16 %v475
  %v1080 = vunpack.c.l.b16 %v476
  %v1081 = vunpack.c.l.b16 %v477
  %v1082 = vunpack.c.l.b16 %v478
  %v1083 = vunpack.c.l.b16 %v479
  %v1084 = vunpack.c.l.b16 %v480
  %v1085 = vunpack.c.l.b16 %v481
  %v1086 = vunpack.c.l.b16 %v482
  %v1087 = vpack.c.b16 %v831, %v830
  %v1088 = vpack.c.b16 %v833, %v832
  %v1089 = vpack.c.b16 %v835, %v834
  %v1090 = vpack.c.b16 %v837, %v836
  %v1091 = vpack.c.b16 %v839, %v838
  %v1092 = vpack.c.b16 %v841, %v840
  %v1093 = vpack.c.b16 %v843, %v842
  %v1094 = vpack.c.b16 %v845, %v844
  %v1095 = vpack.c.b16 %v847, %v846
  %v1096 = vpack.c.b16 %v849, %v848
  %v1097 = vpack.c.b16 %v851, %v850
  %v1098 = vpack.c.b16 %v853, %v852
  %v1099 = vpack.c.b16 %v855, %v854
  %v1100 = vpack.c.b16 %v857, %v856
  %v1101 = vpack.c.b16 %v859, %v858
  %v1102 = vpack.c.b16 %v861, %v860
  %v1103 = vpack.c.b16 %v863, %v862
  %v1104 = vpack.c.b16 %v865, %v864
  %v1105 = vpack.c.b16 %v867, %v866
  %v1106 = vpack.c.b16 %v869, %v868
  %v1107 = vpack.c.b16 %v871, %v870
  %v1108 = vpack.c.b16 %v873, %v872
  %v1109 = vpack.c.b16 %v875, %v874
  %v1110 = vpack.c.b16 %v877, %v876
  %v1111 = vpack.c.b16 %v879, %v878
  %v1112 = vpack.c.b16 %v881, %v880
  %v1113 = vpack.c.b16 %v883, %v882
  %v1114 = vpack.c.b16 %v885, %v884
  %v1115 = vpack.c.b16 %v887, %v886
  %v1116 = vpack.c.b16 %v889, %v888
  %v1117 = vpack.c.b16 %v891, %v890
  %v1118 = vpack.c.b16 %v893, %v892
  %v1119 = vpack.c.b16 %v895, %v894
  %v1120 = vpack.c.b16 %v897, %v896
  %v1121 = vpack.c.b16 %v899, %v898
  %v1122 = vpack.c.b16 %v901, %v900
  %v1123 = vpack.c.b16 %v903, %v902
  %v1124 = vpack.c.b16 %v905, %v904
  %v1125 = vpack.c.b16 %v907, %v906
  %v1126 = vpack.c.b16 %v909, %v908
  %v1127 = vpack.c.b16 %v911, %v910
  %v1128 = vpack.c.b16 %v913, %v912
  %v1129 = vpack.c.b16 %v915, %v914
  %v1130 = vpack.c.b16 %v917, %v916
  %v1131 = vpack.c.b16 %v919, %v918
  %v1132 = vpack.c.b16 %v921, %v920
  %v1133 = vpack.c.b16 %v923, %v922
  %v1134 = vpack.c.b16 %v925, %v924
  %v1135 = vpack.c.b16 %v927, %v926
  %v1136 = vpack.c.b16 %v929, %v928
  %v1137 = vpack.c.b16 %v931, %v930
  %v1138 = vpack.c.b16 %v933, %v932
  %v1139 = vpack.c.b16 %v935, %v934
  %v1140 = vpack.c.b16 %v937, %v936
  %v1141 = vpack.c.b16 %v939, %v938
  %v1142 = vpack.c.b16 %v941, %v940
  %v1143 = vpack.c.b16 %v943, %v942
  %v1144 = vpack.c.b16 %v945, %v944
  %v1145 = vpack.c.b16 %v947, %v946
  %v1146 = vpack.c.b16 %v949, %v948
  %v1147 = vpack.c.b16 %v951, %v950
  %v1148 = vpack.c.b16 %v953, %v952
  %v1149 = vpack.c.b16 %v955, %v954
  %v1150 = vpack.c.b16 %v957, %v956
  %v1151 = vpack.c.b16 %v959, %v958
  %v1152 = vpack.c.b16 %v961, %v960
  %v1153 = vpack.c.b16 %v963, %v962
  %v1154 = vpack.c.b16 %v965, %v964
  %v1155 = vpack.c.b16 %v967, %v966
  %v1156 = vpack.c.b16 %v969, %v968
  %v1157 = vpack.c.b16 %v971, %v970
  %v1158 = vpack.c.b16 %v973, %v972
  %v1159 = vpack.c.b16 %v975, %v974
  %v1160 = vpack.c.b16 %v977, %v976
  %v1161 = vpack.c.b16 %v979, %v978
  %v1162 = vpack.c.b16 %v981, %v980
  %v1163 = vpack.c.b16 %v983, %v982
  %v1164 = vpack.c.b16 %v985, %v984
  %v1165 = vpack.c.b16 %v987, %v986
  %v1166 = vpack.c.b16 %v989, %v988
  %v1167 = vpack.c.b16 %v991, %v990
  %v1168 = vpack.c.b16 %v993, %v992
  %v1169 = vpack.c.b16 %v995, %v994
  %v1170 = vpack.c.b16 %v997, %v996
  %v1171 = vpack.c.b16 %v999, %v998
  %v1172 = vpack.c.b16 %v1001, %v1000
  %v1173 = vpack.c.b16 %v1003, %v1002
  %v1174 = vpack.c.b16 %v1005, %v1004
  %v1175 = vpack.c.b16 %v1007, %v1006
  %v1176 = vpack.c.b16 %v1009, %v1008
  %v1177 = vpack.c.b16 %v1011, %v1010
  %v1178 = vpack.c.b16 %v1013, %v1012
  %v1179 = vpack.c.b16 %v1015, %v1014
  %v1180 = vpack.c.b16 %v1017, %v1016
  %v1181 = vpack.c.b16 %v1019, %v1018
  %v1182 = vpack.c.b16 %v1021, %v1020
  %v1183 = vpack.c.b16 %v1023, %v1022
  %v1184 = vpack.c.b16 %v1025, %v1024
  %v1185 = vpack.c.b16 %v1027, %v1026
  %v1186 = vpack.c.b16 %v1029, %v1028
  %v1187 = vpack.c.b16 %v1031, %v1030
  %v1188 = vpack.c.b16 %v1033, %v1032
  %v1189 = vpack.c.b16 %v1035, %v1034
  %v1190 = vpack.c.b16 %v1037, %v1036
  %v1191 = vpack.c.b16 %v1039, %v1038
  %v1192 = vpack.c.b16 %v1041, %v1040
  %v1193 = vpack.c.b16 %v1043, %v1042
  %v1194 = vpack.c.b16 %v1045, %v1044
  %v1195 = vpack.c.b16 %v1047, %v1046
  %v1196 = vpack.c.b16 %v1049, %v1048
  %v1197 = vpack.c.b16 %v1051, %v1050
  %v1198 = vpack.c.b16 %v1053, %v1052
  %v1199 = vpack.c.b16 %v1055, %v1054
  %v1200 = vpack.c.b16 %v1057, %v1056
  %v1201 = vpack.c.b16 %v1059, %v1058
  %v1202 = vpack.c.b16 %v1061, %v1060
  %v1203 = vpack.c.b16 %v1063, %v1062
  %v1204 = vpack.c.b16 %v1065, %v1064
  %v1205 = vpack.c.b16 %v1067, %v1066
  %v1206 = vpack.c.b16 %v1069, %v1068
  %v1207 = vpack.c.b16 %v1071, %v1070
  %v1208 = vpack.c.b16 %v1073, %v1072
  %v1209 = vpack.c.b16 %v1075, %v1074
  %v1210 = vpack.c.b16 %v1077, %v1076
  %v1211 = vpack.c.b16 %v1079, %v1078
  %v1212 = vpack.c.b16 %v1081, %v1080
  %v1213 = vpack.c.b16 %v1083, %v1082
  %v1214 = vpack.c.b16 %v1085, %v1084
  %v1215 = vpack.c.b16 %v1086, %v1086
  %vm1344 = vcmask 48128
  %v1346 = vsel %vm1344, %v556, 0
  %vm1348 = vcmask 1042432
  %v1350 = vsel %vm1348, %v1215, 0
  %1352 = vmatprep.subr.bf16.mxu0 0
  %1353 = vmatpush1.bf16.msra.mxu0 %v1087
  %1354 = vmatprep.subr.bf16.mxu0 0
  %1355 = vmatpush1.bf16.msra.mxu0 %v1088
  %1356 = vmatprep.subr.bf16.mxu0 0
  %1357 = vmatpush1.bf16.msra.mxu0 %v1089
  %1358 = vmatprep.subr.bf16.mxu0 0
  %1359 = vmatpush1.bf16.msra.mxu0 %v1090
  %1360 = vmatprep.subr.bf16.mxu0 0
  %1361 = vmatpush1.bf16.msra.mxu0 %v1091
  %1362 = vmatprep.subr.bf16.mxu0 0
  %1363 = vmatpush1.bf16.msra.mxu0 %v1092
  %1364 = vmatprep.subr.bf16.mxu0 0
  %1365 = vmatpush1.bf16.msra.mxu0 %v1093
  %1366 = vmatprep.subr.bf16.mxu0 0
  %1367 = vmatpush1.bf16.msra.mxu0 %v1094
  %1368 = vmatprep.subr.bf16.mxu0 0
  %1369 = vmatpush1.bf16.msra.mxu0 %v1095
  %1370 = vmatprep.subr.bf16.mxu0 0
  %1371 = vmatpush1.bf16.msra.mxu0 %v1096
  %1372 = vmatprep.subr.bf16.mxu0 0
  %1373 = vmatpush1.bf16.msra.mxu0 %v1097
  %1374 = vmatprep.subr.bf16.mxu0 0
  %1375 = vmatpush1.bf16.msra.mxu0 %v1098
  %1376 = vmatprep.subr.bf16.mxu0 0
  %1377 = vmatpush1.bf16.msra.mxu0 %v1099
  %1378 = vmatprep.subr.bf16.mxu0 0
  %1379 = vmatpush1.bf16.msra.mxu0 %v1100
  %1380 = vmatprep.subr.bf16.mxu0 0
  %1381 = vmatpush1.bf16.msra.mxu0 %v1101
  %1382 = vmatprep.subr.bf16.mxu0 0
  %1383 = vmatpush1.bf16.msra.mxu0 %v1102
  %1384 = vmatprep.mubr.bf16.mxu0 %v541
  %1385 = vmatmul.mubr.bf16.gmra.mrb[0].mxu0 %v540
  %v1386 = vpop.f32.mrb[0].mxu0
  %v1387 = vadd.f32 %v487, %v1386
  %v1388 = vpop.f32.mrb[0].mxu0
  %v1389 = vpop.f32.mrb[0].mxu0
  %v1390 = vadd.f32 %v487, %v1389
  %v1391 = vpop.f32.mrb[0].mxu0
  %1392 = vdwg.mxu0
  %1393 = vmatprep.subr.bf16.mxu0 0
  %1394 = vmatpush1.bf16.msra.mxu0 %v1103
  %1395 = vmatprep.subr.bf16.mxu0 0
  %1396 = vmatpush1.bf16.msra.mxu0 %v1104
  %1397 = vmatprep.subr.bf16.mxu0 0
  %1398 = vmatpush1.bf16.msra.mxu0 %v1105
  %1399 = vmatprep.subr.bf16.mxu0 0
  %1400 = vmatpush1.bf16.msra.mxu0 %v1106
  %1401 = vmatprep.subr.bf16.mxu0 0
  %1402 = vmatpush1.bf16.msra.mxu0 %v1107
  %1403 = vmatprep.subr.bf16.mxu0 0
  %1404 = vmatpush1.bf16.msra.mxu0 %v1108
  %1405 = vmatprep.subr.bf16.mxu0 0
  %1406 = vmatpush1.bf16.msra.mxu0 %v1109
  %1407 = vmatprep.subr.bf16.mxu0 0
  %1408 = vmatpush1.bf16.msra.mxu0 %v1110
  %1409 = vmatprep.subr.bf16.mxu0 0
  %1410 = vmatpush1.bf16.msra.mxu0 %v1111
  %1411 = vmatprep.subr.bf16.mxu0 0
  %1412 = vmatpush1.bf16.msra.mxu0 %v1112
  %1413 = vmatprep.subr.bf16.mxu0 0
  %1414 = vmatpush1.bf16.msra.mxu0 %v1113
  %1415 = vmatprep.subr.bf16.mxu0 0
  %1416 = vmatpush1.bf16.msra.mxu0 %v1114
  %1417 = vmatprep.subr.bf16.mxu0 0
  %1418 = vmatpush1.bf16.msra.mxu0 %v1115
  %1419 = vmatprep.subr.bf16.mxu0 0
  %1420 = vmatpush1.bf16.msra.mxu0 %v1116
  %1421 = vmatprep.subr.bf16.mxu0 0
  %1422 = vmatpush1.bf16.msra.mxu0 %v1117
  %1423 = vmatprep.subr.bf16.mxu0 0
  %1424 = vmatpush1.bf16.msra.mxu0 %v1118
  %1425 = vmatprep.mubr.bf16.mxu0 %v543
  %1426 = vmatmul.mubr.bf16.gmra.mrb[0].mxu0 %v542
  %v1427 = vpop.f32.mrb[0].mxu0
  %v1428 = vadd.f32 %v1387, %v1427
  %v1429 = vpop.f32.mrb[0].mxu0
  %v1430 = vpop.f32.mrb[0].mxu0
  %v1431 = vadd.f32 %v1390, %v1430
  %v1432 = vpop.f32.mrb[0].mxu0
  %1433 = vdwg.mxu0
  %1434 = vmatprep.subr.bf16.mxu0 0
  %1435 = vmatpush1.bf16.msra.mxu0 %v1119
  %1436 = vmatprep.subr.bf16.mxu0 0
  %1437 = vmatpush1.bf16.msra.mxu0 %v1120
  %1438 = vmatprep.subr.bf16.mxu0 0
  %1439 = vmatpush1.bf16.msra.mxu0 %v1121
  %1440 = vmatprep.subr.bf16.mxu0 0
  %1441 = vmatpush1.bf16.msra.mxu0 %v1122
  %1442 = vmatprep.subr.bf16.mxu0 0
  %1443 = vmatpush1.bf16.msra.mxu0 %v1123
  %1444 = vmatprep.subr.bf16.mxu0 0
  %1445 = vmatpush1.bf16.msra.mxu0 %v1124
  %1446 = vmatprep.subr.bf16.mxu0 0
  %1447 = vmatpush1.bf16.msra.mxu0 %v1125
  %1448 = vmatprep.subr.bf16.mxu0 0
  %1449 = vmatpush1.bf16.msra.mxu0 %v1126
  %1450 = vmatprep.subr.bf16.mxu0 0
  %1451 = vmatpush1.bf16.msra.mxu0 %v1127
  %1452 = vmatprep.subr.bf16.mxu0 0
  %1453 = vmatpush1.bf16.msra.mxu0 %v1128
  %1454 = vmatprep.subr.bf16.mxu0 0
  %1455 = vmatpush1.bf16.msra.mxu0 %v1129
  %1456 = vmatprep.subr.bf16.mxu0 0
  %1457 = vmatpush1.bf16.msra.mxu0 %v1130
  %1458 = vmatprep.subr.bf16.mxu0 0
  %1459 = vmatpush1.bf16.msra.mxu0 %v1131
  %1460 = vmatprep.subr.bf16.mxu0 0
  %1461 = vmatpush1.bf16.msra.mxu0 %v1132
  %1462 = vmatprep.subr.bf16.mxu0 0
  %1463 = vmatpush1.bf16.msra.mxu0 %v1133
  %1464 = vmatprep.subr.bf16.mxu0 0
  %1465 = vmatpush1.bf16.msra.mxu0 %v1134
  %1466 = vmatprep.mubr.bf16.mxu0 %v545
  %1467 = vmatmul.mubr.bf16.gmra.mrb[0].mxu0 %v544
  %v1468 = vpop.f32.mrb[0].mxu0
  %v1469 = vadd.f32 %v1428, %v1468
  %v1470 = vpop.f32.mrb[0].mxu0
  %v1471 = vpop.f32.mrb[0].mxu0
  %v1472 = vadd.f32 %v1431, %v1471
  %v1473 = vpop.f32.mrb[0].mxu0
  %1474 = vdwg.mxu0
  %1475 = vmatprep.subr.bf16.mxu0 0
  %1476 = vmatpush1.bf16.msra.mxu0 %v1135
  %1477 = vmatprep.subr.bf16.mxu0 0
  %1478 = vmatpush1.bf16.msra.mxu0 %v1136
  %1479 = vmatprep.subr.bf16.mxu0 0
  %1480 = vmatpush1.bf16.msra.mxu0 %v1137
  %1481 = vmatprep.subr.bf16.mxu0 0
  %1482 = vmatpush1.bf16.msra.mxu0 %v1138
  %1483 = vmatprep.subr.bf16.mxu0 0
  %1484 = vmatpush1.bf16.msra.mxu0 %v1139
  %1485 = vmatprep.subr.bf16.mxu0 0
  %1486 = vmatpush1.bf16.msra.mxu0 %v1140
  %1487 = vmatprep.subr.bf16.mxu0 0
  %1488 = vmatpush1.bf16.msra.mxu0 %v1141
  %1489 = vmatprep.subr.bf16.mxu0 0
  %1490 = vmatpush1.bf16.msra.mxu0 %v1142
  %1491 = vmatprep.subr.bf16.mxu0 0
  %1492 = vmatpush1.bf16.msra.mxu0 %v1143
  %1493 = vmatprep.subr.bf16.mxu0 0
  %1494 = vmatpush1.bf16.msra.mxu0 %v1144
  %1495 = vmatprep.subr.bf16.mxu0 0
  %1496 = vmatpush1.bf16.msra.mxu0 %v1145
  %1497 = vmatprep.subr.bf16.mxu0 0
  %1498 = vmatpush1.bf16.msra.mxu0 %v1146
  %1499 = vmatprep.subr.bf16.mxu0 0
  %1500 = vmatpush1.bf16.msra.mxu0 %v1147
  %1501 = vmatprep.subr.bf16.mxu0 0
  %1502 = vmatpush1.bf16.msra.mxu0 %v1148
  %1503 = vmatprep.subr.bf16.mxu0 0
  %1504 = vmatpush1.bf16.msra.mxu0 %v1149
  %1505 = vmatprep.subr.bf16.mxu0 0
  %1506 = vmatpush1.bf16.msra.mxu0 %v1150
  %1507 = vmatprep.mubr.bf16.mxu0 %v547
  %1508 = vmatmul.mubr.bf16.gmra.mrb[0].mxu0 %v546
  %v1509 = vpop.f32.mrb[0].mxu0
  %v1510 = vadd.f32 %v1469, %v1509
  %v1511 = vpop.f32.mrb[0].mxu0
  %v1512 = vpop.f32.mrb[0].mxu0
  %v1513 = vadd.f32 %v1472, %v1512
  %v1514 = vpop.f32.mrb[0].mxu0
  %1515 = vdwg.mxu0
  %1516 = vmatprep.subr.bf16.mxu0 0
  %1517 = vmatpush1.bf16.msra.mxu0 %v1151
  %1518 = vmatprep.subr.bf16.mxu0 0
  %1519 = vmatpush1.bf16.msra.mxu0 %v1152
  %1520 = vmatprep.subr.bf16.mxu0 0
  %1521 = vmatpush1.bf16.msra.mxu0 %v1153
  %1522 = vmatprep.subr.bf16.mxu0 0
  %1523 = vmatpush1.bf16.msra.mxu0 %v1154
  %1524 = vmatprep.subr.bf16.mxu0 0
  %1525 = vmatpush1.bf16.msra.mxu0 %v1155
  %1526 = vmatprep.subr.bf16.mxu0 0
  %1527 = vmatpush1.bf16.msra.mxu0 %v1156
  %1528 = vmatprep.subr.bf16.mxu0 0
  %1529 = vmatpush1.bf16.msra.mxu0 %v1157
  %1530 = vmatprep.subr.bf16.mxu0 0
  %1531 = vmatpush1.bf16.msra.mxu0 %v1158
  %1532 = vmatprep.subr.bf16.mxu0 0
  %1533 = vmatpush1.bf16.msra.mxu0 %v1159
  %1534 = vmatprep.subr.bf16.mxu0 0
  %1535 = vmatpush1.bf16.msra.mxu0 %v1160
  %1536 = vmatprep.subr.bf16.mxu0 0
  %1537 = vmatpush1.bf16.msra.mxu0 %v1161
  %1538 = vmatprep.subr.bf16.mxu0 0
  %1539 = vmatpush1.bf16.msra.mxu0 %v1162
  %1540 = vmatprep.subr.bf16.mxu0 0
  %1541 = vmatpush1.bf16.msra.mxu0 %v1163
  %1542 = vmatprep.subr.bf16.mxu0 0
  %1543 = vmatpush1.bf16.msra.mxu0 %v1164
  %1544 = vmatprep.subr.bf16.mxu0 0
  %1545 = vmatpush1.bf16.msra.mxu0 %v1165
  %1546 = vmatprep.subr.bf16.mxu0 0
  %1547 = vmatpush1.bf16.msra.mxu0 %v1166
  %1548 = vmatprep.mubr.bf16.mxu0 %v549
  %1549 = vmatmul.mubr.bf16.gmra.mrb[0].mxu0 %v548
  %v1550 = vpop.f32.mrb[0].mxu0
  %v1551 = vadd.f32 %v1510, %v1550
  %v1552 = vpop.f32.mrb[0].mxu0
  %v1553 = vpop.f32.mrb[0].mxu0
  %v1554 = vadd.f32 %v1513, %v1553
  %v1555 = vpop.f32.mrb[0].mxu0
  %1556 = vdwg.mxu0
  %1557 = vmatprep.subr.bf16.mxu0 0
  %1558 = vmatpush1.bf16.msra.mxu0 %v1167
  %1559 = vmatprep.subr.bf16.mxu0 0
  %1560 = vmatpush1.bf16.msra.mxu0 %v1168
  %1561 = vmatprep.subr.bf16.mxu0 0
  %1562 = vmatpush1.bf16.msra.mxu0 %v1169
  %1563 = vmatprep.subr.bf16.mxu0 0
  %1564 = vmatpush1.bf16.msra.mxu0 %v1170
  %1565 = vmatprep.subr.bf16.mxu0 0
  %1566 = vmatpush1.bf16.msra.mxu0 %v1171
  %1567 = vmatprep.subr.bf16.mxu0 0
  %1568 = vmatpush1.bf16.msra.mxu0 %v1172
  %1569 = vmatprep.subr.bf16.mxu0 0
  %1570 = vmatpush1.bf16.msra.mxu0 %v1173
  %1571 = vmatprep.subr.bf16.mxu0 0
  %1572 = vmatpush1.bf16.msra.mxu0 %v1174
  %1573 = vmatprep.subr.bf16.mxu0 0
  %1574 = vmatpush1.bf16.msra.mxu0 %v1175
  %1575 = vmatprep.subr.bf16.mxu0 0
  %1576 = vmatpush1.bf16.msra.mxu0 %v1176
  %1577 = vmatprep.subr.bf16.mxu0 0
  %1578 = vmatpush1.bf16.msra.mxu0 %v1177
  %1579 = vmatprep.subr.bf16.mxu0 0
  %1580 = vmatpush1.bf16.msra.mxu0 %v1178
  %1581 = vmatprep.subr.bf16.mxu0 0
  %1582 = vmatpush1.bf16.msra.mxu0 %v1179
  %1583 = vmatprep.subr.bf16.mxu0 0
  %1584 = vmatpush1.bf16.msra.mxu0 %v1180
  %1585 = vmatprep.subr.bf16.mxu0 0
  %1586 = vmatpush1.bf16.msra.mxu0 %v1181
  %1587 = vmatprep.subr.bf16.mxu0 0
  %1588 = vmatpush1.bf16.msra.mxu0 %v1182
  %1589 = vmatprep.mubr.bf16.mxu0 %v551
  %1590 = vmatmul.mubr.bf16.gmra.mrb[0].mxu0 %v550
  %v1591 = vpop.f32.mrb[0].mxu0
  %v1592 = vadd.f32 %v1551, %v1591
  %v1593 = vpop.f32.mrb[0].mxu0
  %v1594 = vpop.f32.mrb[0].mxu0
  %v1595 = vadd.f32 %v1554, %v1594
  %v1596 = vpop.f32.mrb[0].mxu0
  %1597 = vdwg.mxu0
  %1598 = vmatprep.subr.bf16.mxu0 0
  %1599 = vmatpush1.bf16.msra.mxu0 %v1183
  %1600 = vmatprep.subr.bf16.mxu0 0
  %1601 = vmatpush1.bf16.msra.mxu0 %v1184
  %1602 = vmatprep.subr.bf16.mxu0 0
  %1603 = vmatpush1.bf16.msra.mxu0 %v1185
  %1604 = vmatprep.subr.bf16.mxu0 0
  %1605 = vmatpush1.bf16.msra.mxu0 %v1186
  %1606 = vmatprep.subr.bf16.mxu0 0
  %1607 = vmatpush1.bf16.msra.mxu0 %v1187
  %1608 = vmatprep.subr.bf16.mxu0 0
  %1609 = vmatpush1.bf16.msra.mxu0 %v1188
  %1610 = vmatprep.subr.bf16.mxu0 0
  %1611 = vmatpush1.bf16.msra.mxu0 %v1189
  %1612 = vmatprep.subr.bf16.mxu0 0
  %1613 = vmatpush1.bf16.msra.mxu0 %v1190
  %1614 = vmatprep.subr.bf16.mxu0 0
  %1615 = vmatpush1.bf16.msra.mxu0 %v1191
  %1616 = vmatprep.subr.bf16.mxu0 0
  %1617 = vmatpush1.bf16.msra.mxu0 %v1192
  %1618 = vmatprep.subr.bf16.mxu0 0
  %1619 = vmatpush1.bf16.msra.mxu0 %v1193
  %1620 = vmatprep.subr.bf16.mxu0 0
  %1621 = vmatpush1.bf16.msra.mxu0 %v1194
  %1622 = vmatprep.subr.bf16.mxu0 0
  %1623 = vmatpush1.bf16.msra.mxu0 %v1195
  %1624 = vmatprep.subr.bf16.mxu0 0
  %1625 = vmatpush1.bf16.msra.mxu0 %v1196
  %1626 = vmatprep.subr.bf16.mxu0 0
  %1627 = vmatpush1.bf16.msra.mxu0 %v1197
  %1628 = vmatprep.subr.bf16.mxu0 0
  %1629 = vmatpush1.bf16.msra.mxu0 %v1198
  %1630 = vmatprep.mubr.bf16.mxu0 %v553
  %1631 = vmatmul.mubr.bf16.gmra.mrb[0].mxu0 %v552
  %v1632 = vpop.f32.mrb[0].mxu0
  %v1633 = vadd.f32 %v1592, %v1632
  %v1634 = vpop.f32.mrb[0].mxu0
  %v1635 = vpop.f32.mrb[0].mxu0
  %v1636 = vadd.f32 %v1595, %v1635
  %v1637 = vpop.f32.mrb[0].mxu0
  %1638 = vdwg.mxu0
  %1639 = vmatprep.subr.bf16.mxu0 0
  %1640 = vmatpush1.bf16.msra.mxu0 %v1199
  %1641 = vmatprep.subr.bf16.mxu0 0
  %1642 = vmatpush1.bf16.msra.mxu0 %v1200
  %1643 = vmatprep.subr.bf16.mxu0 0
  %1644 = vmatpush1.bf16.msra.mxu0 %v1201
  %1645 = vmatprep.subr.bf16.mxu0 0
  %1646 = vmatpush1.bf16.msra.mxu0 %v1202
  %1647 = vmatprep.subr.bf16.mxu0 0
  %1648 = vmatpush1.bf16.msra.mxu0 %v1203
  %1649 = vmatprep.subr.bf16.mxu0 0
  %1650 = vmatpush1.bf16.msra.mxu0 %v1204
  %1651 = vmatprep.subr.bf16.mxu0 0
  %1652 = vmatpush1.bf16.msra.mxu0 %v1205
  %1653 = vmatprep.subr.bf16.mxu0 0
  %1654 = vmatpush1.bf16.msra.mxu0 %v1206
  %1655 = vmatprep.subr.bf16.mxu0 0
  %1656 = vmatpush1.bf16.msra.mxu0 %v1207
  %1657 = vmatprep.subr.bf16.mxu0 0
  %1658 = vmatpush1.bf16.msra.mxu0 %v1208
  %1659 = vmatprep.subr.bf16.mxu0 0
  %1660 = vmatpush1.bf16.msra.mxu0 %v1209
  %1661 = vmatprep.subr.bf16.mxu0 0
  %1662 = vmatpush1.bf16.msra.mxu0 %v1210
  %1663 = vmatprep.subr.bf16.mxu0 0
  %1664 = vmatpush1.bf16.msra.mxu0 %v1211
  %1665 = vmatprep.subr.bf16.mxu0 0
  %1666 = vmatpush1.bf16.msra.mxu0 %v1212
  %1667 = vmatprep.subr.bf16.mxu0 0
  %1668 = vmatpush1.bf16.msra.mxu0 %v1213
  %1669 = vmatprep.subr.bf16.mxu0 0
  %1670 = vmatpush1.bf16.msra.mxu0 %v1214
  %1671 = vmatprep.mubr.bf16.mxu0 %v555
  %1672 = vmatmul.mubr.bf16.gmra.mrb[0].mxu0 %v554
  %v1673 = vpop.f32.mrb[0].mxu0
  %v1674 = vadd.f32 %v1633, %v1673
  %v1675 = vpop.f32.mrb[0].mxu0
  %v1676 = vpop.f32.mrb[0].mxu0
  %v1677 = vadd.f32 %v1636, %v1676
  %v1678 = vpop.f32.mrb[0].mxu0
  %1679 = vdwg.mxu0
  %1680 = vmatprep.subr.bf16.mxu0 0
  %1681 = vmatpush1.bf16.msra.mxu0 %v1350
  %1682 = vmatprep.subr.bf16.mxu0 0
  %1683 = vmatpush1.bf16.msra.mxu0 0
  %1684 = vmatprep.subr.bf16.mxu0 0
  %1685 = vmatpush1.bf16.msra.mxu0 0
  %1686 = vmatprep.subr.bf16.mxu0 0
  %1687 = vmatpush1.bf16.msra.mxu0 0
  %1688 = vmatprep.subr.bf16.mxu0 0
  %1689 = vmatpush1.bf16.msra.mxu0 0
  %1690 = vmatprep.subr.bf16.mxu0 0
  %1691 = vmatpush1.bf16.msra.mxu0 0
  %1692 = vmatprep.subr.bf16.mxu0 0
  %1693 = vmatpush1.bf16.msra.mxu0 0
  %1694 = vmatprep.subr.bf16.mxu0 0
  %1695 = vmatpush1.bf16.msra.mxu0 0
  %1696 = vmatprep.subr.bf16.mxu0 0
  %1697 = vmatpush1.bf16.msra.mxu0 0
  %1698 = vmatprep.subr.bf16.mxu0 0
  %1699 = vmatpush1.bf16.msra.mxu0 0
  %1700 = vmatprep.subr.bf16.mxu0 0
  %1701 = vmatpush1.bf16.msra.mxu0 0
  %1702 = vmatprep.subr.bf16.mxu0 0
  %1703 = vmatpush1.bf16.msra.mxu0 0
  %1704 = vmatprep.subr.bf16.mxu0 0
  %1705 = vmatpush1.bf16.msra.mxu0 0
  %1706 = vmatprep.subr.bf16.mxu0 0
  %1707 = vmatpush1.bf16.msra.mxu0 0
  %1708 = vmatprep.subr.bf16.mxu0 0
  %1709 = vmatpush1.bf16.msra.mxu0 0
  %1710 = vmatprep.subr.bf16.mxu0 0
  %1711 = vmatpush1.bf16.msra.mxu0 0
  %1712 = vmatprep.mubr.bf16.mxu0 0
  %1713 = vmatmul.mubr.bf16.gmra.mrb[0].mxu0 %v1346
  %v1714 = vpop.f32.mrb[0].mxu0
  %v1715 = vadd.f32 %v1674, %v1714
  %v1716 = vpop.f32.mrb[0].mxu0
  %v1717 = vpop.f32.mrb[0].mxu0
  %v1718 = vadd.f32 %v1677, %v1717
  %v1719 = vpop.f32.mrb[0].mxu0
  %1720 = vdwg.mxu0
  %v1721 = vld [vmem:[%s5 + $0x93] sm:$0x1]
  %v1722 = vld [vmem:[%s5 + $0x94] sm:$0x1]
  %v1723 = vsel %vm168, %v1715, 0.0
  %1724 = vadd.xlane.f32.xlu0 %v1723
  %v1725 = vpop.xlane.xlu0 %1724
  %v1726 = vsel %vm168, %v1718, 0.0
  %1727 = vadd.xlane.f32.xlu0 %v1726
  %v1728 = vpop.xlane.xlu0 %1727
  %v1729 = vmul.f32 %v1725, %v175
  %v1730 = vmul.f32 %v1728, %v175
  %v1731 = vsub.f32 %v1715, %v1729
  %v1732 = vsub.f32 %v1718, %v1730
  %v1733 = vmul.f32 %v1731, %v1731
  %v1734 = vmul.f32 %v1732, %v1732
  %v1735 = vsel %vm168, %v1733, 0.0
  %1736 = vadd.xlane.f32.xlu0 %v1735
  %v1737 = vpop.xlane.xlu0 %1736
  %v1738 = vsel %vm168, %v1734, 0.0
  %1739 = vadd.xlane.f32.xlu0 %v1738
  %v1740 = vpop.xlane.xlu0 %1739
  %v1741 = vmul.f32 %v1737, %v175
  %v1742 = vmul.f32 %v1740, %v175
  %v1743 = vadd.f32 %v1741, 1e-12
  %v1744 = vadd.f32 %v1742, 1e-12
  %v1745 = vrsqrt.pop %v1743
  %v1746 = vrsqrt.pop %v1744
  %v1747 = vmul.f32 %v1731, %v1745
  %v1748 = vmul.f32 %v1732, %v1746
  %v1749 = vlaneseq
  %v1750 = vshrl.u32 %v1749, 7
  %v1751 = vsub.s32 0, %v1750
  %v1752 = vrot.slane %v1721, %v1751
  %v1753 = vmul.f32 %v1747, %v1752
  %v1754 = vmul.f32 %v1748, %v1752
  %v1755 = vlaneseq
  %v1756 = vshrl.u32 %v1755, 7
  %v1757 = vsub.s32 0, %v1756
  %v1758 = vrot.slane %v1722, %v1757
  %v1759 = vadd.f32 %v1753, %v1758
  %v1760 = vadd.f32 %v1754, %v1758
  %v1761 = vld [vmem:[%s2] sm:$0x3]
  %v1762 = vsub.f32 1.0, %v1761
  %v1763 = vmul.f32 %v1762, -10000.0
  %v1765 = vrot.slane %v1763, 6
  %vm1767 = vcmask 1041408
  %v1768 = vsel %vm1767, %v1763, %v1765
  %v1769 = vld [vmem:[%s6] sm:$0xff]
  %v1770 = vld [vmem:[%s6 + $0x8] sm:$0xff]
  %v1771 = vld [vmem:[%s6 + $0x10] sm:$0xff]
  %v1772 = vld [vmem:[%s6 + $0x18] sm:$0xff]
  %v1773 = vld [vmem:[%s6 + $0x180] sm:$0x1]
  %v1774 = vlaneseq
  %v1775 = vshrl.u32 %v1774, 7
  %v1776 = vsub.s32 0, %v1775
  %v1777 = vrot.slane %v1773, %v1776
  %v1779 = vsel %vm168, %v206, 0
  %v1782 = vsel %vm168, %v1759, 0
  %v1785 = vsel %vm168, %v207, 0
  %v1788 = vsel %vm168, %v1760, 0
  %1790 = vmatprep.subr.mxu0 0.0
  %1791 = vmatpush1.msra.mxu0 %v1769
  %1792 = vmatprep.subr.mxu0 0.0
  %1793 = vmatpush1.msra.mxu0 %v1770
  %1794 = vmatprep.subr.mxu0 0.0
  %1795 = vmatpush1.msra.mxu0 %v1771
  %1796 = vmatprep.subr.mxu0 0.0
  %1797 = vmatpush1.msra.mxu0 %v1772
  %1798 = vmatprep.subr.mxu0 0.0
  %1799 = vmatpush1.msra.mxu0 0.0
  %1800 = vmatprep.subr.mxu0 0.0
  %1801 = vmatpush1.msra.mxu0 0.0
  %1802 = vmatprep.subr.mxu0 0.0
  %1803 = vmatpush1.msra.mxu0 0.0
  %1804 = vmatprep.subr.mxu0 0.0
  %1805 = vmatpush1.msra.mxu0 0.0
  %1806 = vmatprep.subr.mxu0 0.0
  %1807 = vmatpush1.msra.mxu0 0.0
  %1808 = vmatprep.subr.mxu0 0.0
  %1809 = vmatpush1.msra.mxu0 0.0
  %1810 = vmatprep.subr.mxu0 0.0
  %1811 = vmatpush1.msra.mxu0 0.0
  %1812 = vmatprep.subr.mxu0 0.0
  %1813 = vmatpush1.msra.mxu0 0.0
  %1814 = vmatprep.subr.mxu0 0.0
  %1815 = vmatpush1.msra.mxu0 0.0
  %1816 = vmatprep.subr.mxu0 0.0
  %1817 = vmatpush1.msra.mxu0 0.0
  %1818 = vmatprep.subr.mxu0 0.0
  %1819 = vmatpush1.msra.mxu0 0.0
  %1820 = vmatprep.subr.mxu0 0.0
  %1821 = vmatpush1.msra.mxu0 0.0
  %1822 = vmatprep.subr.mxu0 0.0
  %1823 = vmatpush1.msra.mxu0 0.0
  %1824 = vmatprep.subr.mxu0 0.0
  %1825 = vmatpush1.msra.mxu0 0.0
  %1826 = vmatprep.subr.mxu0 0.0
  %1827 = vmatpush1.msra.mxu0 0.0
  %1828 = vmatprep.subr.mxu0 0.0
  %1829 = vmatpush1.msra.mxu0 0.0
  %1830 = vmatprep.subr.mxu0 0.0
  %1831 = vmatpush1.msra.mxu0 0.0
  %1832 = vmatprep.subr.mxu0 0.0
  %1833 = vmatpush1.msra.mxu0 0.0
  %1834 = vmatprep.subr.mxu0 0.0
  %1835 = vmatpush1.msra.mxu0 0.0
  %1836 = vmatprep.subr.mxu0 0.0
  %1837 = vmatpush1.msra.mxu0 0.0
  %1838 = vmatprep.subr.mxu0 0.0
  %1839 = vmatpush1.msra.mxu0 0.0
  %1840 = vmatprep.subr.mxu0 0.0
  %1841 = vmatpush1.msra.mxu0 0.0
  %1842 = vmatprep.subr.mxu0 0.0
  %1843 = vmatpush1.msra.mxu0 0.0
  %1844 = vmatprep.subr.mxu0 0.0
  %1845 = vmatpush1.msra.mxu0 0.0
  %1846 = vmatprep.subr.mxu0 0.0
  %1847 = vmatpush1.msra.mxu0 0.0
  %1848 = vmatprep.subr.mxu0 0.0
  %1849 = vmatpush1.msra.mxu0 0.0
  %1850 = vmatprep.subr.mxu0 0.0
  %1851 = vmatpush1.msra.mxu0 0.0
  %1852 = vmatprep.subr.mxu0 0.0
  %1853 = vmatpush1.msra.mxu0 0.0
  %1854 = vmatprep.mubr.f32.mxu0 0.0
  %1855 = vmatmul.mubr.f32.gmra.mrb[0].mxu0 %v1779
  %v1856 = vpop.f32.mrb[0].mxu0
  %v1857 = vadd.f32 %v1777, %v1856
  %v1858 = vpop.f32.mrb[0].mxu0
  %1859 = vmatprep.mubr.f32.mxu0 0.0
  %1860 = vmatmul.mubr.f32.gmra.mrb[0].mxu0 %v1782
  %v1861 = vpop.f32.mrb[0].mxu0
  %v1862 = vadd.f32 %v1777, %v1861
  %v1863 = vpop.f32.mrb[0].mxu0
  %1864 = vmatprep.mubr.f32.mxu0 0.0
  %1865 = vmatmul.mubr.f32.gmra.mrb[0].mxu0 %v1785
  %v1866 = vpop.f32.mrb[0].mxu0
  %v1867 = vadd.f32 %v1777, %v1866
  %v1868 = vpop.f32.mrb[0].mxu0
  %1869 = vmatprep.mubr.f32.mxu0 0.0
  %1870 = vmatmul.mubr.f32.gmra.mrb[0].mxu0 %v1788
  %v1871 = vpop.f32.mrb[0].mxu0
  %v1872 = vadd.f32 %v1777, %v1871
  %v1873 = vpop.f32.mrb[0].mxu0
  %1874 = vdwg.mxu0
  %v1875 = vld [vmem:[%s6 + $0x20] sm:$0xff]
  %v1876 = vld [vmem:[%s6 + $0x28] sm:$0xff]
  %v1877 = vld [vmem:[%s6 + $0x30] sm:$0xff]
  %v1878 = vld [vmem:[%s6 + $0x38] sm:$0xff]
  %v1879 = vld [vmem:[%s6 + $0x181] sm:$0x1]
  %v1880 = vlaneseq
  %v1881 = vshrl.u32 %v1880, 7
  %v1882 = vsub.s32 0, %v1881
  %v1883 = vrot.slane %v1879, %v1882
  %1884 = vmatprep.subr.mxu0 0.0
  %1885 = vmatpush1.msra.mxu0 %v1875
  %1886 = vmatprep.subr.mxu0 0.0
  %1887 = vmatpush1.msra.mxu0 %v1876
  %1888 = vmatprep.subr.mxu0 0.0
  %1889 = vmatpush1.msra.mxu0 %v1877
  %1890 = vmatprep.subr.mxu0 0.0
  %1891 = vmatpush1.msra.mxu0 %v1878
  %1892 = vmatprep.subr.mxu0 0.0
  %1893 = vmatpush1.msra.mxu0 0.0
  %1894 = vmatprep.subr.mxu0 0.0
  %1895 = vmatpush1.msra.mxu0 0.0
  %1896 = vmatprep.subr.mxu0 0.0
  %1897 = vmatpush1.msra.mxu0 0.0
  %1898 = vmatprep.subr.mxu0 0.0
  %1899 = vmatpush1.msra.mxu0 0.0
  %1900 = vmatprep.subr.mxu0 0.0
  %1901 = vmatpush1.msra.mxu0 0.0
  %1902 = vmatprep.subr.mxu0 0.0
  %1903 = vmatpush1.msra.mxu0 0.0
  %1904 = vmatprep.subr.mxu0 0.0
  %1905 = vmatpush1.msra.mxu0 0.0
  %1906 = vmatprep.subr.mxu0 0.0
  %1907 = vmatpush1.msra.mxu0 0.0
  %1908 = vmatprep.subr.mxu0 0.0
  %1909 = vmatpush1.msra.mxu0 0.0
  %1910 = vmatprep.subr.mxu0 0.0
  %1911 = vmatpush1.msra.mxu0 0.0
  %1912 = vmatprep.subr.mxu0 0.0
  %1913 = vmatpush1.msra.mxu0 0.0
  %1914 = vmatprep.subr.mxu0 0.0
  %1915 = vmatpush1.msra.mxu0 0.0
  %1916 = vmatprep.subr.mxu0 0.0
  %1917 = vmatpush1.msra.mxu0 0.0
  %1918 = vmatprep.subr.mxu0 0.0
  %1919 = vmatpush1.msra.mxu0 0.0
  %1920 = vmatprep.subr.mxu0 0.0
  %1921 = vmatpush1.msra.mxu0 0.0
  %1922 = vmatprep.subr.mxu0 0.0
  %1923 = vmatpush1.msra.mxu0 0.0
  %1924 = vmatprep.subr.mxu0 0.0
  %1925 = vmatpush1.msra.mxu0 0.0
  %1926 = vmatprep.subr.mxu0 0.0
  %1927 = vmatpush1.msra.mxu0 0.0
  %1928 = vmatprep.subr.mxu0 0.0
  %1929 = vmatpush1.msra.mxu0 0.0
  %1930 = vmatprep.subr.mxu0 0.0
  %1931 = vmatpush1.msra.mxu0 0.0
  %1932 = vmatprep.subr.mxu0 0.0
  %1933 = vmatpush1.msra.mxu0 0.0
  %1934 = vmatprep.subr.mxu0 0.0
  %1935 = vmatpush1.msra.mxu0 0.0
  %1936 = vmatprep.subr.mxu0 0.0
  %1937 = vmatpush1.msra.mxu0 0.0
  %1938 = vmatprep.subr.mxu0 0.0
  %1939 = vmatpush1.msra.mxu0 0.0
  %1940 = vmatprep.subr.mxu0 0.0
  %1941 = vmatpush1.msra.mxu0 0.0
  %1942 = vmatprep.subr.mxu0 0.0
  %1943 = vmatpush1.msra.mxu0 0.0
  %1944 = vmatprep.subr.mxu0 0.0
  %1945 = vmatpush1.msra.mxu0 0.0
  %1946 = vmatprep.subr.mxu0 0.0
  %1947 = vmatpush1.msra.mxu0 0.0
  %1948 = vmatprep.mubr.f32.mxu0 0.0
  %1949 = vmatmul.mubr.f32.gmra.mrb[0].mxu0 %v1779
  %v1950 = vpop.f32.mrb[0].mxu0
  %v1951 = vadd.f32 %v1883, %v1950
  %v1952 = vpop.f32.mrb[0].mxu0
  %1953 = vmatprep.mubr.f32.mxu0 0.0
  %1954 = vmatmul.mubr.f32.gmra.mrb[0].mxu0 %v1782
  %v1955 = vpop.f32.mrb[0].mxu0
  %v1956 = vadd.f32 %v1883, %v1955
  %v1957 = vpop.f32.mrb[0].mxu0
  %1958 = vmatprep.mubr.f32.mxu0 0.0
  %1959 = vmatmul.mubr.f32.gmra.mrb[0].mxu0 %v1785
  %v1960 = vpop.f32.mrb[0].mxu0
  %v1961 = vadd.f32 %v1883, %v1960
  %v1962 = vpop.f32.mrb[0].mxu0
  %1963 = vmatprep.mubr.f32.mxu0 0.0
  %1964 = vmatmul.mubr.f32.gmra.mrb[0].mxu0 %v1788
  %v1965 = vpop.f32.mrb[0].mxu0
  %v1966 = vadd.f32 %v1883, %v1965
  %v1967 = vpop.f32.mrb[0].mxu0
  %1968 = vdwg.mxu0
  %v1969 = vld [vmem:[%s6 + $0x40] sm:$0xff]
  %v1970 = vld [vmem:[%s6 + $0x48] sm:$0xff]
  %v1971 = vld [vmem:[%s6 + $0x50] sm:$0xff]
  %v1972 = vld [vmem:[%s6 + $0x58] sm:$0xff]
  %v1973 = vld [vmem:[%s6 + $0x182] sm:$0x1]
  %v1974 = vlaneseq
  %v1975 = vshrl.u32 %v1974, 7
  %v1976 = vsub.s32 0, %v1975
  %v1977 = vrot.slane %v1973, %v1976
  %1978 = vmatprep.subr.mxu0 0.0
  %1979 = vmatpush1.msra.mxu0 %v1969
  %1980 = vmatprep.subr.mxu0 0.0
  %1981 = vmatpush1.msra.mxu0 %v1970
  %1982 = vmatprep.subr.mxu0 0.0
  %1983 = vmatpush1.msra.mxu0 %v1971
  %1984 = vmatprep.subr.mxu0 0.0
  %1985 = vmatpush1.msra.mxu0 %v1972
  %1986 = vmatprep.subr.mxu0 0.0
  %1987 = vmatpush1.msra.mxu0 0.0
  %1988 = vmatprep.subr.mxu0 0.0
  %1989 = vmatpush1.msra.mxu0 0.0
  %1990 = vmatprep.subr.mxu0 0.0
  %1991 = vmatpush1.msra.mxu0 0.0
  %1992 = vmatprep.subr.mxu0 0.0
  %1993 = vmatpush1.msra.mxu0 0.0
  %1994 = vmatprep.subr.mxu0 0.0
  %1995 = vmatpush1.msra.mxu0 0.0
  %1996 = vmatprep.subr.mxu0 0.0
  %1997 = vmatpush1.msra.mxu0 0.0
  %1998 = vmatprep.subr.mxu0 0.0
  %1999 = vmatpush1.msra.mxu0 0.0
  %2000 = vmatprep.subr.mxu0 0.0
  %2001 = vmatpush1.msra.mxu0 0.0
  %2002 = vmatprep.subr.mxu0 0.0
  %2003 = vmatpush1.msra.mxu0 0.0
  %2004 = vmatprep.subr.mxu0 0.0
  %2005 = vmatpush1.msra.mxu0 0.0
  %2006 = vmatprep.subr.mxu0 0.0
  %2007 = vmatpush1.msra.mxu0 0.0
  %2008 = vmatprep.subr.mxu0 0.0
  %2009 = vmatpush1.msra.mxu0 0.0
  %2010 = vmatprep.subr.mxu0 0.0
  %2011 = vmatpush1.msra.mxu0 0.0
  %2012 = vmatprep.subr.mxu0 0.0
  %2013 = vmatpush1.msra.mxu0 0.0
  %2014 = vmatprep.subr.mxu0 0.0
  %2015 = vmatpush1.msra.mxu0 0.0
  %2016 = vmatprep.subr.mxu0 0.0
  %2017 = vmatpush1.msra.mxu0 0.0
  %2018 = vmatprep.subr.mxu0 0.0
  %2019 = vmatpush1.msra.mxu0 0.0
  %2020 = vmatprep.subr.mxu0 0.0
  %2021 = vmatpush1.msra.mxu0 0.0
  %2022 = vmatprep.subr.mxu0 0.0
  %2023 = vmatpush1.msra.mxu0 0.0
  %2024 = vmatprep.subr.mxu0 0.0
  %2025 = vmatpush1.msra.mxu0 0.0
  %2026 = vmatprep.subr.mxu0 0.0
  %2027 = vmatpush1.msra.mxu0 0.0
  %2028 = vmatprep.subr.mxu0 0.0
  %2029 = vmatpush1.msra.mxu0 0.0
  %2030 = vmatprep.subr.mxu0 0.0
  %2031 = vmatpush1.msra.mxu0 0.0
  %2032 = vmatprep.subr.mxu0 0.0
  %2033 = vmatpush1.msra.mxu0 0.0
  %2034 = vmatprep.subr.mxu0 0.0
  %2035 = vmatpush1.msra.mxu0 0.0
  %2036 = vmatprep.subr.mxu0 0.0
  %2037 = vmatpush1.msra.mxu0 0.0
  %2038 = vmatprep.subr.mxu0 0.0
  %2039 = vmatpush1.msra.mxu0 0.0
  %2040 = vmatprep.subr.mxu0 0.0
  %2041 = vmatpush1.msra.mxu0 0.0
  %2042 = vmatprep.mubr.f32.mxu0 0.0
  %2043 = vmatmul.mubr.f32.gmra.mrb[0].mxu0 %v1779
  %v2044 = vpop.f32.mrb[0].mxu0
  %v2045 = vadd.f32 %v1977, %v2044
  %v2046 = vpop.f32.mrb[0].mxu0
  %2047 = vmatprep.mubr.f32.mxu0 0.0
  %2048 = vmatmul.mubr.f32.gmra.mrb[0].mxu0 %v1782
  %v2049 = vpop.f32.mrb[0].mxu0
  %v2050 = vadd.f32 %v1977, %v2049
  %v2051 = vpop.f32.mrb[0].mxu0
  %2052 = vmatprep.mubr.f32.mxu0 0.0
  %2053 = vmatmul.mubr.f32.gmra.mrb[0].mxu0 %v1785
  %v2054 = vpop.f32.mrb[0].mxu0
  %v2055 = vadd.f32 %v1977, %v2054
  %v2056 = vpop.f32.mrb[0].mxu0
  %2057 = vmatprep.mubr.f32.mxu0 0.0
  %2058 = vmatmul.mubr.f32.gmra.mrb[0].mxu0 %v1788
  %v2059 = vpop.f32.mrb[0].mxu0
  %v2060 = vadd.f32 %v1977, %v2059
  %v2061 = vpop.f32.mrb[0].mxu0
  %2062 = vdwg.mxu0
  %v2063 = vld [vmem:[%s6 + $0x60] sm:$0xff]
  %v2064 = vld [vmem:[%s6 + $0x68] sm:$0xff]
  %v2065 = vld [vmem:[%s6 + $0x70] sm:$0xff]
  %v2066 = vld [vmem:[%s6 + $0x78] sm:$0xff]
  %v2067 = vld [vmem:[%s6 + $0x183] sm:$0x1]
  %v2068 = vlaneseq
  %v2069 = vshrl.u32 %v2068, 7
  %v2070 = vsub.s32 0, %v2069
  %v2071 = vrot.slane %v2067, %v2070
  %2072 = vmatprep.subr.mxu0 0.0
  %2073 = vmatpush1.msra.mxu0 %v2063
  %2074 = vmatprep.subr.mxu0 0.0
  %2075 = vmatpush1.msra.mxu0 %v2064
  %2076 = vmatprep.subr.mxu0 0.0
  %2077 = vmatpush1.msra.mxu0 %v2065
  %2078 = vmatprep.subr.mxu0 0.0
  %2079 = vmatpush1.msra.mxu0 %v2066
  %2080 = vmatprep.subr.mxu0 0.0
  %2081 = vmatpush1.msra.mxu0 0.0
  %2082 = vmatprep.subr.mxu0 0.0
  %2083 = vmatpush1.msra.mxu0 0.0
  %2084 = vmatprep.subr.mxu0 0.0
  %2085 = vmatpush1.msra.mxu0 0.0
  %2086 = vmatprep.subr.mxu0 0.0
  %2087 = vmatpush1.msra.mxu0 0.0
  %2088 = vmatprep.subr.mxu0 0.0
  %2089 = vmatpush1.msra.mxu0 0.0
  %2090 = vmatprep.subr.mxu0 0.0
  %2091 = vmatpush1.msra.mxu0 0.0
  %2092 = vmatprep.subr.mxu0 0.0
  %2093 = vmatpush1.msra.mxu0 0.0
  %2094 = vmatprep.subr.mxu0 0.0
  %2095 = vmatpush1.msra.mxu0 0.0
  %2096 = vmatprep.subr.mxu0 0.0
  %2097 = vmatpush1.msra.mxu0 0.0
  %2098 = vmatprep.subr.mxu0 0.0
  %2099 = vmatpush1.msra.mxu0 0.0
  %2100 = vmatprep.subr.mxu0 0.0
  %2101 = vmatpush1.msra.mxu0 0.0
  %2102 = vmatprep.subr.mxu0 0.0
  %2103 = vmatpush1.msra.mxu0 0.0
  %2104 = vmatprep.subr.mxu0 0.0
  %2105 = vmatpush1.msra.mxu0 0.0
  %2106 = vmatprep.subr.mxu0 0.0
  %2107 = vmatpush1.msra.mxu0 0.0
  %2108 = vmatprep.subr.mxu0 0.0
  %2109 = vmatpush1.msra.mxu0 0.0
  %2110 = vmatprep.subr.mxu0 0.0
  %2111 = vmatpush1.msra.mxu0 0.0
  %2112 = vmatprep.subr.mxu0 0.0
  %2113 = vmatpush1.msra.mxu0 0.0
  %2114 = vmatprep.subr.mxu0 0.0
  %2115 = vmatpush1.msra.mxu0 0.0
  %2116 = vmatprep.subr.mxu0 0.0
  %2117 = vmatpush1.msra.mxu0 0.0
  %2118 = vmatprep.subr.mxu0 0.0
  %2119 = vmatpush1.msra.mxu0 0.0
  %2120 = vmatprep.subr.mxu0 0.0
  %2121 = vmatpush1.msra.mxu0 0.0
  %2122 = vmatprep.subr.mxu0 0.0
  %2123 = vmatpush1.msra.mxu0 0.0
  %2124 = vmatprep.subr.mxu0 0.0
  %2125 = vmatpush1.msra.mxu0 0.0
  %2126 = vmatprep.subr.mxu0 0.0
  %2127 = vmatpush1.msra.mxu0 0.0
  %2128 = vmatprep.subr.mxu0 0.0
  %2129 = vmatpush1.msra.mxu0 0.0
  %2130 = vmatprep.subr.mxu0 0.0
  %2131 = vmatpush1.msra.mxu0 0.0
  %2132 = vmatprep.subr.mxu0 0.0
  %2133 = vmatpush1.msra.mxu0 0.0
  %2134 = vmatprep.subr.mxu0 0.0
  %2135 = vmatpush1.msra.mxu0 0.0
  %2136 = vmatprep.mubr.f32.mxu0 0.0
  %2137 = vmatmul.mubr.f32.gmra.mrb[0].mxu0 %v1779
  %v2138 = vpop.f32.mrb[0].mxu0
  %v2139 = vadd.f32 %v2071, %v2138
  %v2140 = vpop.f32.mrb[0].mxu0
  %2141 = vmatprep.mubr.f32.mxu0 0.0
  %2142 = vmatmul.mubr.f32.gmra.mrb[0].mxu0 %v1782
  %v2143 = vpop.f32.mrb[0].mxu0
  %v2144 = vadd.f32 %v2071, %v2143
  %v2145 = vpop.f32.mrb[0].mxu0
  %2146 = vmatprep.mubr.f32.mxu0 0.0
  %2147 = vmatmul.mubr.f32.gmra.mrb[0].mxu0 %v1785
  %v2148 = vpop.f32.mrb[0].mxu0
  %v2149 = vadd.f32 %v2071, %v2148
  %v2150 = vpop.f32.mrb[0].mxu0
  %2151 = vmatprep.mubr.f32.mxu0 0.0
  %2152 = vmatmul.mubr.f32.gmra.mrb[0].mxu0 %v1788
  %v2153 = vpop.f32.mrb[0].mxu0
  %v2154 = vadd.f32 %v2071, %v2153
  %v2155 = vpop.f32.mrb[0].mxu0
  %2156 = vdwg.mxu0
  %v2157 = vld [vmem:[%s6 + $0x80] sm:$0xff]
  %v2158 = vld [vmem:[%s6 + $0x88] sm:$0xff]
  %v2159 = vld [vmem:[%s6 + $0x90] sm:$0xff]
  %v2160 = vld [vmem:[%s6 + $0x98] sm:$0xff]
  %v2161 = vld [vmem:[%s6 + $0x184] sm:$0x1]
  %v2162 = vlaneseq
  %v2163 = vshrl.u32 %v2162, 7
  %v2164 = vsub.s32 0, %v2163
  %v2165 = vrot.slane %v2161, %v2164
  %2166 = vmatprep.subr.mxu0 0.0
  %2167 = vmatpush1.msra.mxu0 %v2157
  %2168 = vmatprep.subr.mxu0 0.0
  %2169 = vmatpush1.msra.mxu0 %v2158
  %2170 = vmatprep.subr.mxu0 0.0
  %2171 = vmatpush1.msra.mxu0 %v2159
  %2172 = vmatprep.subr.mxu0 0.0
  %2173 = vmatpush1.msra.mxu0 %v2160
  %2174 = vmatprep.subr.mxu0 0.0
  %2175 = vmatpush1.msra.mxu0 0.0
  %2176 = vmatprep.subr.mxu0 0.0
  %2177 = vmatpush1.msra.mxu0 0.0
  %2178 = vmatprep.subr.mxu0 0.0
  %2179 = vmatpush1.msra.mxu0 0.0
  %2180 = vmatprep.subr.mxu0 0.0
  %2181 = vmatpush1.msra.mxu0 0.0
  %2182 = vmatprep.subr.mxu0 0.0
  %2183 = vmatpush1.msra.mxu0 0.0
  %2184 = vmatprep.subr.mxu0 0.0
  %2185 = vmatpush1.msra.mxu0 0.0
  %2186 = vmatprep.subr.mxu0 0.0
  %2187 = vmatpush1.msra.mxu0 0.0
  %2188 = vmatprep.subr.mxu0 0.0
  %2189 = vmatpush1.msra.mxu0 0.0
  %2190 = vmatprep.subr.mxu0 0.0
  %2191 = vmatpush1.msra.mxu0 0.0
  %2192 = vmatprep.subr.mxu0 0.0
  %2193 = vmatpush1.msra.mxu0 0.0
  %2194 = vmatprep.subr.mxu0 0.0
  %2195 = vmatpush1.msra.mxu0 0.0
  %2196 = vmatprep.subr.mxu0 0.0
  %2197 = vmatpush1.msra.mxu0 0.0
  %2198 = vmatprep.subr.mxu0 0.0
  %2199 = vmatpush1.msra.mxu0 0.0
  %2200 = vmatprep.subr.mxu0 0.0
  %2201 = vmatpush1.msra.mxu0 0.0
  %2202 = vmatprep.subr.mxu0 0.0
  %2203 = vmatpush1.msra.mxu0 0.0
  %2204 = vmatprep.subr.mxu0 0.0
  %2205 = vmatpush1.msra.mxu0 0.0
  %2206 = vmatprep.subr.mxu0 0.0
  %2207 = vmatpush1.msra.mxu0 0.0
  %2208 = vmatprep.subr.mxu0 0.0
  %2209 = vmatpush1.msra.mxu0 0.0
  %2210 = vmatprep.subr.mxu0 0.0
  %2211 = vmatpush1.msra.mxu0 0.0
  %2212 = vmatprep.subr.mxu0 0.0
  %2213 = vmatpush1.msra.mxu0 0.0
  %2214 = vmatprep.subr.mxu0 0.0
  %2215 = vmatpush1.msra.mxu0 0.0
  %2216 = vmatprep.subr.mxu0 0.0
  %2217 = vmatpush1.msra.mxu0 0.0
  %2218 = vmatprep.subr.mxu0 0.0
  %2219 = vmatpush1.msra.mxu0 0.0
  %2220 = vmatprep.subr.mxu0 0.0
  %2221 = vmatpush1.msra.mxu0 0.0
  %2222 = vmatprep.subr.mxu0 0.0
  %2223 = vmatpush1.msra.mxu0 0.0
  %2224 = vmatprep.subr.mxu0 0.0
  %2225 = vmatpush1.msra.mxu0 0.0
  %2226 = vmatprep.subr.mxu0 0.0
  %2227 = vmatpush1.msra.mxu0 0.0
  %2228 = vmatprep.subr.mxu0 0.0
  %2229 = vmatpush1.msra.mxu0 0.0
  %2230 = vmatprep.mubr.f32.mxu0 0.0
  %2231 = vmatmul.mubr.f32.gmra.mrb[0].mxu0 %v1779
  %v2232 = vpop.f32.mrb[0].mxu0
  %v2233 = vadd.f32 %v2165, %v2232
  %v2234 = vpop.f32.mrb[0].mxu0
  %2235 = vmatprep.mubr.f32.mxu0 0.0
  %2236 = vmatmul.mubr.f32.gmra.mrb[0].mxu0 %v1782
  %v2237 = vpop.f32.mrb[0].mxu0
  %v2238 = vadd.f32 %v2165, %v2237
  %v2239 = vpop.f32.mrb[0].mxu0
  %2240 = vmatprep.mubr.f32.mxu0 0.0
  %2241 = vmatmul.mubr.f32.gmra.mrb[0].mxu0 %v1785
  %v2242 = vpop.f32.mrb[0].mxu0
  %v2243 = vadd.f32 %v2165, %v2242
  %v2244 = vpop.f32.mrb[0].mxu0
  %2245 = vmatprep.mubr.f32.mxu0 0.0
  %2246 = vmatmul.mubr.f32.gmra.mrb[0].mxu0 %v1788
  %v2247 = vpop.f32.mrb[0].mxu0
  %v2248 = vadd.f32 %v2165, %v2247
  %v2249 = vpop.f32.mrb[0].mxu0
  %2250 = vdwg.mxu0
  %v2251 = vld [vmem:[%s6 + $0xa0] sm:$0xff]
  %v2252 = vld [vmem:[%s6 + $0xa8] sm:$0xff]
  %v2253 = vld [vmem:[%s6 + $0xb0] sm:$0xff]
  %v2254 = vld [vmem:[%s6 + $0xb8] sm:$0xff]
  %v2255 = vld [vmem:[%s6 + $0x185] sm:$0x1]
  %v2256 = vlaneseq
  %v2257 = vshrl.u32 %v2256, 7
  %v2258 = vsub.s32 0, %v2257
  %v2259 = vrot.slane %v2255, %v2258
  %2260 = vmatprep.subr.mxu0 0.0
  %2261 = vmatpush1.msra.mxu0 %v2251
  %2262 = vmatprep.subr.mxu0 0.0
  %2263 = vmatpush1.msra.mxu0 %v2252
  %2264 = vmatprep.subr.mxu0 0.0
  %2265 = vmatpush1.msra.mxu0 %v2253
  %2266 = vmatprep.subr.mxu0 0.0
  %2267 = vmatpush1.msra.mxu0 %v2254
  %2268 = vmatprep.subr.mxu0 0.0
  %2269 = vmatpush1.msra.mxu0 0.0
  %2270 = vmatprep.subr.mxu0 0.0
  %2271 = vmatpush1.msra.mxu0 0.0
  %2272 = vmatprep.subr.mxu0 0.0
  %2273 = vmatpush1.msra.mxu0 0.0
  %2274 = vmatprep.subr.mxu0 0.0
  %2275 = vmatpush1.msra.mxu0 0.0
  %2276 = vmatprep.subr.mxu0 0.0
  %2277 = vmatpush1.msra.mxu0 0.0
  %2278 = vmatprep.subr.mxu0 0.0
  %2279 = vmatpush1.msra.mxu0 0.0
  %2280 = vmatprep.subr.mxu0 0.0
  %2281 = vmatpush1.msra.mxu0 0.0
  %2282 = vmatprep.subr.mxu0 0.0
  %2283 = vmatpush1.msra.mxu0 0.0
  %2284 = vmatprep.subr.mxu0 0.0
  %2285 = vmatpush1.msra.mxu0 0.0
  %2286 = vmatprep.subr.mxu0 0.0
  %2287 = vmatpush1.msra.mxu0 0.0
  %2288 = vmatprep.subr.mxu0 0.0
  %2289 = vmatpush1.msra.mxu0 0.0
  %2290 = vmatprep.subr.mxu0 0.0
  %2291 = vmatpush1.msra.mxu0 0.0
  %2292 = vmatprep.subr.mxu0 0.0
  %2293 = vmatpush1.msra.mxu0 0.0
  %2294 = vmatprep.subr.mxu0 0.0
  %2295 = vmatpush1.msra.mxu0 0.0
  %2296 = vmatprep.subr.mxu0 0.0
  %2297 = vmatpush1.msra.mxu0 0.0
  %2298 = vmatprep.subr.mxu0 0.0
  %2299 = vmatpush1.msra.mxu0 0.0
  %2300 = vmatprep.subr.mxu0 0.0
  %2301 = vmatpush1.msra.mxu0 0.0
  %2302 = vmatprep.subr.mxu0 0.0
  %2303 = vmatpush1.msra.mxu0 0.0
  %2304 = vmatprep.subr.mxu0 0.0
  %2305 = vmatpush1.msra.mxu0 0.0
  %2306 = vmatprep.subr.mxu0 0.0
  %2307 = vmatpush1.msra.mxu0 0.0
  %2308 = vmatprep.subr.mxu0 0.0
  %2309 = vmatpush1.msra.mxu0 0.0
  %2310 = vmatprep.subr.mxu0 0.0
  %2311 = vmatpush1.msra.mxu0 0.0
  %2312 = vmatprep.subr.mxu0 0.0
  %2313 = vmatpush1.msra.mxu0 0.0
  %2314 = vmatprep.subr.mxu0 0.0
  %2315 = vmatpush1.msra.mxu0 0.0
  %2316 = vmatprep.subr.mxu0 0.0
  %2317 = vmatpush1.msra.mxu0 0.0
  %2318 = vmatprep.subr.mxu0 0.0
  %2319 = vmatpush1.msra.mxu0 0.0
  %2320 = vmatprep.subr.mxu0 0.0
  %2321 = vmatpush1.msra.mxu0 0.0
  %2322 = vmatprep.subr.mxu0 0.0
  %2323 = vmatpush1.msra.mxu0 0.0
  %2324 = vmatprep.mubr.f32.mxu0 0.0
  %2325 = vmatmul.mubr.f32.gmra.mrb[0].mxu0 %v1779
  %v2326 = vpop.f32.mrb[0].mxu0
  %v2327 = vadd.f32 %v2259, %v2326
  %v2328 = vpop.f32.mrb[0].mxu0
  %2329 = vmatprep.mubr.f32.mxu0 0.0
  %2330 = vmatmul.mubr.f32.gmra.mrb[0].mxu0 %v1782
  %v2331 = vpop.f32.mrb[0].mxu0
  %v2332 = vadd.f32 %v2259, %v2331
  %v2333 = vpop.f32.mrb[0].mxu0
  %2334 = vmatprep.mubr.f32.mxu0 0.0
  %2335 = vmatmul.mubr.f32.gmra.mrb[0].mxu0 %v1785
  %v2336 = vpop.f32.mrb[0].mxu0
  %v2337 = vadd.f32 %v2259, %v2336
  %v2338 = vpop.f32.mrb[0].mxu0
  %2339 = vmatprep.mubr.f32.mxu0 0.0
  %2340 = vmatmul.mubr.f32.gmra.mrb[0].mxu0 %v1788
  %v2341 = vpop.f32.mrb[0].mxu0
  %v2342 = vadd.f32 %v2259, %v2341
  %v2343 = vpop.f32.mrb[0].mxu0
  %2344 = vdwg.mxu0
  %v2346 = vsel %vm168, %v1857, 0
  %v2349 = vsel %vm168, %v1862, 0
  %v2352 = vsel %vm168, %v2045, 0
  %v2355 = vsel %vm168, %v2050, 0
  %2357 = vmatprep.subr.mxu0 0.0
  %2358 = vmatpush1.xpose.msra.mxu0 %v2352
  %2359 = vmatprep.subr.mxu0 0.0
  %2360 = vmatpush1.xpose.msra.mxu0 %v2355
  %2361 = vmatprep.subr.mxu0 0.0
  %2362 = vmatpush1.xpose.msra.mxu0 0.0
  %2363 = vmatprep.subr.mxu0 0.0
  %2364 = vmatpush1.xpose.msra.mxu0 0.0
  %2365 = vmatprep.subr.mxu0 0.0
  %2366 = vmatpush1.xpose.msra.mxu0 0.0
  %2367 = vmatprep.subr.mxu0 0.0
  %2368 = vmatpush1.xpose.msra.mxu0 0.0
  %2369 = vmatprep.subr.mxu0 0.0
  %2370 = vmatpush1.xpose.msra.mxu0 0.0
  %2371 = vmatprep.subr.mxu0 0.0
  %2372 = vmatpush1.xpose.msra.mxu0 0.0
  %2373 = vmatprep.subr.mxu0 0.0
  %2374 = vmatpush1.xpose.msra.mxu0 0.0
  %2375 = vmatprep.subr.mxu0 0.0
  %2376 = vmatpush1.xpose.msra.mxu0 0.0
  %2377 = vmatprep.subr.mxu0 0.0
  %2378 = vmatpush1.xpose.msra.mxu0 0.0
  %2379 = vmatprep.subr.mxu0 0.0
  %2380 = vmatpush1.xpose.msra.mxu0 0.0
  %2381 = vmatprep.subr.mxu0 0.0
  %2382 = vmatpush1.xpose.msra.mxu0 0.0
  %2383 = vmatprep.subr.mxu0 0.0
  %2384 = vmatpush1.xpose.msra.mxu0 0.0
  %2385 = vmatprep.subr.mxu0 0.0
  %2386 = vmatpush1.xpose.msra.mxu0 0.0
  %2387 = vmatprep.subr.mxu0 0.0
  %2388 = vmatpush1.xpose.msra.mxu0 0.0
  %2389 = vmatprep.subr.mxu0 0.0
  %2390 = vmatpush1.xpose.msra.mxu0 0.0
  %2391 = vmatprep.subr.mxu0 0.0
  %2392 = vmatpush1.xpose.msra.mxu0 0.0
  %2393 = vmatprep.subr.mxu0 0.0
  %2394 = vmatpush1.xpose.msra.mxu0 0.0
  %2395 = vmatprep.subr.mxu0 0.0
  %2396 = vmatpush1.xpose.msra.mxu0 0.0
  %2397 = vmatprep.subr.mxu0 0.0
  %2398 = vmatpush1.xpose.msra.mxu0 0.0
  %2399 = vmatprep.subr.mxu0 0.0
  %2400 = vmatpush1.xpose.msra.mxu0 0.0
  %2401 = vmatprep.subr.mxu0 0.0
  %2402 = vmatpush1.xpose.msra.mxu0 0.0
  %2403 = vmatprep.subr.mxu0 0.0
  %2404 = vmatpush1.xpose.msra.mxu0 0.0
  %2405 = vmatprep.subr.mxu0 0.0
  %2406 = vmatpush1.xpose.msra.mxu0 0.0
  %2407 = vmatprep.subr.mxu0 0.0
  %2408 = vmatpush1.xpose.msra.mxu0 0.0
  %2409 = vmatprep.subr.mxu0 0.0
  %2410 = vmatpush1.xpose.msra.mxu0 0.0
  %2411 = vmatprep.subr.mxu0 0.0
  %2412 = vmatpush1.xpose.msra.mxu0 0.0
  %2413 = vmatprep.subr.mxu0 0.0
  %2414 = vmatpush1.xpose.msra.mxu0 0.0
  %2415 = vmatprep.subr.mxu0 0.0
  %2416 = vmatpush1.xpose.msra.mxu0 0.0
  %2417 = vmatprep.subr.mxu0 0.0
  %2418 = vmatpush1.xpose.msra.mxu0 0.0
  %2419 = vmatprep.subr.mxu0 0.0
  %2420 = vmatpush1.xpose.msra.mxu0 0.0
  %2421 = vmatprep.mubr.f32.mxu0 0.0
  %2422 = vmatmul.mubr.f32.gmra.mrb[0].mxu0 %v2346
  %v2423 = vpop.f32.mrb[0].mxu0
  %v2424 = vadd.f32 0.0, %v2423
  %v2425 = vpop.f32.mrb[0].mxu0
  %2426 = vmatprep.mubr.f32.mxu0 0.0
  %2427 = vmatmul.mubr.f32.gmra.mrb[0].mxu0 %v2349
  %v2428 = vpop.f32.mrb[0].mxu0
  %v2429 = vadd.f32 0.0, %v2428
  %v2430 = vpop.f32.mrb[0].mxu0
  %2431 = vdwg.mxu0
  %v2433 = vsel %vm168, %v1867, 0
  %v2436 = vsel %vm168, %v1872, 0
  %v2439 = vsel %vm168, %v2055, 0
  %v2442 = vsel %vm168, %v2060, 0
  %2444 = vmatprep.subr.mxu0 0.0
  %2445 = vmatpush1.xpose.msra.mxu0 %v2439
  %2446 = vmatprep.subr.mxu0 0.0
  %2447 = vmatpush1.xpose.msra.mxu0 %v2442
  %2448 = vmatprep.subr.mxu0 0.0
  %2449 = vmatpush1.xpose.msra.mxu0 0.0
  %2450 = vmatprep.subr.mxu0 0.0
  %2451 = vmatpush1.xpose.msra.mxu0 0.0
  %2452 = vmatprep.subr.mxu0 0.0
  %2453 = vmatpush1.xpose.msra.mxu0 0.0
  %2454 = vmatprep.subr.mxu0 0.0
  %2455 = vmatpush1.xpose.msra.mxu0 0.0
  %2456 = vmatprep.subr.mxu0 0.0
  %2457 = vmatpush1.xpose.msra.mxu0 0.0
  %2458 = vmatprep.subr.mxu0 0.0
  %2459 = vmatpush1.xpose.msra.mxu0 0.0
  %2460 = vmatprep.subr.mxu0 0.0
  %2461 = vmatpush1.xpose.msra.mxu0 0.0
  %2462 = vmatprep.subr.mxu0 0.0
  %2463 = vmatpush1.xpose.msra.mxu0 0.0
  %2464 = vmatprep.subr.mxu0 0.0
  %2465 = vmatpush1.xpose.msra.mxu0 0.0
  %2466 = vmatprep.subr.mxu0 0.0
  %2467 = vmatpush1.xpose.msra.mxu0 0.0
  %2468 = vmatprep.subr.mxu0 0.0
  %2469 = vmatpush1.xpose.msra.mxu0 0.0
  %2470 = vmatprep.subr.mxu0 0.0
  %2471 = vmatpush1.xpose.msra.mxu0 0.0
  %2472 = vmatprep.subr.mxu0 0.0
  %2473 = vmatpush1.xpose.msra.mxu0 0.0
  %2474 = vmatprep.subr.mxu0 0.0
  %2475 = vmatpush1.xpose.msra.mxu0 0.0
  %2476 = vmatprep.subr.mxu0 0.0
  %2477 = vmatpush1.xpose.msra.mxu0 0.0
  %2478 = vmatprep.subr.mxu0 0.0
  %2479 = vmatpush1.xpose.msra.mxu0 0.0
  %2480 = vmatprep.subr.mxu0 0.0
  %2481 = vmatpush1.xpose.msra.mxu0 0.0
  %2482 = vmatprep.subr.mxu0 0.0
  %2483 = vmatpush1.xpose.msra.mxu0 0.0
  %2484 = vmatprep.subr.mxu0 0.0
  %2485 = vmatpush1.xpose.msra.mxu0 0.0
  %2486 = vmatprep.subr.mxu0 0.0
  %2487 = vmatpush1.xpose.msra.mxu0 0.0
  %2488 = vmatprep.subr.mxu0 0.0
  %2489 = vmatpush1.xpose.msra.mxu0 0.0
  %2490 = vmatprep.subr.mxu0 0.0
  %2491 = vmatpush1.xpose.msra.mxu0 0.0
  %2492 = vmatprep.subr.mxu0 0.0
  %2493 = vmatpush1.xpose.msra.mxu0 0.0
  %2494 = vmatprep.subr.mxu0 0.0
  %2495 = vmatpush1.xpose.msra.mxu0 0.0
  %2496 = vmatprep.subr.mxu0 0.0
  %2497 = vmatpush1.xpose.msra.mxu0 0.0
  %2498 = vmatprep.subr.mxu0 0.0
  %2499 = vmatpush1.xpose.msra.mxu0 0.0
  %2500 = vmatprep.subr.mxu0 0.0
  %2501 = vmatpush1.xpose.msra.mxu0 0.0
  %2502 = vmatprep.subr.mxu0 0.0
  %2503 = vmatpush1.xpose.msra.mxu0 0.0
  %2504 = vmatprep.subr.mxu0 0.0
  %2505 = vmatpush1.xpose.msra.mxu0 0.0
  %2506 = vmatprep.subr.mxu0 0.0
  %2507 = vmatpush1.xpose.msra.mxu0 0.0
  %2508 = vmatprep.mubr.f32.mxu0 0.0
  %2509 = vmatmul.mubr.f32.gmra.mrb[0].mxu0 %v2433
  %v2510 = vpop.f32.mrb[0].mxu0
  %v2511 = vadd.f32 0.0, %v2510
  %v2512 = vpop.f32.mrb[0].mxu0
  %2513 = vmatprep.mubr.f32.mxu0 0.0
  %2514 = vmatmul.mubr.f32.gmra.mrb[0].mxu0 %v2436
  %v2515 = vpop.f32.mrb[0].mxu0
  %v2516 = vadd.f32 0.0, %v2515
  %v2517 = vpop.f32.mrb[0].mxu0
  %2518 = vdwg.mxu0
  %v2520 = vsel %vm168, %v1951, 0
  %v2523 = vsel %vm168, %v1956, 0
  %v2526 = vsel %vm168, %v2139, 0
  %v2529 = vsel %vm168, %v2144, 0
  %2531 = vmatprep.subr.mxu0 0.0
  %2532 = vmatpush1.xpose.msra.mxu0 %v2526
  %2533 = vmatprep.subr.mxu0 0.0
  %2534 = vmatpush1.xpose.msra.mxu0 %v2529
  %2535 = vmatprep.subr.mxu0 0.0
  %2536 = vmatpush1.xpose.msra.mxu0 0.0
  %2537 = vmatprep.subr.mxu0 0.0
  %2538 = vmatpush1.xpose.msra.mxu0 0.0
  %2539 = vmatprep.subr.mxu0 0.0
  %2540 = vmatpush1.xpose.msra.mxu0 0.0
  %2541 = vmatprep.subr.mxu0 0.0
  %2542 = vmatpush1.xpose.msra.mxu0 0.0
  %2543 = vmatprep.subr.mxu0 0.0
  %2544 = vmatpush1.xpose.msra.mxu0 0.0
  %2545 = vmatprep.subr.mxu0 0.0
  %2546 = vmatpush1.xpose.msra.mxu0 0.0
  %2547 = vmatprep.subr.mxu0 0.0
  %2548 = vmatpush1.xpose.msra.mxu0 0.0
  %2549 = vmatprep.subr.mxu0 0.0
  %2550 = vmatpush1.xpose.msra.mxu0 0.0
  %2551 = vmatprep.subr.mxu0 0.0
  %2552 = vmatpush1.xpose.msra.mxu0 0.0
  %2553 = vmatprep.subr.mxu0 0.0
  %2554 = vmatpush1.xpose.msra.mxu0 0.0
  %2555 = vmatprep.subr.mxu0 0.0
  %2556 = vmatpush1.xpose.msra.mxu0 0.0
  %2557 = vmatprep.subr.mxu0 0.0
  %2558 = vmatpush1.xpose.msra.mxu0 0.0
  %2559 = vmatprep.subr.mxu0 0.0
  %2560 = vmatpush1.xpose.msra.mxu0 0.0
  %2561 = vmatprep.subr.mxu0 0.0
  %2562 = vmatpush1.xpose.msra.mxu0 0.0
  %2563 = vmatprep.subr.mxu0 0.0
  %2564 = vmatpush1.xpose.msra.mxu0 0.0
  %2565 = vmatprep.subr.mxu0 0.0
  %2566 = vmatpush1.xpose.msra.mxu0 0.0
  %2567 = vmatprep.subr.mxu0 0.0
  %2568 = vmatpush1.xpose.msra.mxu0 0.0
  %2569 = vmatprep.subr.mxu0 0.0
  %2570 = vmatpush1.xpose.msra.mxu0 0.0
  %2571 = vmatprep.subr.mxu0 0.0
  %2572 = vmatpush1.xpose.msra.mxu0 0.0
  %2573 = vmatprep.subr.mxu0 0.0
  %2574 = vmatpush1.xpose.msra.mxu0 0.0
  %2575 = vmatprep.subr.mxu0 0.0
  %2576 = vmatpush1.xpose.msra.mxu0 0.0
  %2577 = vmatprep.subr.mxu0 0.0
  %2578 = vmatpush1.xpose.msra.mxu0 0.0
  %2579 = vmatprep.subr.mxu0 0.0
  %2580 = vmatpush1.xpose.msra.mxu0 0.0
  %2581 = vmatprep.subr.mxu0 0.0
  %2582 = vmatpush1.xpose.msra.mxu0 0.0
  %2583 = vmatprep.subr.mxu0 0.0
  %2584 = vmatpush1.xpose.msra.mxu0 0.0
  %2585 = vmatprep.subr.mxu0 0.0
  %2586 = vmatpush1.xpose.msra.mxu0 0.0
  %2587 = vmatprep.subr.mxu0 0.0
  %2588 = vmatpush1.xpose.msra.mxu0 0.0
  %2589 = vmatprep.subr.mxu0 0.0
  %2590 = vmatpush1.xpose.msra.mxu0 0.0
  %2591 = vmatprep.subr.mxu0 0.0
  %2592 = vmatpush1.xpose.msra.mxu0 0.0
  %2593 = vmatprep.subr.mxu0 0.0
  %2594 = vmatpush1.xpose.msra.mxu0 0.0
  %2595 = vmatprep.mubr.f32.mxu0 0.0
  %2596 = vmatmul.mubr.f32.gmra.mrb[0].mxu0 %v2520
  %v2597 = vpop.f32.mrb[0].mxu0
  %v2598 = vadd.f32 0.0, %v2597
  %v2599 = vpop.f32.mrb[0].mxu0
  %2600 = vmatprep.mubr.f32.mxu0 0.0
  %2601 = vmatmul.mubr.f32.gmra.mrb[0].mxu0 %v2523
  %v2602 = vpop.f32.mrb[0].mxu0
  %v2603 = vadd.f32 0.0, %v2602
  %v2604 = vpop.f32.mrb[0].mxu0
  %2605 = vdwg.mxu0
  %v2607 = vsel %vm168, %v1961, 0
  %v2610 = vsel %vm168, %v1966, 0
  %v2613 = vsel %vm168, %v2149, 0
  %v2616 = vsel %vm168, %v2154, 0
  %2618 = vmatprep.subr.mxu0 0.0
  %2619 = vmatpush1.xpose.msra.mxu0 %v2613
  %2620 = vmatprep.subr.mxu0 0.0
  %2621 = vmatpush1.xpose.msra.mxu0 %v2616
  %2622 = vmatprep.subr.mxu0 0.0
  %2623 = vmatpush1.xpose.msra.mxu0 0.0
  %2624 = vmatprep.subr.mxu0 0.0
  %2625 = vmatpush1.xpose.msra.mxu0 0.0
  %2626 = vmatprep.subr.mxu0 0.0
  %2627 = vmatpush1.xpose.msra.mxu0 0.0
  %2628 = vmatprep.subr.mxu0 0.0
  %2629 = vmatpush1.xpose.msra.mxu0 0.0
  %2630 = vmatprep.subr.mxu0 0.0
  %2631 = vmatpush1.xpose.msra.mxu0 0.0
  %2632 = vmatprep.subr.mxu0 0.0
  %2633 = vmatpush1.xpose.msra.mxu0 0.0
  %2634 = vmatprep.subr.mxu0 0.0
  %2635 = vmatpush1.xpose.msra.mxu0 0.0
  %2636 = vmatprep.subr.mxu0 0.0
  %2637 = vmatpush1.xpose.msra.mxu0 0.0
  %2638 = vmatprep.subr.mxu0 0.0
  %2639 = vmatpush1.xpose.msra.mxu0 0.0
  %2640 = vmatprep.subr.mxu0 0.0
  %2641 = vmatpush1.xpose.msra.mxu0 0.0
  %2642 = vmatprep.subr.mxu0 0.0
  %2643 = vmatpush1.xpose.msra.mxu0 0.0
  %2644 = vmatprep.subr.mxu0 0.0
  %2645 = vmatpush1.xpose.msra.mxu0 0.0
  %2646 = vmatprep.subr.mxu0 0.0
  %2647 = vmatpush1.xpose.msra.mxu0 0.0
  %2648 = vmatprep.subr.mxu0 0.0
  %2649 = vmatpush1.xpose.msra.mxu0 0.0
  %2650 = vmatprep.subr.mxu0 0.0
  %2651 = vmatpush1.xpose.msra.mxu0 0.0
  %2652 = vmatprep.subr.mxu0 0.0
  %2653 = vmatpush1.xpose.msra.mxu0 0.0
  %2654 = vmatprep.subr.mxu0 0.0
  %2655 = vmatpush1.xpose.msra.mxu0 0.0
  %2656 = vmatprep.subr.mxu0 0.0
  %2657 = vmatpush1.xpose.msra.mxu0 0.0
  %2658 = vmatprep.subr.mxu0 0.0
  %2659 = vmatpush1.xpose.msra.mxu0 0.0
  %2660 = vmatprep.subr.mxu0 0.0
  %2661 = vmatpush1.xpose.msra.mxu0 0.0
  %2662 = vmatprep.subr.mxu0 0.0
  %2663 = vmatpush1.xpose.msra.mxu0 0.0
  %2664 = vmatprep.subr.mxu0 0.0
  %2665 = vmatpush1.xpose.msra.mxu0 0.0
  %2666 = vmatprep.subr.mxu0 0.0
  %2667 = vmatpush1.xpose.msra.mxu0 0.0
  %2668 = vmatprep.subr.mxu0 0.0
  %2669 = vmatpush1.xpose.msra.mxu0 0.0
  %2670 = vmatprep.subr.mxu0 0.0
  %2671 = vmatpush1.xpose.msra.mxu0 0.0
  %2672 = vmatprep.subr.mxu0 0.0
  %2673 = vmatpush1.xpose.msra.mxu0 0.0
  %2674 = vmatprep.subr.mxu0 0.0
  %2675 = vmatpush1.xpose.msra.mxu0 0.0
  %2676 = vmatprep.subr.mxu0 0.0
  %2677 = vmatpush1.xpose.msra.mxu0 0.0
  %2678 = vmatprep.subr.mxu0 0.0
  %2679 = vmatpush1.xpose.msra.mxu0 0.0
  %2680 = vmatprep.subr.mxu0 0.0
  %2681 = vmatpush1.xpose.msra.mxu0 0.0
  %2682 = vmatprep.mubr.f32.mxu0 0.0
  %2683 = vmatmul.mubr.f32.gmra.mrb[0].mxu0 %v2607
  %v2684 = vpop.f32.mrb[0].mxu0
  %v2685 = vadd.f32 0.0, %v2684
  %v2686 = vpop.f32.mrb[0].mxu0
  %2687 = vmatprep.mubr.f32.mxu0 0.0
  %2688 = vmatmul.mubr.f32.gmra.mrb[0].mxu0 %v2610
  %v2689 = vpop.f32.mrb[0].mxu0
  %v2690 = vadd.f32 0.0, %v2689
  %v2691 = vpop.f32.mrb[0].mxu0
  %2692 = vdwg.mxu0
  %v2693 = vmul.f32 %v2424, 0.25
  %v2694 = vmul.f32 %v2429, 0.25
  %v2695 = vmul.f32 %v2511, 0.25
  %v2696 = vmul.f32 %v2516, 0.25
  %v2697 = vmul.f32 %v2598, 0.25
  %v2698 = vmul.f32 %v2603, 0.25
  %v2699 = vmul.f32 %v2685, 0.25
  %v2700 = vmul.f32 %v2690, 0.25
  %v2703 = vunpack.c.l.s4 1966171168
  %v2704 = vunpack.c.0.s8 %v2703
  %v2705 = vlaneseq
  %v2706 = vshrl.u32 %v2705, 7
  %v2707 = vsub.s32 %v2704, %v2706
  %v2708 = vrot.slane %v1768, %v2707
  %v2709 = vcombine.high %v2708, %v2708
  %v2711 = vunpack.c.l.s4 1966171168
  %v2712 = vunpack.c.0.s8 %v2711
  %v2713 = vlaneseq
  %v2714 = vshrl.u32 %v2713, 7
  %v2715 = vsub.s32 %v2712, %v2714
  %v2716 = vrot.slane %v2708, %v2715
  %v2718 = vunpack.c.l.s4 1966171168
  %v2719 = vunpack.c.0.s8 %v2718
  %v2720 = vlaneseq
  %v2721 = vshrl.u32 %v2720, 7
  %v2722 = vsub.s32 %v2719, %v2721
  %v2723 = vrot.slane %v2709, %v2722
  %v2724 = vcombine.high %v2716, %v2716
  %v2725 = vcombine.high %v2723, %v2723
  %v2726 = vlaneseq
  %v2727 = vshrl.u32 %v2726, 7
  %v2728 = vsub.s32 0, %v2727
  %v2729 = vrot.slane %v2716, %v2728
  %v2730 = vlaneseq
  %v2731 = vshrl.u32 %v2730, 7
  %v2732 = vsub.s32 0, %v2731
  %v2733 = vrot.slane %v2723, %v2732
  %v2734 = vlaneseq
  %v2735 = vshrl.u32 %v2734, 7
  %v2736 = vsub.s32 0, %v2735
  %v2737 = vrot.slane %v2724, %v2736
  %v2738 = vlaneseq
  %v2739 = vshrl.u32 %v2738, 7
  %v2740 = vsub.s32 0, %v2739
  %v2741 = vrot.slane %v2725, %v2740
  %v2746 = vadd.f32 %v2693, %v2729
  %v2747 = vadd.f32 %v2694, %v2729
  %v2748 = vadd.f32 %v2695, %v2733
  %v2749 = vadd.f32 %v2696, %v2733
  %v2750 = vadd.f32 %v2697, %v2737
  %v2751 = vadd.f32 %v2698, %v2737
  %v2752 = vadd.f32 %v2699, %v2741
  %v2753 = vadd.f32 %v2700, %v2741
  %vm2754 = vcmask 130048
  %v2755 = vsel %vm2754, %v2746, -inf
  %2756 = vmax.xlane.f32.xlu0 %v2755
  %v2757 = vpop.xlane.xlu0 %2756
  %v2758 = vsel %vm2754, %v2747, -inf
  %2759 = vmax.xlane.f32.xlu0 %v2758
  %v2760 = vpop.xlane.xlu0 %2759
  %v2761 = vsel %vm2754, %v2748, -inf
  %2762 = vmax.xlane.f32.xlu0 %v2761
  %v2763 = vpop.xlane.xlu0 %2762
  %v2764 = vsel %vm2754, %v2749, -inf
  %2765 = vmax.xlane.f32.xlu0 %v2764
  %v2766 = vpop.xlane.xlu0 %2765
  %v2767 = vsel %vm2754, %v2750, -inf
  %2768 = vmax.xlane.f32.xlu0 %v2767
  %v2769 = vpop.xlane.xlu0 %2768
  %v2770 = vsel %vm2754, %v2751, -inf
  %2771 = vmax.xlane.f32.xlu0 %v2770
  %v2772 = vpop.xlane.xlu0 %2771
  %v2773 = vsel %vm2754, %v2752, -inf
  %2774 = vmax.xlane.f32.xlu0 %v2773
  %v2775 = vpop.xlane.xlu0 %2774
  %v2776 = vsel %vm2754, %v2753, -inf
  %2777 = vmax.xlane.f32.xlu0 %v2776
  %v2778 = vpop.xlane.xlu0 %2777
  %v2779 = vsub.f32 %v2746, %v2757
  %v2780 = vsub.f32 %v2747, %v2760
  %v2781 = vsub.f32 %v2748, %v2763
  %v2782 = vsub.f32 %v2749, %v2766
  %v2783 = vsub.f32 %v2750, %v2769
  %v2784 = vsub.f32 %v2751, %v2772
  %v2785 = vsub.f32 %v2752, %v2775
  %v2786 = vsub.f32 %v2753, %v2778
  %v2787 = vmul.f32 %v2779, 1.442695
  %v2788 = vpow.pop %v2787
  %v2789 = vmul.f32 %v2780, 1.442695
  %v2790 = vpow.pop %v2789
  %v2791 = vmul.f32 %v2781, 1.442695
  %v2792 = vpow.pop %v2791
  %v2793 = vmul.f32 %v2782, 1.442695
  %v2794 = vpow.pop %v2793
  %v2795 = vmul.f32 %v2783, 1.442695
  %v2796 = vpow.pop %v2795
  %v2797 = vmul.f32 %v2784, 1.442695
  %v2798 = vpow.pop %v2797
  %v2799 = vmul.f32 %v2785, 1.442695
  %v2800 = vpow.pop %v2799
  %v2801 = vmul.f32 %v2786, 1.442695
  %v2802 = vpow.pop %v2801
  %v2803 = vsel %vm2754, %v2788, 0.0
  %2804 = vadd.xlane.f32.xlu0 %v2803
  %v2805 = vpop.xlane.xlu0 %2804
  %v2806 = vsel %vm2754, %v2790, 0.0
  %2807 = vadd.xlane.f32.xlu0 %v2806
  %v2808 = vpop.xlane.xlu0 %2807
  %v2809 = vsel %vm2754, %v2792, 0.0
  %2810 = vadd.xlane.f32.xlu0 %v2809
  %v2811 = vpop.xlane.xlu0 %2810
  %v2812 = vsel %vm2754, %v2794, 0.0
  %2813 = vadd.xlane.f32.xlu0 %v2812
  %v2814 = vpop.xlane.xlu0 %2813
  %v2815 = vsel %vm2754, %v2796, 0.0
  %2816 = vadd.xlane.f32.xlu0 %v2815
  %v2817 = vpop.xlane.xlu0 %2816
  %v2818 = vsel %vm2754, %v2798, 0.0
  %2819 = vadd.xlane.f32.xlu0 %v2818
  %v2820 = vpop.xlane.xlu0 %2819
  %v2821 = vsel %vm2754, %v2800, 0.0
  %2822 = vadd.xlane.f32.xlu0 %v2821
  %v2823 = vpop.xlane.xlu0 %2822
  %v2824 = vsel %vm2754, %v2802, 0.0
  %2825 = vadd.xlane.f32.xlu0 %v2824
  %v2826 = vpop.xlane.xlu0 %2825
  %v2827 = vrcp.pop %v2805
  %v2828 = vrcp.pop %v2808
  %v2829 = vrcp.pop %v2811
  %v2830 = vrcp.pop %v2814
  %v2831 = vrcp.pop %v2817
  %v2832 = vrcp.pop %v2820
  %v2833 = vrcp.pop %v2823
  %v2834 = vrcp.pop %v2826
  %v2835 = vmul.f32 %v2788, %v2827
  %v2836 = vmul.f32 %v2790, %v2828
  %v2837 = vmul.f32 %v2792, %v2829
  %v2838 = vmul.f32 %v2794, %v2830
  %v2839 = vmul.f32 %v2796, %v2831
  %v2840 = vmul.f32 %v2798, %v2832
  %v2841 = vmul.f32 %v2800, %v2833
  %v2842 = vmul.f32 %v2802, %v2834
  %v2844 = vsel %vm2754, %v2835, 0
  %v2847 = vsel %vm2754, %v2836, 0
  %2849 = vmatprep.subr.mxu0 0.0
  %2850 = vmatpush1.msra.mxu0 %v2233
  %2851 = vmatprep.subr.mxu0 0.0
  %2852 = vmatpush1.msra.mxu0 %v2238
  %2853 = vmatprep.subr.mxu0 0.0
  %2854 = vmatpush1.msra.mxu0 0.0
  %2855 = vmatprep.subr.mxu0 0.0
  %2856 = vmatpush1.msra.mxu0 0.0
  %2857 = vmatprep.subr.mxu0 0.0
  %2858 = vmatpush1.msra.mxu0 0.0
  %2859 = vmatprep.subr.mxu0 0.0
  %2860 = vmatpush1.msra.mxu0 0.0
  %2861 = vmatprep.subr.mxu0 0.0
  %2862 = vmatpush1.msra.mxu0 0.0
  %2863 = vmatprep.subr.mxu0 0.0
  %2864 = vmatpush1.msra.mxu0 0.0
  %2865 = vmatprep.subr.mxu0 0.0
  %2866 = vmatpush1.msra.mxu0 0.0
  %2867 = vmatprep.subr.mxu0 0.0
  %2868 = vmatpush1.msra.mxu0 0.0
  %2869 = vmatprep.subr.mxu0 0.0
  %2870 = vmatpush1.msra.mxu0 0.0
  %2871 = vmatprep.subr.mxu0 0.0
  %2872 = vmatpush1.msra.mxu0 0.0
  %2873 = vmatprep.subr.mxu0 0.0
  %2874 = vmatpush1.msra.mxu0 0.0
  %2875 = vmatprep.subr.mxu0 0.0
  %2876 = vmatpush1.msra.mxu0 0.0
  %2877 = vmatprep.subr.mxu0 0.0
  %2878 = vmatpush1.msra.mxu0 0.0
  %2879 = vmatprep.subr.mxu0 0.0
  %2880 = vmatpush1.msra.mxu0 0.0
  %2881 = vmatprep.subr.mxu0 0.0
  %2882 = vmatpush1.msra.mxu0 0.0
  %2883 = vmatprep.subr.mxu0 0.0
  %2884 = vmatpush1.msra.mxu0 0.0
  %2885 = vmatprep.subr.mxu0 0.0
  %2886 = vmatpush1.msra.mxu0 0.0
  %2887 = vmatprep.subr.mxu0 0.0
  %2888 = vmatpush1.msra.mxu0 0.0
  %2889 = vmatprep.subr.mxu0 0.0
  %2890 = vmatpush1.msra.mxu0 0.0
  %2891 = vmatprep.subr.mxu0 0.0
  %2892 = vmatpush1.msra.mxu0 0.0
  %2893 = vmatprep.subr.mxu0 0.0
  %2894 = vmatpush1.msra.mxu0 0.0
  %2895 = vmatprep.subr.mxu0 0.0
  %2896 = vmatpush1.msra.mxu0 0.0
  %2897 = vmatprep.subr.mxu0 0.0
  %2898 = vmatpush1.msra.mxu0 0.0
  %2899 = vmatprep.subr.mxu0 0.0
  %2900 = vmatpush1.msra.mxu0 0.0
  %2901 = vmatprep.subr.mxu0 0.0
  %2902 = vmatpush1.msra.mxu0 0.0
  %2903 = vmatprep.subr.mxu0 0.0
  %2904 = vmatpush1.msra.mxu0 0.0
  %2905 = vmatprep.subr.mxu0 0.0
  %2906 = vmatpush1.msra.mxu0 0.0
  %2907 = vmatprep.subr.mxu0 0.0
  %2908 = vmatpush1.msra.mxu0 0.0
  %2909 = vmatprep.subr.mxu0 0.0
  %2910 = vmatpush1.msra.mxu0 0.0
  %2911 = vmatprep.subr.mxu0 0.0
  %2912 = vmatpush1.msra.mxu0 0.0
  %2913 = vmatprep.mubr.f32.mxu0 0.0
  %2914 = vmatmul.mubr.f32.gmra.mrb[0].mxu0 %v2844
  %v2915 = vpop.f32.mrb[0].mxu0
  %v2916 = vadd.f32 0.0, %v2915
  %v2917 = vpop.f32.mrb[0].mxu0
  %2918 = vmatprep.mubr.f32.mxu0 0.0
  %2919 = vmatmul.mubr.f32.gmra.mrb[0].mxu0 %v2847
  %v2920 = vpop.f32.mrb[0].mxu0
  %v2921 = vadd.f32 0.0, %v2920
  %v2922 = vpop.f32.mrb[0].mxu0
  %2923 = vdwg.mxu0
  %v2925 = vsel %vm2754, %v2837, 0
  %v2928 = vsel %vm2754, %v2838, 0
  %2930 = vmatprep.subr.mxu0 0.0
  %2931 = vmatpush1.msra.mxu0 %v2243
  %2932 = vmatprep.subr.mxu0 0.0
  %2933 = vmatpush1.msra.mxu0 %v2248
  %2934 = vmatprep.subr.mxu0 0.0
  %2935 = vmatpush1.msra.mxu0 0.0
  %2936 = vmatprep.subr.mxu0 0.0
  %2937 = vmatpush1.msra.mxu0 0.0
  %2938 = vmatprep.subr.mxu0 0.0
  %2939 = vmatpush1.msra.mxu0 0.0
  %2940 = vmatprep.subr.mxu0 0.0
  %2941 = vmatpush1.msra.mxu0 0.0
  %2942 = vmatprep.subr.mxu0 0.0
  %2943 = vmatpush1.msra.mxu0 0.0
  %2944 = vmatprep.subr.mxu0 0.0
  %2945 = vmatpush1.msra.mxu0 0.0
  %2946 = vmatprep.subr.mxu0 0.0
  %2947 = vmatpush1.msra.mxu0 0.0
  %2948 = vmatprep.subr.mxu0 0.0
  %2949 = vmatpush1.msra.mxu0 0.0
  %2950 = vmatprep.subr.mxu0 0.0
  %2951 = vmatpush1.msra.mxu0 0.0
  %2952 = vmatprep.subr.mxu0 0.0
  %2953 = vmatpush1.msra.mxu0 0.0
  %2954 = vmatprep.subr.mxu0 0.0
  %2955 = vmatpush1.msra.mxu0 0.0
  %2956 = vmatprep.subr.mxu0 0.0
  %2957 = vmatpush1.msra.mxu0 0.0
  %2958 = vmatprep.subr.mxu0 0.0
  %2959 = vmatpush1.msra.mxu0 0.0
  %2960 = vmatprep.subr.mxu0 0.0
  %2961 = vmatpush1.msra.mxu0 0.0
  %2962 = vmatprep.subr.mxu0 0.0
  %2963 = vmatpush1.msra.mxu0 0.0
  %2964 = vmatprep.subr.mxu0 0.0
  %2965 = vmatpush1.msra.mxu0 0.0
  %2966 = vmatprep.subr.mxu0 0.0
  %2967 = vmatpush1.msra.mxu0 0.0
  %2968 = vmatprep.subr.mxu0 0.0
  %2969 = vmatpush1.msra.mxu0 0.0
  %2970 = vmatprep.subr.mxu0 0.0
  %2971 = vmatpush1.msra.mxu0 0.0
  %2972 = vmatprep.subr.mxu0 0.0
  %2973 = vmatpush1.msra.mxu0 0.0
  %2974 = vmatprep.subr.mxu0 0.0
  %2975 = vmatpush1.msra.mxu0 0.0
  %2976 = vmatprep.subr.mxu0 0.0
  %2977 = vmatpush1.msra.mxu0 0.0
  %2978 = vmatprep.subr.mxu0 0.0
  %2979 = vmatpush1.msra.mxu0 0.0
  %2980 = vmatprep.subr.mxu0 0.0
  %2981 = vmatpush1.msra.mxu0 0.0
  %2982 = vmatprep.subr.mxu0 0.0
  %2983 = vmatpush1.msra.mxu0 0.0
  %2984 = vmatprep.subr.mxu0 0.0
  %2985 = vmatpush1.msra.mxu0 0.0
  %2986 = vmatprep.subr.mxu0 0.0
  %2987 = vmatpush1.msra.mxu0 0.0
  %2988 = vmatprep.subr.mxu0 0.0
  %2989 = vmatpush1.msra.mxu0 0.0
  %2990 = vmatprep.subr.mxu0 0.0
  %2991 = vmatpush1.msra.mxu0 0.0
  %2992 = vmatprep.subr.mxu0 0.0
  %2993 = vmatpush1.msra.mxu0 0.0
  %2994 = vmatprep.mubr.f32.mxu0 0.0
  %2995 = vmatmul.mubr.f32.gmra.mrb[0].mxu0 %v2925
  %v2996 = vpop.f32.mrb[0].mxu0
  %v2997 = vadd.f32 0.0, %v2996
  %v2998 = vpop.f32.mrb[0].mxu0
  %2999 = vmatprep.mubr.f32.mxu0 0.0
  %3000 = vmatmul.mubr.f32.gmra.mrb[0].mxu0 %v2928
  %v3001 = vpop.f32.mrb[0].mxu0
  %v3002 = vadd.f32 0.0, %v3001
  %v3003 = vpop.f32.mrb[0].mxu0
  %3004 = vdwg.mxu0
  %v3006 = vsel %vm2754, %v2839, 0
  %v3009 = vsel %vm2754, %v2840, 0
  %3011 = vmatprep.subr.mxu0 0.0
  %3012 = vmatpush1.msra.mxu0 %v2327
  %3013 = vmatprep.subr.mxu0 0.0
  %3014 = vmatpush1.msra.mxu0 %v2332
  %3015 = vmatprep.subr.mxu0 0.0
  %3016 = vmatpush1.msra.mxu0 0.0
  %3017 = vmatprep.subr.mxu0 0.0
  %3018 = vmatpush1.msra.mxu0 0.0
  %3019 = vmatprep.subr.mxu0 0.0
  %3020 = vmatpush1.msra.mxu0 0.0
  %3021 = vmatprep.subr.mxu0 0.0
  %3022 = vmatpush1.msra.mxu0 0.0
  %3023 = vmatprep.subr.mxu0 0.0
  %3024 = vmatpush1.msra.mxu0 0.0
  %3025 = vmatprep.subr.mxu0 0.0
  %3026 = vmatpush1.msra.mxu0 0.0
  %3027 = vmatprep.subr.mxu0 0.0
  %3028 = vmatpush1.msra.mxu0 0.0
  %3029 = vmatprep.subr.mxu0 0.0
  %3030 = vmatpush1.msra.mxu0 0.0
  %3031 = vmatprep.subr.mxu0 0.0
  %3032 = vmatpush1.msra.mxu0 0.0
  %3033 = vmatprep.subr.mxu0 0.0
  %3034 = vmatpush1.msra.mxu0 0.0
  %3035 = vmatprep.subr.mxu0 0.0
  %3036 = vmatpush1.msra.mxu0 0.0
  %3037 = vmatprep.subr.mxu0 0.0
  %3038 = vmatpush1.msra.mxu0 0.0
  %3039 = vmatprep.subr.mxu0 0.0
  %3040 = vmatpush1.msra.mxu0 0.0
  %3041 = vmatprep.subr.mxu0 0.0
  %3042 = vmatpush1.msra.mxu0 0.0
  %3043 = vmatprep.subr.mxu0 0.0
  %3044 = vmatpush1.msra.mxu0 0.0
  %3045 = vmatprep.subr.mxu0 0.0
  %3046 = vmatpush1.msra.mxu0 0.0
  %3047 = vmatprep.subr.mxu0 0.0
  %3048 = vmatpush1.msra.mxu0 0.0
  %3049 = vmatprep.subr.mxu0 0.0
  %3050 = vmatpush1.msra.mxu0 0.0
  %3051 = vmatprep.subr.mxu0 0.0
  %3052 = vmatpush1.msra.mxu0 0.0
  %3053 = vmatprep.subr.mxu0 0.0
  %3054 = vmatpush1.msra.mxu0 0.0
  %3055 = vmatprep.subr.mxu0 0.0
  %3056 = vmatpush1.msra.mxu0 0.0
  %3057 = vmatprep.subr.mxu0 0.0
  %3058 = vmatpush1.msra.mxu0 0.0
  %3059 = vmatprep.subr.mxu0 0.0
  %3060 = vmatpush1.msra.mxu0 0.0
  %3061 = vmatprep.subr.mxu0 0.0
  %3062 = vmatpush1.msra.mxu0 0.0
  %3063 = vmatprep.subr.mxu0 0.0
  %3064 = vmatpush1.msra.mxu0 0.0
  %3065 = vmatprep.subr.mxu0 0.0
  %3066 = vmatpush1.msra.mxu0 0.0
  %3067 = vmatprep.subr.mxu0 0.0
  %3068 = vmatpush1.msra.mxu0 0.0
  %3069 = vmatprep.subr.mxu0 0.0
  %3070 = vmatpush1.msra.mxu0 0.0
  %3071 = vmatprep.subr.mxu0 0.0
  %3072 = vmatpush1.msra.mxu0 0.0
  %3073 = vmatprep.subr.mxu0 0.0
  %3074 = vmatpush1.msra.mxu0 0.0
  %3075 = vmatprep.mubr.f32.mxu0 0.0
  %3076 = vmatmul.mubr.f32.gmra.mrb[0].mxu0 %v3006
  %v3077 = vpop.f32.mrb[0].mxu0
  %v3078 = vadd.f32 0.0, %v3077
  %v3079 = vpop.f32.mrb[0].mxu0
  %3080 = vmatprep.mubr.f32.mxu0 0.0
  %3081 = vmatmul.mubr.f32.gmra.mrb[0].mxu0 %v3009
  %v3082 = vpop.f32.mrb[0].mxu0
  %v3083 = vadd.f32 0.0, %v3082
  %v3084 = vpop.f32.mrb[0].mxu0
  %3085 = vdwg.mxu0
  %v3087 = vsel %vm2754, %v2841, 0
  %v3090 = vsel %vm2754, %v2842, 0
  %3092 = vmatprep.subr.mxu0 0.0
  %3093 = vmatpush1.msra.mxu0 %v2337
  %3094 = vmatprep.subr.mxu0 0.0
  %3095 = vmatpush1.msra.mxu0 %v2342
  %3096 = vmatprep.subr.mxu0 0.0
  %3097 = vmatpush1.msra.mxu0 0.0
  %3098 = vmatprep.subr.mxu0 0.0
  %3099 = vmatpush1.msra.mxu0 0.0
  %3100 = vmatprep.subr.mxu0 0.0
  %3101 = vmatpush1.msra.mxu0 0.0
  %3102 = vmatprep.subr.mxu0 0.0
  %3103 = vmatpush1.msra.mxu0 0.0
  %3104 = vmatprep.subr.mxu0 0.0
  %3105 = vmatpush1.msra.mxu0 0.0
  %3106 = vmatprep.subr.mxu0 0.0
  %3107 = vmatpush1.msra.mxu0 0.0
  %3108 = vmatprep.subr.mxu0 0.0
  %3109 = vmatpush1.msra.mxu0 0.0
  %3110 = vmatprep.subr.mxu0 0.0
  %3111 = vmatpush1.msra.mxu0 0.0
  %3112 = vmatprep.subr.mxu0 0.0
  %3113 = vmatpush1.msra.mxu0 0.0
  %3114 = vmatprep.subr.mxu0 0.0
  %3115 = vmatpush1.msra.mxu0 0.0
  %3116 = vmatprep.subr.mxu0 0.0
  %3117 = vmatpush1.msra.mxu0 0.0
  %3118 = vmatprep.subr.mxu0 0.0
  %3119 = vmatpush1.msra.mxu0 0.0
  %3120 = vmatprep.subr.mxu0 0.0
  %3121 = vmatpush1.msra.mxu0 0.0
  %3122 = vmatprep.subr.mxu0 0.0
  %3123 = vmatpush1.msra.mxu0 0.0
  %3124 = vmatprep.subr.mxu0 0.0
  %3125 = vmatpush1.msra.mxu0 0.0
  %3126 = vmatprep.subr.mxu0 0.0
  %3127 = vmatpush1.msra.mxu0 0.0
  %3128 = vmatprep.subr.mxu0 0.0
  %3129 = vmatpush1.msra.mxu0 0.0
  %3130 = vmatprep.subr.mxu0 0.0
  %3131 = vmatpush1.msra.mxu0 0.0
  %3132 = vmatprep.subr.mxu0 0.0
  %3133 = vmatpush1.msra.mxu0 0.0
  %3134 = vmatprep.subr.mxu0 0.0
  %3135 = vmatpush1.msra.mxu0 0.0
  %3136 = vmatprep.subr.mxu0 0.0
  %3137 = vmatpush1.msra.mxu0 0.0
  %3138 = vmatprep.subr.mxu0 0.0
  %3139 = vmatpush1.msra.mxu0 0.0
  %3140 = vmatprep.subr.mxu0 0.0
  %3141 = vmatpush1.msra.mxu0 0.0
  %3142 = vmatprep.subr.mxu0 0.0
  %3143 = vmatpush1.msra.mxu0 0.0
  %3144 = vmatprep.subr.mxu0 0.0
  %3145 = vmatpush1.msra.mxu0 0.0
  %3146 = vmatprep.subr.mxu0 0.0
  %3147 = vmatpush1.msra.mxu0 0.0
  %3148 = vmatprep.subr.mxu0 0.0
  %3149 = vmatpush1.msra.mxu0 0.0
  %3150 = vmatprep.subr.mxu0 0.0
  %3151 = vmatpush1.msra.mxu0 0.0
  %3152 = vmatprep.subr.mxu0 0.0
  %3153 = vmatpush1.msra.mxu0 0.0
  %3154 = vmatprep.subr.mxu0 0.0
  %3155 = vmatpush1.msra.mxu0 0.0
  %3156 = vmatprep.mubr.f32.mxu0 0.0
  %3157 = vmatmul.mubr.f32.gmra.mrb[0].mxu0 %v3087
  %v3158 = vpop.f32.mrb[0].mxu0
  %v3159 = vadd.f32 0.0, %v3158
  %v3160 = vpop.f32.mrb[0].mxu0
  %3161 = vmatprep.mubr.f32.mxu0 0.0
  %3162 = vmatmul.mubr.f32.gmra.mrb[0].mxu0 %v3090
  %v3163 = vpop.f32.mrb[0].mxu0
  %v3164 = vadd.f32 0.0, %v3163
  %v3165 = vpop.f32.mrb[0].mxu0
  %3166 = vdwg.mxu0
  %v3167 = vld [vmem:[%s6 + $0x186] sm:$0x1]
  %v3168 = vld [vmem:[%s6 + $0xc0] sm:$0xff]
  %v3169 = vld [vmem:[%s6 + $0xc8] sm:$0xff]
  %v3170 = vld [vmem:[%s6 + $0xd0] sm:$0xff]
  %v3171 = vld [vmem:[%s6 + $0xd8] sm:$0xff]
  %v3173 = vsel %vm168, %v2916, 0
  %v3176 = vsel %vm168, %v2921, 0
  %v3179 = vsel %vm168, %v2997, 0
  %v3182 = vsel %vm168, %v3002, 0
  %3184 = vmatprep.subr.mxu0 0.0
  %3185 = vmatpush1.msra.mxu0 %v3168
  %3186 = vmatprep.subr.mxu0 0.0
  %3187 = vmatpush1.msra.mxu0 %v3169
  %3188 = vmatprep.subr.mxu0 0.0
  %3189 = vmatpush1.msra.mxu0 %v3170
  %3190 = vmatprep.subr.mxu0 0.0
  %3191 = vmatpush1.msra.mxu0 %v3171
  %3192 = vmatprep.subr.mxu0 0.0
  %3193 = vmatpush1.msra.mxu0 0.0
  %3194 = vmatprep.subr.mxu0 0.0
  %3195 = vmatpush1.msra.mxu0 0.0
  %3196 = vmatprep.subr.mxu0 0.0
  %3197 = vmatpush1.msra.mxu0 0.0
  %3198 = vmatprep.subr.mxu0 0.0
  %3199 = vmatpush1.msra.mxu0 0.0
  %3200 = vmatprep.subr.mxu0 0.0
  %3201 = vmatpush1.msra.mxu0 0.0
  %3202 = vmatprep.subr.mxu0 0.0
  %3203 = vmatpush1.msra.mxu0 0.0
  %3204 = vmatprep.subr.mxu0 0.0
  %3205 = vmatpush1.msra.mxu0 0.0
  %3206 = vmatprep.subr.mxu0 0.0
  %3207 = vmatpush1.msra.mxu0 0.0
  %3208 = vmatprep.subr.mxu0 0.0
  %3209 = vmatpush1.msra.mxu0 0.0
  %3210 = vmatprep.subr.mxu0 0.0
  %3211 = vmatpush1.msra.mxu0 0.0
  %3212 = vmatprep.subr.mxu0 0.0
  %3213 = vmatpush1.msra.mxu0 0.0
  %3214 = vmatprep.subr.mxu0 0.0
  %3215 = vmatpush1.msra.mxu0 0.0
  %3216 = vmatprep.subr.mxu0 0.0
  %3217 = vmatpush1.msra.mxu0 0.0
  %3218 = vmatprep.subr.mxu0 0.0
  %3219 = vmatpush1.msra.mxu0 0.0
  %3220 = vmatprep.subr.mxu0 0.0
  %3221 = vmatpush1.msra.mxu0 0.0
  %3222 = vmatprep.subr.mxu0 0.0
  %3223 = vmatpush1.msra.mxu0 0.0
  %3224 = vmatprep.subr.mxu0 0.0
  %3225 = vmatpush1.msra.mxu0 0.0
  %3226 = vmatprep.subr.mxu0 0.0
  %3227 = vmatpush1.msra.mxu0 0.0
  %3228 = vmatprep.subr.mxu0 0.0
  %3229 = vmatpush1.msra.mxu0 0.0
  %3230 = vmatprep.subr.mxu0 0.0
  %3231 = vmatpush1.msra.mxu0 0.0
  %3232 = vmatprep.subr.mxu0 0.0
  %3233 = vmatpush1.msra.mxu0 0.0
  %3234 = vmatprep.subr.mxu0 0.0
  %3235 = vmatpush1.msra.mxu0 0.0
  %3236 = vmatprep.subr.mxu0 0.0
  %3237 = vmatpush1.msra.mxu0 0.0
  %3238 = vmatprep.subr.mxu0 0.0
  %3239 = vmatpush1.msra.mxu0 0.0
  %3240 = vmatprep.subr.mxu0 0.0
  %3241 = vmatpush1.msra.mxu0 0.0
  %3242 = vmatprep.subr.mxu0 0.0
  %3243 = vmatpush1.msra.mxu0 0.0
  %3244 = vmatprep.subr.mxu0 0.0
  %3245 = vmatpush1.msra.mxu0 0.0
  %3246 = vmatprep.subr.mxu0 0.0
  %3247 = vmatpush1.msra.mxu0 0.0
  %3248 = vmatprep.mubr.f32.mxu0 0.0
  %3249 = vmatmul.mubr.f32.gmra.mrb[0].mxu0 %v3173
  %v3250 = vpop.f32.mrb[0].mxu0
  %v3251 = vadd.f32 0.0, %v3250
  %v3252 = vpop.f32.mrb[0].mxu0
  %3253 = vmatprep.mubr.f32.mxu0 0.0
  %3254 = vmatmul.mubr.f32.gmra.mrb[0].mxu0 %v3176
  %v3255 = vpop.f32.mrb[0].mxu0
  %v3256 = vadd.f32 0.0, %v3255
  %v3257 = vpop.f32.mrb[0].mxu0
  %3258 = vmatprep.mubr.f32.mxu0 0.0
  %3259 = vmatmul.mubr.f32.gmra.mrb[0].mxu0 %v3179
  %v3260 = vpop.f32.mrb[0].mxu0
  %v3261 = vadd.f32 0.0, %v3260
  %v3262 = vpop.f32.mrb[0].mxu0
  %3263 = vmatprep.mubr.f32.mxu0 0.0
  %3264 = vmatmul.mubr.f32.gmra.mrb[0].mxu0 %v3182
  %v3265 = vpop.f32.mrb[0].mxu0
  %v3266 = vadd.f32 0.0, %v3265
  %v3267 = vpop.f32.mrb[0].mxu0
  %3268 = vdwg.mxu0
  %v3269 = vlaneseq
  %v3270 = vshrl.u32 %v3269, 7
  %v3271 = vsub.s32 0, %v3270
  %v3272 = vrot.slane %v3167, %v3271
  %v3273 = vadd.f32 %v3272, %v3251
  %v3274 = vadd.f32 %v3272, %v3256
  %v3275 = vadd.f32 %v3272, %v3261
  %v3276 = vadd.f32 %v3272, %v3266
  %v3277 = vld [vmem:[%s6 + $0xe0] sm:$0xff]
  %v3278 = vld [vmem:[%s6 + $0xe8] sm:$0xff]
  %v3279 = vld [vmem:[%s6 + $0xf0] sm:$0xff]
  %v3280 = vld [vmem:[%s6 + $0xf8] sm:$0xff]
  %v3282 = vsel %vm168, %v3078, 0
  %v3285 = vsel %vm168, %v3083, 0
  %v3288 = vsel %vm168, %v3159, 0
  %v3291 = vsel %vm168, %v3164, 0
  %3293 = vmatprep.subr.mxu0 0.0
  %3294 = vmatpush1.msra.mxu0 %v3277
  %3295 = vmatprep.subr.mxu0 0.0
  %3296 = vmatpush1.msra.mxu0 %v3278
  %3297 = vmatprep.subr.mxu0 0.0
  %3298 = vmatpush1.msra.mxu0 %v3279
  %3299 = vmatprep.subr.mxu0 0.0
  %3300 = vmatpush1.msra.mxu0 %v3280
  %3301 = vmatprep.subr.mxu0 0.0
  %3302 = vmatpush1.msra.mxu0 0.0
  %3303 = vmatprep.subr.mxu0 0.0
  %3304 = vmatpush1.msra.mxu0 0.0
  %3305 = vmatprep.subr.mxu0 0.0
  %3306 = vmatpush1.msra.mxu0 0.0
  %3307 = vmatprep.subr.mxu0 0.0
  %3308 = vmatpush1.msra.mxu0 0.0
  %3309 = vmatprep.subr.mxu0 0.0
  %3310 = vmatpush1.msra.mxu0 0.0
  %3311 = vmatprep.subr.mxu0 0.0
  %3312 = vmatpush1.msra.mxu0 0.0
  %3313 = vmatprep.subr.mxu0 0.0
  %3314 = vmatpush1.msra.mxu0 0.0
  %3315 = vmatprep.subr.mxu0 0.0
  %3316 = vmatpush1.msra.mxu0 0.0
  %3317 = vmatprep.subr.mxu0 0.0
  %3318 = vmatpush1.msra.mxu0 0.0
  %3319 = vmatprep.subr.mxu0 0.0
  %3320 = vmatpush1.msra.mxu0 0.0
  %3321 = vmatprep.subr.mxu0 0.0
  %3322 = vmatpush1.msra.mxu0 0.0
  %3323 = vmatprep.subr.mxu0 0.0
  %3324 = vmatpush1.msra.mxu0 0.0
  %3325 = vmatprep.subr.mxu0 0.0
  %3326 = vmatpush1.msra.mxu0 0.0
  %3327 = vmatprep.subr.mxu0 0.0
  %3328 = vmatpush1.msra.mxu0 0.0
  %3329 = vmatprep.subr.mxu0 0.0
  %3330 = vmatpush1.msra.mxu0 0.0
  %3331 = vmatprep.subr.mxu0 0.0
  %3332 = vmatpush1.msra.mxu0 0.0
  %3333 = vmatprep.subr.mxu0 0.0
  %3334 = vmatpush1.msra.mxu0 0.0
  %3335 = vmatprep.subr.mxu0 0.0
  %3336 = vmatpush1.msra.mxu0 0.0
  %3337 = vmatprep.subr.mxu0 0.0
  %3338 = vmatpush1.msra.mxu0 0.0
  %3339 = vmatprep.subr.mxu0 0.0
  %3340 = vmatpush1.msra.mxu0 0.0
  %3341 = vmatprep.subr.mxu0 0.0
  %3342 = vmatpush1.msra.mxu0 0.0
  %3343 = vmatprep.subr.mxu0 0.0
  %3344 = vmatpush1.msra.mxu0 0.0
  %3345 = vmatprep.subr.mxu0 0.0
  %3346 = vmatpush1.msra.mxu0 0.0
  %3347 = vmatprep.subr.mxu0 0.0
  %3348 = vmatpush1.msra.mxu0 0.0
  %3349 = vmatprep.subr.mxu0 0.0
  %3350 = vmatpush1.msra.mxu0 0.0
  %3351 = vmatprep.subr.mxu0 0.0
  %3352 = vmatpush1.msra.mxu0 0.0
  %3353 = vmatprep.subr.mxu0 0.0
  %3354 = vmatpush1.msra.mxu0 0.0
  %3355 = vmatprep.subr.mxu0 0.0
  %3356 = vmatpush1.msra.mxu0 0.0
  %3357 = vmatprep.mubr.f32.mxu0 0.0
  %3358 = vmatmul.mubr.f32.gmra.mrb[0].mxu0 %v3282
  %v3359 = vpop.f32.mrb[0].mxu0
  %v3360 = vadd.f32 0.0, %v3359
  %v3361 = vpop.f32.mrb[0].mxu0
  %3362 = vmatprep.mubr.f32.mxu0 0.0
  %3363 = vmatmul.mubr.f32.gmra.mrb[0].mxu0 %v3285
  %v3364 = vpop.f32.mrb[0].mxu0
  %v3365 = vadd.f32 0.0, %v3364
  %v3366 = vpop.f32.mrb[0].mxu0
  %3367 = vmatprep.mubr.f32.mxu0 0.0
  %3368 = vmatmul.mubr.f32.gmra.mrb[0].mxu0 %v3288
  %v3369 = vpop.f32.mrb[0].mxu0
  %v3370 = vadd.f32 0.0, %v3369
  %v3371 = vpop.f32.mrb[0].mxu0
  %3372 = vmatprep.mubr.f32.mxu0 0.0
  %3373 = vmatmul.mubr.f32.gmra.mrb[0].mxu0 %v3291
  %v3374 = vpop.f32.mrb[0].mxu0
  %v3375 = vadd.f32 0.0, %v3374
  %v3376 = vpop.f32.mrb[0].mxu0
  %3377 = vdwg.mxu0
  %v3378 = vadd.f32 %v3273, %v3360
  %v3379 = vadd.f32 %v3274, %v3365
  %v3380 = vadd.f32 %v3275, %v3370
  %v3381 = vadd.f32 %v3276, %v3375
  %v3382 = vadd.f32 %v206, %v3378
  %v3383 = vadd.f32 %v1759, %v3379
  %v3384 = vadd.f32 %v207, %v3380
  %v3385 = vadd.f32 %v1760, %v3381
  %v3386 = vld [vmem:[%s6 + $0x187] sm:$0x1]
  %v3387 = vld [vmem:[%s6 + $0x188] sm:$0x1]
  %v3388 = vsel %vm168, %v3382, 0.0
  %3389 = vadd.xlane.f32.xlu0 %v3388
  %v3390 = vpop.xlane.xlu0 %3389
  %v3391 = vsel %vm168, %v3383, 0.0
  %3392 = vadd.xlane.f32.xlu0 %v3391
  %v3393 = vpop.xlane.xlu0 %3392
  %v3394 = vsel %vm168, %v3384, 0.0
  %3395 = vadd.xlane.f32.xlu0 %v3394
  %v3396 = vpop.xlane.xlu0 %3395
  %v3397 = vsel %vm168, %v3385, 0.0
  %3398 = vadd.xlane.f32.xlu0 %v3397
  %v3399 = vpop.xlane.xlu0 %3398
  %v3400 = vmul.f32 %v3390, %v175
  %v3401 = vmul.f32 %v3393, %v175
  %v3402 = vmul.f32 %v3396, %v175
  %v3403 = vmul.f32 %v3399, %v175
  %v3404 = vsub.f32 %v3382, %v3400
  %v3405 = vsub.f32 %v3383, %v3401
  %v3406 = vsub.f32 %v3384, %v3402
  %v3407 = vsub.f32 %v3385, %v3403
  %v3408 = vmul.f32 %v3404, %v3404
  %v3409 = vmul.f32 %v3405, %v3405
  %v3410 = vmul.f32 %v3406, %v3406
  %v3411 = vmul.f32 %v3407, %v3407
  %v3412 = vsel %vm168, %v3408, 0.0
  %3413 = vadd.xlane.f32.xlu0 %v3412
  %v3414 = vpop.xlane.xlu0 %3413
  %v3415 = vsel %vm168, %v3409, 0.0
  %3416 = vadd.xlane.f32.xlu0 %v3415
  %v3417 = vpop.xlane.xlu0 %3416
  %v3418 = vsel %vm168, %v3410, 0.0
  %3419 = vadd.xlane.f32.xlu0 %v3418
  %v3420 = vpop.xlane.xlu0 %3419
  %v3421 = vsel %vm168, %v3411, 0.0
  %3422 = vadd.xlane.f32.xlu0 %v3421
  %v3423 = vpop.xlane.xlu0 %3422
  %v3424 = vmul.f32 %v3414, %v175
  %v3425 = vmul.f32 %v3417, %v175
  %v3426 = vmul.f32 %v3420, %v175
  %v3427 = vmul.f32 %v3423, %v175
  %v3428 = vadd.f32 %v3424, 1e-12
  %v3429 = vadd.f32 %v3425, 1e-12
  %v3430 = vadd.f32 %v3426, 1e-12
  %v3431 = vadd.f32 %v3427, 1e-12
  %v3432 = vrsqrt.pop %v3428
  %v3433 = vrsqrt.pop %v3429
  %v3434 = vrsqrt.pop %v3430
  %v3435 = vrsqrt.pop %v3431
  %v3436 = vmul.f32 %v3404, %v3432
  %v3437 = vmul.f32 %v3405, %v3433
  %v3438 = vmul.f32 %v3406, %v3434
  %v3439 = vmul.f32 %v3407, %v3435
  %v3440 = vlaneseq
  %v3441 = vshrl.u32 %v3440, 7
  %v3442 = vsub.s32 0, %v3441
  %v3443 = vrot.slane %v3386, %v3442
  %v3444 = vmul.f32 %v3436, %v3443
  %v3445 = vmul.f32 %v3437, %v3443
  %v3446 = vmul.f32 %v3438, %v3443
  %v3447 = vmul.f32 %v3439, %v3443
  %v3448 = vlaneseq
  %v3449 = vshrl.u32 %v3448, 7
  %v3450 = vsub.s32 0, %v3449
  %v3451 = vrot.slane %v3387, %v3450
  %v3452 = vadd.f32 %v3444, %v3451
  %v3453 = vadd.f32 %v3445, %v3451
  %v3454 = vadd.f32 %v3446, %v3451
  %v3455 = vadd.f32 %v3447, %v3451
  %v3456 = vld [vmem:[%s7] sm:$0xff]
  %v3457 = vld [vmem:[%s7 + $0x8] sm:$0xff]
  %v3458 = vld [vmem:[%s7 + $0x10] sm:$0xff]
  %v3459 = vld [vmem:[%s7 + $0x18] sm:$0xff]
  %v3460 = vld [vmem:[%s7 + $0x20] sm:$0x1]
  %v3461 = vlaneseq
  %v3462 = vshrl.u32 %v3461, 7
  %v3463 = vsub.s32 0, %v3462
  %v3464 = vrot.slane %v3460, %v3463
  %v3466 = vsel %vm168, %v3452, 0
  %v3469 = vsel %vm168, %v3453, 0
  %v3472 = vsel %vm168, %v3454, 0
  %v3475 = vsel %vm168, %v3455, 0
  %3477 = vmatprep.subr.mxu0 0.0
  %3478 = vmatpush1.msra.mxu0 %v3456
  %3479 = vmatprep.subr.mxu0 0.0
  %3480 = vmatpush1.msra.mxu0 %v3457
  %3481 = vmatprep.subr.mxu0 0.0
  %3482 = vmatpush1.msra.mxu0 %v3458
  %3483 = vmatprep.subr.mxu0 0.0
  %3484 = vmatpush1.msra.mxu0 %v3459
  %3485 = vmatprep.subr.mxu0 0.0
  %3486 = vmatpush1.msra.mxu0 0.0
  %3487 = vmatprep.subr.mxu0 0.0
  %3488 = vmatpush1.msra.mxu0 0.0
  %3489 = vmatprep.subr.mxu0 0.0
  %3490 = vmatpush1.msra.mxu0 0.0
  %3491 = vmatprep.subr.mxu0 0.0
  %3492 = vmatpush1.msra.mxu0 0.0
  %3493 = vmatprep.subr.mxu0 0.0
  %3494 = vmatpush1.msra.mxu0 0.0
  %3495 = vmatprep.subr.mxu0 0.0
  %3496 = vmatpush1.msra.mxu0 0.0
  %3497 = vmatprep.subr.mxu0 0.0
  %3498 = vmatpush1.msra.mxu0 0.0
  %3499 = vmatprep.subr.mxu0 0.0
  %3500 = vmatpush1.msra.mxu0 0.0
  %3501 = vmatprep.subr.mxu0 0.0
  %3502 = vmatpush1.msra.mxu0 0.0
  %3503 = vmatprep.subr.mxu0 0.0
  %3504 = vmatpush1.msra.mxu0 0.0
  %3505 = vmatprep.subr.mxu0 0.0
  %3506 = vmatpush1.msra.mxu0 0.0
  %3507 = vmatprep.subr.mxu0 0.0
  %3508 = vmatpush1.msra.mxu0 0.0
  %3509 = vmatprep.subr.mxu0 0.0
  %3510 = vmatpush1.msra.mxu0 0.0
  %3511 = vmatprep.subr.mxu0 0.0
  %3512 = vmatpush1.msra.mxu0 0.0
  %3513 = vmatprep.subr.mxu0 0.0
  %3514 = vmatpush1.msra.mxu0 0.0
  %3515 = vmatprep.subr.mxu0 0.0
  %3516 = vmatpush1.msra.mxu0 0.0
  %3517 = vmatprep.subr.mxu0 0.0
  %3518 = vmatpush1.msra.mxu0 0.0
  %3519 = vmatprep.subr.mxu0 0.0
  %3520 = vmatpush1.msra.mxu0 0.0
  %3521 = vmatprep.subr.mxu0 0.0
  %3522 = vmatpush1.msra.mxu0 0.0
  %3523 = vmatprep.subr.mxu0 0.0
  %3524 = vmatpush1.msra.mxu0 0.0
  %3525 = vmatprep.subr.mxu0 0.0
  %3526 = vmatpush1.msra.mxu0 0.0
  %3527 = vmatprep.subr.mxu0 0.0
  %3528 = vmatpush1.msra.mxu0 0.0
  %3529 = vmatprep.subr.mxu0 0.0
  %3530 = vmatpush1.msra.mxu0 0.0
  %3531 = vmatprep.subr.mxu0 0.0
  %3532 = vmatpush1.msra.mxu0 0.0
  %3533 = vmatprep.subr.mxu0 0.0
  %3534 = vmatpush1.msra.mxu0 0.0
  %3535 = vmatprep.subr.mxu0 0.0
  %3536 = vmatpush1.msra.mxu0 0.0
  %3537 = vmatprep.subr.mxu0 0.0
  %3538 = vmatpush1.msra.mxu0 0.0
  %3539 = vmatprep.subr.mxu0 0.0
  %3540 = vmatpush1.msra.mxu0 0.0
  %3541 = vmatprep.mubr.f32.mxu0 0.0
  %3542 = vmatmul.mubr.f32.gmra.mrb[0].mxu0 %v3466
  %v3543 = vpop.f32.mrb[0].mxu0
  %v3544 = vadd.f32 %v3464, %v3543
  %v3545 = vpop.f32.mrb[0].mxu0
  %3546 = vmatprep.mubr.f32.mxu0 0.0
  %3547 = vmatmul.mubr.f32.gmra.mrb[0].mxu0 %v3469
  %v3548 = vpop.f32.mrb[0].mxu0
  %v3549 = vadd.f32 %v3464, %v3548
  %v3550 = vpop.f32.mrb[0].mxu0
  %3551 = vmatprep.mubr.f32.mxu0 0.0
  %3552 = vmatmul.mubr.f32.gmra.mrb[0].mxu0 %v3472
  %v3553 = vpop.f32.mrb[0].mxu0
  %v3554 = vadd.f32 %v3464, %v3553
  %v3555 = vpop.f32.mrb[0].mxu0
  %3556 = vmatprep.mubr.f32.mxu0 0.0
  %3557 = vmatmul.mubr.f32.gmra.mrb[0].mxu0 %v3475
  %v3558 = vpop.f32.mrb[0].mxu0
  %v3559 = vadd.f32 %v3464, %v3558
  %v3560 = vpop.f32.mrb[0].mxu0
  %3561 = vdwg.mxu0
  %v3562 = vmul.f32 %v3544, %v3544
  %v3563 = vmul.f32 %v3549, %v3549
  %v3564 = vmul.f32 %v3554, %v3554
  %v3565 = vmul.f32 %v3559, %v3559
  %v3566 = vmul.f32 %v3544, %v3562
  %v3567 = vmul.f32 %v3549, %v3563
  %v3568 = vmul.f32 %v3554, %v3564
  %v3569 = vmul.f32 %v3559, %v3565
  %v3570 = vmul.f32 %v3566, 0.044715
  %v3571 = vmul.f32 %v3567, 0.044715
  %v3572 = vmul.f32 %v3568, 0.044715
  %v3573 = vmul.f32 %v3569, 0.044715
  %v3574 = vadd.f32 %v3544, %v3570
  %v3575 = vadd.f32 %v3549, %v3571
  %v3576 = vadd.f32 %v3554, %v3572
  %v3577 = vadd.f32 %v3559, %v3573
  %v3578 = vmul.f32 %v3574, 0.7978846
  %v3579 = vmul.f32 %v3575, 0.7978846
  %v3580 = vmul.f32 %v3576, 0.7978846
  %v3581 = vmul.f32 %v3577, 0.7978846
  %v3582 = vtanh.pop %v3578
  %v3583 = vtanh.pop %v3579
  %v3584 = vtanh.pop %v3580
  %v3585 = vtanh.pop %v3581
  %v3586 = vadd.f32 %v3582, 1.0
  %v3587 = vadd.f32 %v3583, 1.0
  %v3588 = vadd.f32 %v3584, 1.0
  %v3589 = vadd.f32 %v3585, 1.0
  %v3590 = vmul.f32 %v3586, 0.5
  %v3591 = vmul.f32 %v3587, 0.5
  %v3592 = vmul.f32 %v3588, 0.5
  %v3593 = vmul.f32 %v3589, 0.5
  %v3594 = vmul.f32 %v3544, %v3590
  %v3595 = vmul.f32 %v3549, %v3591
  %v3596 = vmul.f32 %v3554, %v3592
  %v3597 = vmul.f32 %v3559, %v3593
  %v3598 = vld [vmem:[%s6 + $0x100] sm:$0xff]
  %v3599 = vld [vmem:[%s6 + $0x108] sm:$0xff]
  %v3600 = vld [vmem:[%s6 + $0x110] sm:$0xff]
  %v3601 = vld [vmem:[%s6 + $0x118] sm:$0xff]
  %v3602 = vld [vmem:[%s6 + $0x120] sm:$0xff]
  %v3603 = vld [vmem:[%s6 + $0x128] sm:$0xff]
  %v3604 = vld [vmem:[%s6 + $0x130] sm:$0xff]
  %v3605 = vld [vmem:[%s6 + $0x138] sm:$0xff]
  %v3606 = vld [vmem:[%s6 + $0x140] sm:$0xff]
  %v3607 = vld [vmem:[%s6 + $0x148] sm:$0xff]
  %v3608 = vld [vmem:[%s6 + $0x150] sm:$0xff]
  %v3609 = vld [vmem:[%s6 + $0x158] sm:$0xff]
  %v3610 = vld [vmem:[%s6 + $0x160] sm:$0xff]
  %v3611 = vld [vmem:[%s6 + $0x168] sm:$0xff]
  %v3612 = vld [vmem:[%s6 + $0x170] sm:$0xff]
  %v3613 = vld [vmem:[%s6 + $0x178] sm:$0xff]
  %v3614 = vld [vmem:[%s6 + $0x189] sm:$0x1]
  %v3615 = vlaneseq
  %v3616 = vshrl.u32 %v3615, 7
  %v3617 = vsub.s32 0, %v3616
  %v3618 = vrot.slane %v3614, %v3617
  %3619 = vmatprep.subr.mxu0 0.0
  %3620 = vmatpush1.msra.mxu0 %v3598
  %3621 = vmatprep.subr.mxu0 0.0
  %3622 = vmatpush1.msra.mxu0 %v3599
  %3623 = vmatprep.subr.mxu0 0.0
  %3624 = vmatpush1.msra.mxu0 %v3600
  %3625 = vmatprep.subr.mxu0 0.0
  %3626 = vmatpush1.msra.mxu0 %v3601
  %3627 = vmatprep.subr.mxu0 0.0
  %3628 = vmatpush1.msra.mxu0 %v3602
  %3629 = vmatprep.subr.mxu0 0.0
  %3630 = vmatpush1.msra.mxu0 %v3603
  %3631 = vmatprep.subr.mxu0 0.0
  %3632 = vmatpush1.msra.mxu0 %v3604
  %3633 = vmatprep.subr.mxu0 0.0
  %3634 = vmatpush1.msra.mxu0 %v3605
  %3635 = vmatprep.subr.mxu0 0.0
  %3636 = vmatpush1.msra.mxu0 %v3606
  %3637 = vmatprep.subr.mxu0 0.0
  %3638 = vmatpush1.msra.mxu0 %v3607
  %3639 = vmatprep.subr.mxu0 0.0
  %3640 = vmatpush1.msra.mxu0 %v3608
  %3641 = vmatprep.subr.mxu0 0.0
  %3642 = vmatpush1.msra.mxu0 %v3609
  %3643 = vmatprep.subr.mxu0 0.0
  %3644 = vmatpush1.msra.mxu0 %v3610
  %3645 = vmatprep.subr.mxu0 0.0
  %3646 = vmatpush1.msra.mxu0 %v3611
  %3647 = vmatprep.subr.mxu0 0.0
  %3648 = vmatpush1.msra.mxu0 %v3612
  %3649 = vmatprep.subr.mxu0 0.0
  %3650 = vmatpush1.msra.mxu0 %v3613
  %3651 = vmatprep.subr.mxu0 0.0
  %3652 = vmatpush1.msra.mxu0 0.0
  %3653 = vmatprep.subr.mxu0 0.0
  %3654 = vmatpush1.msra.mxu0 0.0
  %3655 = vmatprep.subr.mxu0 0.0
  %3656 = vmatpush1.msra.mxu0 0.0
  %3657 = vmatprep.subr.mxu0 0.0
  %3658 = vmatpush1.msra.mxu0 0.0
  %3659 = vmatprep.subr.mxu0 0.0
  %3660 = vmatpush1.msra.mxu0 0.0
  %3661 = vmatprep.subr.mxu0 0.0
  %3662 = vmatpush1.msra.mxu0 0.0
  %3663 = vmatprep.subr.mxu0 0.0
  %3664 = vmatpush1.msra.mxu0 0.0
  %3665 = vmatprep.subr.mxu0 0.0
  %3666 = vmatpush1.msra.mxu0 0.0
  %3667 = vmatprep.subr.mxu0 0.0
  %3668 = vmatpush1.msra.mxu0 0.0
  %3669 = vmatprep.subr.mxu0 0.0
  %3670 = vmatpush1.msra.mxu0 0.0
  %3671 = vmatprep.subr.mxu0 0.0
  %3672 = vmatpush1.msra.mxu0 0.0
  %3673 = vmatprep.subr.mxu0 0.0
  %3674 = vmatpush1.msra.mxu0 0.0
  %3675 = vmatprep.subr.mxu0 0.0
  %3676 = vmatpush1.msra.mxu0 0.0
  %3677 = vmatprep.subr.mxu0 0.0
  %3678 = vmatpush1.msra.mxu0 0.0
  %3679 = vmatprep.subr.mxu0 0.0
  %3680 = vmatpush1.msra.mxu0 0.0
  %3681 = vmatprep.subr.mxu0 0.0
  %3682 = vmatpush1.msra.mxu0 0.0
  %3683 = vmatprep.mubr.f32.mxu0 0.0
  %3684 = vmatmul.mubr.f32.gmra.mrb[0].mxu0 %v3594
  %v3685 = vpop.f32.mrb[0].mxu0
  %v3686 = vadd.f32 %v3618, %v3685
  %v3687 = vpop.f32.mrb[0].mxu0
  %3688 = vmatprep.mubr.f32.mxu0 0.0
  %3689 = vmatmul.mubr.f32.gmra.mrb[0].mxu0 %v3595
  %v3690 = vpop.f32.mrb[0].mxu0
  %v3691 = vadd.f32 %v3618, %v3690
  %v3692 = vpop.f32.mrb[0].mxu0
  %3693 = vmatprep.mubr.f32.mxu0 0.0
  %3694 = vmatmul.mubr.f32.gmra.mrb[0].mxu0 %v3596
  %v3695 = vpop.f32.mrb[0].mxu0
  %v3696 = vadd.f32 %v3618, %v3695
  %v3697 = vpop.f32.mrb[0].mxu0
  %3698 = vmatprep.mubr.f32.mxu0 0.0
  %3699 = vmatmul.mubr.f32.gmra.mrb[0].mxu0 %v3597
  %v3700 = vpop.f32.mrb[0].mxu0
  %v3701 = vadd.f32 %v3618, %v3700
  %v3702 = vpop.f32.mrb[0].mxu0
  %3703 = vdwg.mxu0
  %v3704 = vadd.f32 %v3452, %v3686
  %v3705 = vadd.f32 %v3453, %v3691
  %v3706 = vadd.f32 %v3454, %v3696
  %v3707 = vadd.f32 %v3455, %v3701
  %v3708 = vld [vmem:[%s6 + $0x18a] sm:$0x1]
  %v3709 = vld [vmem:[%s6 + $0x18b] sm:$0x1]
  %v3710 = vsel %vm168, %v3704, 0.0
  %3711 = vadd.xlane.f32.xlu0 %v3710
  %v3712 = vpop.xlane.xlu0 %3711
  %v3713 = vsel %vm168, %v3705, 0.0
  %3714 = vadd.xlane.f32.xlu0 %v3713
  %v3715 = vpop.xlane.xlu0 %3714
  %v3716 = vsel %vm168, %v3706, 0.0
  %3717 = vadd.xlane.f32.xlu0 %v3716
  %v3718 = vpop.xlane.xlu0 %3717
  %v3719 = vsel %vm168, %v3707, 0.0
  %3720 = vadd.xlane.f32.xlu0 %v3719
  %v3721 = vpop.xlane.xlu0 %3720
  %v3722 = vmul.f32 %v3712, %v175
  %v3723 = vmul.f32 %v3715, %v175
  %v3724 = vmul.f32 %v3718, %v175
  %v3725 = vmul.f32 %v3721, %v175
  %v3726 = vsub.f32 %v3704, %v3722
  %v3727 = vsub.f32 %v3705, %v3723
  %v3728 = vsub.f32 %v3706, %v3724
  %v3729 = vsub.f32 %v3707, %v3725
  %v3730 = vmul.f32 %v3726, %v3726
  %v3731 = vmul.f32 %v3727, %v3727
  %v3732 = vmul.f32 %v3728, %v3728
  %v3733 = vmul.f32 %v3729, %v3729
  %v3734 = vsel %vm168, %v3730, 0.0
  %3735 = vadd.xlane.f32.xlu0 %v3734
  %v3736 = vpop.xlane.xlu0 %3735
  %v3737 = vsel %vm168, %v3731, 0.0
  %3738 = vadd.xlane.f32.xlu0 %v3737
  %v3739 = vpop.xlane.xlu0 %3738
  %v3740 = vsel %vm168, %v3732, 0.0
  %3741 = vadd.xlane.f32.xlu0 %v3740
  %v3742 = vpop.xlane.xlu0 %3741
  %v3743 = vsel %vm168, %v3733, 0.0
  %3744 = vadd.xlane.f32.xlu0 %v3743
  %v3745 = vpop.xlane.xlu0 %3744
  %v3746 = vmul.f32 %v3736, %v175
  %v3747 = vmul.f32 %v3739, %v175
  %v3748 = vmul.f32 %v3742, %v175
  %v3749 = vmul.f32 %v3745, %v175
  %v3750 = vadd.f32 %v3746, 1e-12
  %v3751 = vadd.f32 %v3747, 1e-12
  %v3752 = vadd.f32 %v3748, 1e-12
  %v3753 = vadd.f32 %v3749, 1e-12
  %v3754 = vrsqrt.pop %v3750
  %v3755 = vrsqrt.pop %v3751
  %v3756 = vrsqrt.pop %v3752
  %v3757 = vrsqrt.pop %v3753
  %v3758 = vmul.f32 %v3726, %v3754
  %v3759 = vmul.f32 %v3727, %v3755
  %v3760 = vmul.f32 %v3728, %v3756
  %v3761 = vmul.f32 %v3729, %v3757
  %v3762 = vlaneseq
  %v3763 = vshrl.u32 %v3762, 7
  %v3764 = vsub.s32 0, %v3763
  %v3765 = vrot.slane %v3708, %v3764
  %v3766 = vmul.f32 %v3758, %v3765
  %v3767 = vmul.f32 %v3759, %v3765
  %v3768 = vmul.f32 %v3760, %v3765
  %v3769 = vmul.f32 %v3761, %v3765
  %v3770 = vlaneseq
  %v3771 = vshrl.u32 %v3770, 7
  %v3772 = vsub.s32 0, %v3771
  %v3773 = vrot.slane %v3709, %v3772
  %v3774 = vadd.f32 %v3766, %v3773
  %v3775 = vadd.f32 %v3767, %v3773
  %v3776 = vadd.f32 %v3768, %v3773
  %v3777 = vadd.f32 %v3769, %v3773
  %v3778 = vld [vmem:[%s6 + $0x190] sm:$0xff]
  %v3779 = vld [vmem:[%s6 + $0x198] sm:$0xff]
  %v3780 = vld [vmem:[%s6 + $0x1a0] sm:$0xff]
  %v3781 = vld [vmem:[%s6 + $0x1a8] sm:$0xff]
  %v3782 = vld [vmem:[%s6 + $0x310] sm:$0x1]
  %v3783 = vlaneseq
  %v3784 = vshrl.u32 %v3783, 7
  %v3785 = vsub.s32 0, %v3784
  %v3786 = vrot.slane %v3782, %v3785
  %v3788 = vsel %vm168, %v3774, 0
  %v3791 = vsel %vm168, %v3775, 0
  %v3794 = vsel %vm168, %v3776, 0
  %v3797 = vsel %vm168, %v3777, 0
  %3799 = vmatprep.subr.mxu0 0.0
  %3800 = vmatpush1.msra.mxu0 %v3778
  %3801 = vmatprep.subr.mxu0 0.0
  %3802 = vmatpush1.msra.mxu0 %v3779
  %3803 = vmatprep.subr.mxu0 0.0
  %3804 = vmatpush1.msra.mxu0 %v3780
  %3805 = vmatprep.subr.mxu0 0.0
  %3806 = vmatpush1.msra.mxu0 %v3781
  %3807 = vmatprep.subr.mxu0 0.0
  %3808 = vmatpush1.msra.mxu0 0.0
  %3809 = vmatprep.subr.mxu0 0.0
  %3810 = vmatpush1.msra.mxu0 0.0
  %3811 = vmatprep.subr.mxu0 0.0
  %3812 = vmatpush1.msra.mxu0 0.0
  %3813 = vmatprep.subr.mxu0 0.0
  %3814 = vmatpush1.msra.mxu0 0.0
  %3815 = vmatprep.subr.mxu0 0.0
  %3816 = vmatpush1.msra.mxu0 0.0
  %3817 = vmatprep.subr.mxu0 0.0
  %3818 = vmatpush1.msra.mxu0 0.0
  %3819 = vmatprep.subr.mxu0 0.0
  %3820 = vmatpush1.msra.mxu0 0.0
  %3821 = vmatprep.subr.mxu0 0.0
  %3822 = vmatpush1.msra.mxu0 0.0
  %3823 = vmatprep.subr.mxu0 0.0
  %3824 = vmatpush1.msra.mxu0 0.0
  %3825 = vmatprep.subr.mxu0 0.0
  %3826 = vmatpush1.msra.mxu0 0.0
  %3827 = vmatprep.subr.mxu0 0.0
  %3828 = vmatpush1.msra.mxu0 0.0
  %3829 = vmatprep.subr.mxu0 0.0
  %3830 = vmatpush1.msra.mxu0 0.0
  %3831 = vmatprep.subr.mxu0 0.0
  %3832 = vmatpush1.msra.mxu0 0.0
  %3833 = vmatprep.subr.mxu0 0.0
  %3834 = vmatpush1.msra.mxu0 0.0
  %3835 = vmatprep.subr.mxu0 0.0
  %3836 = vmatpush1.msra.mxu0 0.0
  %3837 = vmatprep.subr.mxu0 0.0
  %3838 = vmatpush1.msra.mxu0 0.0
  %3839 = vmatprep.subr.mxu0 0.0
  %3840 = vmatpush1.msra.mxu0 0.0
  %3841 = vmatprep.subr.mxu0 0.0
  %3842 = vmatpush1.msra.mxu0 0.0
  %3843 = vmatprep.subr.mxu0 0.0
  %3844 = vmatpush1.msra.mxu0 0.0
  %3845 = vmatprep.subr.mxu0 0.0
  %3846 = vmatpush1.msra.mxu0 0.0
  %3847 = vmatprep.subr.mxu0 0.0
  %3848 = vmatpush1.msra.mxu0 0.0
  %3849 = vmatprep.subr.mxu0 0.0
  %3850 = vmatpush1.msra.mxu0 0.0
  %3851 = vmatprep.subr.mxu0 0.0
  %3852 = vmatpush1.msra.mxu0 0.0
  %3853 = vmatprep.subr.mxu0 0.0
  %3854 = vmatpush1.msra.mxu0 0.0
  %3855 = vmatprep.subr.mxu0 0.0
  %3856 = vmatpush1.msra.mxu0 0.0
  %3857 = vmatprep.subr.mxu0 0.0
  %3858 = vmatpush1.msra.mxu0 0.0
  %3859 = vmatprep.subr.mxu0 0.0
  %3860 = vmatpush1.msra.mxu0 0.0
  %3861 = vmatprep.subr.mxu0 0.0
  %3862 = vmatpush1.msra.mxu0 0.0
  %3863 = vmatprep.mubr.f32.mxu0 0.0
  %3864 = vmatmul.mubr.f32.gmra.mrb[0].mxu0 %v3788
  %v3865 = vpop.f32.mrb[0].mxu0
  %v3866 = vadd.f32 %v3786, %v3865
  %v3867 = vpop.f32.mrb[0].mxu0
  %3868 = vmatprep.mubr.f32.mxu0 0.0
  %3869 = vmatmul.mubr.f32.gmra.mrb[0].mxu0 %v3791
  %v3870 = vpop.f32.mrb[0].mxu0
  %v3871 = vadd.f32 %v3786, %v3870
  %v3872 = vpop.f32.mrb[0].mxu0
  %3873 = vmatprep.mubr.f32.mxu0 0.0
  %3874 = vmatmul.mubr.f32.gmra.mrb[0].mxu0 %v3794
  %v3875 = vpop.f32.mrb[0].mxu0
  %v3876 = vadd.f32 %v3786, %v3875
  %v3877 = vpop.f32.mrb[0].mxu0
  %3878 = vmatprep.mubr.f32.mxu0 0.0
  %3879 = vmatmul.mubr.f32.gmra.mrb[0].mxu0 %v3797
  %v3880 = vpop.f32.mrb[0].mxu0
  %v3881 = vadd.f32 %v3786, %v3880
  %v3882 = vpop.f32.mrb[0].mxu0
  %3883 = vdwg.mxu0
  %v3884 = vld [vmem:[%s6 + $0x1b0] sm:$0xff]
  %v3885 = vld [vmem:[%s6 + $0x1b8] sm:$0xff]
  %v3886 = vld [vmem:[%s6 + $0x1c0] sm:$0xff]
  %v3887 = vld [vmem:[%s6 + $0x1c8] sm:$0xff]
  %v3888 = vld [vmem:[%s6 + $0x311] sm:$0x1]
  %v3889 = vlaneseq
  %v3890 = vshrl.u32 %v3889, 7
  %v3891 = vsub.s32 0, %v3890
  %v3892 = vrot.slane %v3888, %v3891
  %3893 = vmatprep.subr.mxu0 0.0
  %3894 = vmatpush1.msra.mxu0 %v3884
  %3895 = vmatprep.subr.mxu0 0.0
  %3896 = vmatpush1.msra.mxu0 %v3885
  %3897 = vmatprep.subr.mxu0 0.0
  %3898 = vmatpush1.msra.mxu0 %v3886
  %3899 = vmatprep.subr.mxu0 0.0
  %3900 = vmatpush1.msra.mxu0 %v3887
  %3901 = vmatprep.subr.mxu0 0.0
  %3902 = vmatpush1.msra.mxu0 0.0
  %3903 = vmatprep.subr.mxu0 0.0
  %3904 = vmatpush1.msra.mxu0 0.0
  %3905 = vmatprep.subr.mxu0 0.0
  %3906 = vmatpush1.msra.mxu0 0.0
  %3907 = vmatprep.subr.mxu0 0.0
  %3908 = vmatpush1.msra.mxu0 0.0
  %3909 = vmatprep.subr.mxu0 0.0
  %3910 = vmatpush1.msra.mxu0 0.0
  %3911 = vmatprep.subr.mxu0 0.0
  %3912 = vmatpush1.msra.mxu0 0.0
  %3913 = vmatprep.subr.mxu0 0.0
  %3914 = vmatpush1.msra.mxu0 0.0
  %3915 = vmatprep.subr.mxu0 0.0
  %3916 = vmatpush1.msra.mxu0 0.0
  %3917 = vmatprep.subr.mxu0 0.0
  %3918 = vmatpush1.msra.mxu0 0.0
  %3919 = vmatprep.subr.mxu0 0.0
  %3920 = vmatpush1.msra.mxu0 0.0
  %3921 = vmatprep.subr.mxu0 0.0
  %3922 = vmatpush1.msra.mxu0 0.0
  %3923 = vmatprep.subr.mxu0 0.0
  %3924 = vmatpush1.msra.mxu0 0.0
  %3925 = vmatprep.subr.mxu0 0.0
  %3926 = vmatpush1.msra.mxu0 0.0
  %3927 = vmatprep.subr.mxu0 0.0
  %3928 = vmatpush1.msra.mxu0 0.0
  %3929 = vmatprep.subr.mxu0 0.0
  %3930 = vmatpush1.msra.mxu0 0.0
  %3931 = vmatprep.subr.mxu0 0.0
  %3932 = vmatpush1.msra.mxu0 0.0
  %3933 = vmatprep.subr.mxu0 0.0
  %3934 = vmatpush1.msra.mxu0 0.0
  %3935 = vmatprep.subr.mxu0 0.0
  %3936 = vmatpush1.msra.mxu0 0.0
  %3937 = vmatprep.subr.mxu0 0.0
  %3938 = vmatpush1.msra.mxu0 0.0
  %3939 = vmatprep.subr.mxu0 0.0
  %3940 = vmatpush1.msra.mxu0 0.0
  %3941 = vmatprep.subr.mxu0 0.0
  %3942 = vmatpush1.msra.mxu0 0.0
  %3943 = vmatprep.subr.mxu0 0.0
  %3944 = vmatpush1.msra.mxu0 0.0
  %3945 = vmatprep.subr.mxu0 0.0
  %3946 = vmatpush1.msra.mxu0 0.0
  %3947 = vmatprep.subr.mxu0 0.0
  %3948 = vmatpush1.msra.mxu0 0.0
  %3949 = vmatprep.subr.mxu0 0.0
  %3950 = vmatpush1.msra.mxu0 0.0
  %3951 = vmatprep.subr.mxu0 0.0
  %3952 = vmatpush1.msra.mxu0 0.0
  %3953 = vmatprep.subr.mxu0 0.0
  %3954 = vmatpush1.msra.mxu0 0.0
  %3955 = vmatprep.subr.mxu0 0.0
  %3956 = vmatpush1.msra.mxu0 0.0
  %3957 = vmatprep.mubr.f32.mxu0 0.0
  %3958 = vmatmul.mubr.f32.gmra.mrb[0].mxu0 %v3788
  %v3959 = vpop.f32.mrb[0].mxu0
  %v3960 = vadd.f32 %v3892, %v3959
  %v3961 = vpop.f32.mrb[0].mxu0
  %3962 = vmatprep.mubr.f32.mxu0 0.0
  %3963 = vmatmul.mubr.f32.gmra.mrb[0].mxu0 %v3791
  %v3964 = vpop.f32.mrb[0].mxu0
  %v3965 = vadd.f32 %v3892, %v3964
  %v3966 = vpop.f32.mrb[0].mxu0
  %3967 = vmatprep.mubr.f32.mxu0 0.0
  %3968 = vmatmul.mubr.f32.gmra.mrb[0].mxu0 %v3794
  %v3969 = vpop.f32.mrb[0].mxu0
  %v3970 = vadd.f32 %v3892, %v3969
  %v3971 = vpop.f32.mrb[0].mxu0
  %3972 = vmatprep.mubr.f32.mxu0 0.0
  %3973 = vmatmul.mubr.f32.gmra.mrb[0].mxu0 %v3797
  %v3974 = vpop.f32.mrb[0].mxu0
  %v3975 = vadd.f32 %v3892, %v3974
  %v3976 = vpop.f32.mrb[0].mxu0
  %3977 = vdwg.mxu0
  %v3978 = vld [vmem:[%s6 + $0x1d0] sm:$0xff]
  %v3979 = vld [vmem:[%s6 + $0x1d8] sm:$0xff]
  %v3980 = vld [vmem:[%s6 + $0x1e0] sm:$0xff]
  %v3981 = vld [vmem:[%s6 + $0x1e8] sm:$0xff]
  %v3982 = vld [vmem:[%s6 + $0x312] sm:$0x1]
  %v3983 = vlaneseq
  %v3984 = vshrl.u32 %v3983, 7
  %v3985 = vsub.s32 0, %v3984
  %v3986 = vrot.slane %v3982, %v3985
  %3987 = vmatprep.subr.mxu0 0.0
  %3988 = vmatpush1.msra.mxu0 %v3978
  %3989 = vmatprep.subr.mxu0 0.0
  %3990 = vmatpush1.msra.mxu0 %v3979
  %3991 = vmatprep.subr.mxu0 0.0
  %3992 = vmatpush1.msra.mxu0 %v3980
  %3993 = vmatprep.subr.mxu0 0.0
  %3994 = vmatpush1.msra.mxu0 %v3981
  %3995 = vmatprep.subr.mxu0 0.0
  %3996 = vmatpush1.msra.mxu0 0.0
  %3997 = vmatprep.subr.mxu0 0.0
  %3998 = vmatpush1.msra.mxu0 0.0
  %3999 = vmatprep.subr.mxu0 0.0
  %4000 = vmatpush1.msra.mxu0 0.0
  %4001 = vmatprep.subr.mxu0 0.0
  %4002 = vmatpush1.msra.mxu0 0.0
  %4003 = vmatprep.subr.mxu0 0.0
  %4004 = vmatpush1.msra.mxu0 0.0
  %4005 = vmatprep.subr.mxu0 0.0
  %4006 = vmatpush1.msra.mxu0 0.0
  %4007 = vmatprep.subr.mxu0 0.0
  %4008 = vmatpush1.msra.mxu0 0.0
  %4009 = vmatprep.subr.mxu0 0.0
  %4010 = vmatpush1.msra.mxu0 0.0
  %4011 = vmatprep.subr.mxu0 0.0
  %4012 = vmatpush1.msra.mxu0 0.0
  %4013 = vmatprep.subr.mxu0 0.0
  %4014 = vmatpush1.msra.mxu0 0.0
  %4015 = vmatprep.subr.mxu0 0.0
  %4016 = vmatpush1.msra.mxu0 0.0
  %4017 = vmatprep.subr.mxu0 0.0
  %4018 = vmatpush1.msra.mxu0 0.0
  %4019 = vmatprep.subr.mxu0 0.0
  %4020 = vmatpush1.msra.mxu0 0.0
  %4021 = vmatprep.subr.mxu0 0.0
  %4022 = vmatpush1.msra.mxu0 0.0
  %4023 = vmatprep.subr.mxu0 0.0
  %4024 = vmatpush1.msra.mxu0 0.0
  %4025 = vmatprep.subr.mxu0 0.0
  %4026 = vmatpush1.msra.mxu0 0.0
  %4027 = vmatprep.subr.mxu0 0.0
  %4028 = vmatpush1.msra.mxu0 0.0
  %4029 = vmatprep.subr.mxu0 0.0
  %4030 = vmatpush1.msra.mxu0 0.0
  %4031 = vmatprep.subr.mxu0 0.0
  %4032 = vmatpush1.msra.mxu0 0.0
  %4033 = vmatprep.subr.mxu0 0.0
  %4034 = vmatpush1.msra.mxu0 0.0
  %4035 = vmatprep.subr.mxu0 0.0
  %4036 = vmatpush1.msra.mxu0 0.0
  %4037 = vmatprep.subr.mxu0 0.0
  %4038 = vmatpush1.msra.mxu0 0.0
  %4039 = vmatprep.subr.mxu0 0.0
  %4040 = vmatpush1.msra.mxu0 0.0
  %4041 = vmatprep.subr.mxu0 0.0
  %4042 = vmatpush1.msra.mxu0 0.0
  %4043 = vmatprep.subr.mxu0 0.0
  %4044 = vmatpush1.msra.mxu0 0.0
  %4045 = vmatprep.subr.mxu0 0.0
  %4046 = vmatpush1.msra.mxu0 0.0
  %4047 = vmatprep.subr.mxu0 0.0
  %4048 = vmatpush1.msra.mxu0 0.0
  %4049 = vmatprep.subr.mxu0 0.0
  %4050 = vmatpush1.msra.mxu0 0.0
  %4051 = vmatprep.mubr.f32.mxu0 0.0
  %4052 = vmatmul.mubr.f32.gmra.mrb[0].mxu0 %v3788
  %v4053 = vpop.f32.mrb[0].mxu0
  %v4054 = vadd.f32 %v3986, %v4053
  %v4055 = vpop.f32.mrb[0].mxu0
  %4056 = vmatprep.mubr.f32.mxu0 0.0
  %4057 = vmatmul.mubr.f32.gmra.mrb[0].mxu0 %v3791
  %v4058 = vpop.f32.mrb[0].mxu0
  %v4059 = vadd.f32 %v3986, %v4058
  %v4060 = vpop.f32.mrb[0].mxu0
  %4061 = vmatprep.mubr.f32.mxu0 0.0
  %4062 = vmatmul.mubr.f32.gmra.mrb[0].mxu0 %v3794
  %v4063 = vpop.f32.mrb[0].mxu0
  %v4064 = vadd.f32 %v3986, %v4063
  %v4065 = vpop.f32.mrb[0].mxu0
  %4066 = vmatprep.mubr.f32.mxu0 0.0
  %4067 = vmatmul.mubr.f32.gmra.mrb[0].mxu0 %v3797
  %v4068 = vpop.f32.mrb[0].mxu0
  %v4069 = vadd.f32 %v3986, %v4068
  %v4070 = vpop.f32.mrb[0].mxu0
  %4071 = vdwg.mxu0
  %v4072 = vld [vmem:[%s6 + $0x1f0] sm:$0xff]
  %v4073 = vld [vmem:[%s6 + $0x1f8] sm:$0xff]
  %v4074 = vld [vmem:[%s6 + $0x200] sm:$0xff]
  %v4075 = vld [vmem:[%s6 + $0x208] sm:$0xff]
  %v4076 = vld [vmem:[%s6 + $0x313] sm:$0x1]
  %v4077 = vlaneseq
  %v4078 = vshrl.u32 %v4077, 7
  %v4079 = vsub.s32 0, %v4078
  %v4080 = vrot.slane %v4076, %v4079
  %4081 = vmatprep.subr.mxu0 0.0
  %4082 = vmatpush1.msra.mxu0 %v4072
  %4083 = vmatprep.subr.mxu0 0.0
  %4084 = vmatpush1.msra.mxu0 %v4073
  %4085 = vmatprep.subr.mxu0 0.0
  %4086 = vmatpush1.msra.mxu0 %v4074
  %4087 = vmatprep.subr.mxu0 0.0
  %4088 = vmatpush1.msra.mxu0 %v4075
  %4089 = vmatprep.subr.mxu0 0.0
  %4090 = vmatpush1.msra.mxu0 0.0
  %4091 = vmatprep.subr.mxu0 0.0
  %4092 = vmatpush1.msra.mxu0 0.0
  %4093 = vmatprep.subr.mxu0 0.0
  %4094 = vmatpush1.msra.mxu0 0.0
  %4095 = vmatprep.subr.mxu0 0.0
  %4096 = vmatpush1.msra.mxu0 0.0
  %4097 = vmatprep.subr.mxu0 0.0
  %4098 = vmatpush1.msra.mxu0 0.0
  %4099 = vmatprep.subr.mxu0 0.0
  %4100 = vmatpush1.msra.mxu0 0.0
  %4101 = vmatprep.subr.mxu0 0.0
  %4102 = vmatpush1.msra.mxu0 0.0
  %4103 = vmatprep.subr.mxu0 0.0
  %4104 = vmatpush1.msra.mxu0 0.0
  %4105 = vmatprep.subr.mxu0 0.0
  %4106 = vmatpush1.msra.mxu0 0.0
  %4107 = vmatprep.subr.mxu0 0.0
  %4108 = vmatpush1.msra.mxu0 0.0
  %4109 = vmatprep.subr.mxu0 0.0
  %4110 = vmatpush1.msra.mxu0 0.0
  %4111 = vmatprep.subr.mxu0 0.0
  %4112 = vmatpush1.msra.mxu0 0.0
  %4113 = vmatprep.subr.mxu0 0.0
  %4114 = vmatpush1.msra.mxu0 0.0
  %4115 = vmatprep.subr.mxu0 0.0
  %4116 = vmatpush1.msra.mxu0 0.0
  %4117 = vmatprep.subr.mxu0 0.0
  %4118 = vmatpush1.msra.mxu0 0.0
  %4119 = vmatprep.subr.mxu0 0.0
  %4120 = vmatpush1.msra.mxu0 0.0
  %4121 = vmatprep.subr.mxu0 0.0
  %4122 = vmatpush1.msra.mxu0 0.0
  %4123 = vmatprep.subr.mxu0 0.0
  %4124 = vmatpush1.msra.mxu0 0.0
  %4125 = vmatprep.subr.mxu0 0.0
  %4126 = vmatpush1.msra.mxu0 0.0
  %4127 = vmatprep.subr.mxu0 0.0
  %4128 = vmatpush1.msra.mxu0 0.0
  %4129 = vmatprep.subr.mxu0 0.0
  %4130 = vmatpush1.msra.mxu0 0.0
  %4131 = vmatprep.subr.mxu0 0.0
  %4132 = vmatpush1.msra.mxu0 0.0
  %4133 = vmatprep.subr.mxu0 0.0
  %4134 = vmatpush1.msra.mxu0 0.0
  %4135 = vmatprep.subr.mxu0 0.0
  %4136 = vmatpush1.msra.mxu0 0.0
  %4137 = vmatprep.subr.mxu0 0.0
  %4138 = vmatpush1.msra.mxu0 0.0
  %4139 = vmatprep.subr.mxu0 0.0
  %4140 = vmatpush1.msra.mxu0 0.0
  %4141 = vmatprep.subr.mxu0 0.0
  %4142 = vmatpush1.msra.mxu0 0.0
  %4143 = vmatprep.subr.mxu0 0.0
  %4144 = vmatpush1.msra.mxu0 0.0
  %4145 = vmatprep.mubr.f32.mxu0 0.0
  %4146 = vmatmul.mubr.f32.gmra.mrb[0].mxu0 %v3788
  %v4147 = vpop.f32.mrb[0].mxu0
  %v4148 = vadd.f32 %v4080, %v4147
  %v4149 = vpop.f32.mrb[0].mxu0
  %4150 = vmatprep.mubr.f32.mxu0 0.0
  %4151 = vmatmul.mubr.f32.gmra.mrb[0].mxu0 %v3791
  %v4152 = vpop.f32.mrb[0].mxu0
  %v4153 = vadd.f32 %v4080, %v4152
  %v4154 = vpop.f32.mrb[0].mxu0
  %4155 = vmatprep.mubr.f32.mxu0 0.0
  %4156 = vmatmul.mubr.f32.gmra.mrb[0].mxu0 %v3794
  %v4157 = vpop.f32.mrb[0].mxu0
  %v4158 = vadd.f32 %v4080, %v4157
  %v4159 = vpop.f32.mrb[0].mxu0
  %4160 = vmatprep.mubr.f32.mxu0 0.0
  %4161 = vmatmul.mubr.f32.gmra.mrb[0].mxu0 %v3797
  %v4162 = vpop.f32.mrb[0].mxu0
  %v4163 = vadd.f32 %v4080, %v4162
  %v4164 = vpop.f32.mrb[0].mxu0
  %4165 = vdwg.mxu0
  %v4166 = vld [vmem:[%s6 + $0x210] sm:$0xff]
  %v4167 = vld [vmem:[%s6 + $0x218] sm:$0xff]
  %v4168 = vld [vmem:[%s6 + $0x220] sm:$0xff]
  %v4169 = vld [vmem:[%s6 + $0x228] sm:$0xff]
  %v4170 = vld [vmem:[%s6 + $0x314] sm:$0x1]
  %v4171 = vlaneseq
  %v4172 = vshrl.u32 %v4171, 7
  %v4173 = vsub.s32 0, %v4172
  %v4174 = vrot.slane %v4170, %v4173
  %4175 = vmatprep.subr.mxu0 0.0
  %4176 = vmatpush1.msra.mxu0 %v4166
  %4177 = vmatprep.subr.mxu0 0.0
  %4178 = vmatpush1.msra.mxu0 %v4167
  %4179 = vmatprep.subr.mxu0 0.0
  %4180 = vmatpush1.msra.mxu0 %v4168
  %4181 = vmatprep.subr.mxu0 0.0
  %4182 = vmatpush1.msra.mxu0 %v4169
  %4183 = vmatprep.subr.mxu0 0.0
  %4184 = vmatpush1.msra.mxu0 0.0
  %4185 = vmatprep.subr.mxu0 0.0
  %4186 = vmatpush1.msra.mxu0 0.0
  %4187 = vmatprep.subr.mxu0 0.0
  %4188 = vmatpush1.msra.mxu0 0.0
  %4189 = vmatprep.subr.mxu0 0.0
  %4190 = vmatpush1.msra.mxu0 0.0
  %4191 = vmatprep.subr.mxu0 0.0
  %4192 = vmatpush1.msra.mxu0 0.0
  %4193 = vmatprep.subr.mxu0 0.0
  %4194 = vmatpush1.msra.mxu0 0.0
  %4195 = vmatprep.subr.mxu0 0.0
  %4196 = vmatpush1.msra.mxu0 0.0
  %4197 = vmatprep.subr.mxu0 0.0
  %4198 = vmatpush1.msra.mxu0 0.0
  %4199 = vmatprep.subr.mxu0 0.0
  %4200 = vmatpush1.msra.mxu0 0.0
  %4201 = vmatprep.subr.mxu0 0.0
  %4202 = vmatpush1.msra.mxu0 0.0
  %4203 = vmatprep.subr.mxu0 0.0
  %4204 = vmatpush1.msra.mxu0 0.0
  %4205 = vmatprep.subr.mxu0 0.0
  %4206 = vmatpush1.msra.mxu0 0.0
  %4207 = vmatprep.subr.mxu0 0.0
  %4208 = vmatpush1.msra.mxu0 0.0
  %4209 = vmatprep.subr.mxu0 0.0
  %4210 = vmatpush1.msra.mxu0 0.0
  %4211 = vmatprep.subr.mxu0 0.0
  %4212 = vmatpush1.msra.mxu0 0.0
  %4213 = vmatprep.subr.mxu0 0.0
  %4214 = vmatpush1.msra.mxu0 0.0
  %4215 = vmatprep.subr.mxu0 0.0
  %4216 = vmatpush1.msra.mxu0 0.0
  %4217 = vmatprep.subr.mxu0 0.0
  %4218 = vmatpush1.msra.mxu0 0.0
  %4219 = vmatprep.subr.mxu0 0.0
  %4220 = vmatpush1.msra.mxu0 0.0
  %4221 = vmatprep.subr.mxu0 0.0
  %4222 = vmatpush1.msra.mxu0 0.0
  %4223 = vmatprep.subr.mxu0 0.0
  %4224 = vmatpush1.msra.mxu0 0.0
  %4225 = vmatprep.subr.mxu0 0.0
  %4226 = vmatpush1.msra.mxu0 0.0
  %4227 = vmatprep.subr.mxu0 0.0
  %4228 = vmatpush1.msra.mxu0 0.0
  %4229 = vmatprep.subr.mxu0 0.0
  %4230 = vmatpush1.msra.mxu0 0.0
  %4231 = vmatprep.subr.mxu0 0.0
  %4232 = vmatpush1.msra.mxu0 0.0
  %4233 = vmatprep.subr.mxu0 0.0
  %4234 = vmatpush1.msra.mxu0 0.0
  %4235 = vmatprep.subr.mxu0 0.0
  %4236 = vmatpush1.msra.mxu0 0.0
  %4237 = vmatprep.subr.mxu0 0.0
  %4238 = vmatpush1.msra.mxu0 0.0
  %4239 = vmatprep.mubr.f32.mxu0 0.0
  %4240 = vmatmul.mubr.f32.gmra.mrb[0].mxu0 %v3788
  %v4241 = vpop.f32.mrb[0].mxu0
  %v4242 = vadd.f32 %v4174, %v4241
  %v4243 = vpop.f32.mrb[0].mxu0
  %4244 = vmatprep.mubr.f32.mxu0 0.0
  %4245 = vmatmul.mubr.f32.gmra.mrb[0].mxu0 %v3791
  %v4246 = vpop.f32.mrb[0].mxu0
  %v4247 = vadd.f32 %v4174, %v4246
  %v4248 = vpop.f32.mrb[0].mxu0
  %4249 = vmatprep.mubr.f32.mxu0 0.0
  %4250 = vmatmul.mubr.f32.gmra.mrb[0].mxu0 %v3794
  %v4251 = vpop.f32.mrb[0].mxu0
  %v4252 = vadd.f32 %v4174, %v4251
  %v4253 = vpop.f32.mrb[0].mxu0
  %4254 = vmatprep.mubr.f32.mxu0 0.0
  %4255 = vmatmul.mubr.f32.gmra.mrb[0].mxu0 %v3797
  %v4256 = vpop.f32.mrb[0].mxu0
  %v4257 = vadd.f32 %v4174, %v4256
  %v4258 = vpop.f32.mrb[0].mxu0
  %4259 = vdwg.mxu0
  %v4260 = vld [vmem:[%s6 + $0x230] sm:$0xff]
  %v4261 = vld [vmem:[%s6 + $0x238] sm:$0xff]
  %v4262 = vld [vmem:[%s6 + $0x240] sm:$0xff]
  %v4263 = vld [vmem:[%s6 + $0x248] sm:$0xff]
  %v4264 = vld [vmem:[%s6 + $0x315] sm:$0x1]
  %v4265 = vlaneseq
  %v4266 = vshrl.u32 %v4265, 7
  %v4267 = vsub.s32 0, %v4266
  %v4268 = vrot.slane %v4264, %v4267
  %4269 = vmatprep.subr.mxu0 0.0
  %4270 = vmatpush1.msra.mxu0 %v4260
  %4271 = vmatprep.subr.mxu0 0.0
  %4272 = vmatpush1.msra.mxu0 %v4261
  %4273 = vmatprep.subr.mxu0 0.0
  %4274 = vmatpush1.msra.mxu0 %v4262
  %4275 = vmatprep.subr.mxu0 0.0
  %4276 = vmatpush1.msra.mxu0 %v4263
  %4277 = vmatprep.subr.mxu0 0.0
  %4278 = vmatpush1.msra.mxu0 0.0
  %4279 = vmatprep.subr.mxu0 0.0
  %4280 = vmatpush1.msra.mxu0 0.0
  %4281 = vmatprep.subr.mxu0 0.0
  %4282 = vmatpush1.msra.mxu0 0.0
  %4283 = vmatprep.subr.mxu0 0.0
  %4284 = vmatpush1.msra.mxu0 0.0
  %4285 = vmatprep.subr.mxu0 0.0
  %4286 = vmatpush1.msra.mxu0 0.0
  %4287 = vmatprep.subr.mxu0 0.0
  %4288 = vmatpush1.msra.mxu0 0.0
  %4289 = vmatprep.subr.mxu0 0.0
  %4290 = vmatpush1.msra.mxu0 0.0
  %4291 = vmatprep.subr.mxu0 0.0
  %4292 = vmatpush1.msra.mxu0 0.0
  %4293 = vmatprep.subr.mxu0 0.0
  %4294 = vmatpush1.msra.mxu0 0.0
  %4295 = vmatprep.subr.mxu0 0.0
  %4296 = vmatpush1.msra.mxu0 0.0
  %4297 = vmatprep.subr.mxu0 0.0
  %4298 = vmatpush1.msra.mxu0 0.0
  %4299 = vmatprep.subr.mxu0 0.0
  %4300 = vmatpush1.msra.mxu0 0.0
  %4301 = vmatprep.subr.mxu0 0.0
  %4302 = vmatpush1.msra.mxu0 0.0
  %4303 = vmatprep.subr.mxu0 0.0
  %4304 = vmatpush1.msra.mxu0 0.0
  %4305 = vmatprep.subr.mxu0 0.0
  %4306 = vmatpush1.msra.mxu0 0.0
  %4307 = vmatprep.subr.mxu0 0.0
  %4308 = vmatpush1.msra.mxu0 0.0
  %4309 = vmatprep.subr.mxu0 0.0
  %4310 = vmatpush1.msra.mxu0 0.0
  %4311 = vmatprep.subr.mxu0 0.0
  %4312 = vmatpush1.msra.mxu0 0.0
  %4313 = vmatprep.subr.mxu0 0.0
  %4314 = vmatpush1.msra.mxu0 0.0
  %4315 = vmatprep.subr.mxu0 0.0
  %4316 = vmatpush1.msra.mxu0 0.0
  %4317 = vmatprep.subr.mxu0 0.0
  %4318 = vmatpush1.msra.mxu0 0.0
  %4319 = vmatprep.subr.mxu0 0.0
  %4320 = vmatpush1.msra.mxu0 0.0
  %4321 = vmatprep.subr.mxu0 0.0
  %4322 = vmatpush1.msra.mxu0 0.0
  %4323 = vmatprep.subr.mxu0 0.0
  %4324 = vmatpush1.msra.mxu0 0.0
  %4325 = vmatprep.subr.mxu0 0.0
  %4326 = vmatpush1.msra.mxu0 0.0
  %4327 = vmatprep.subr.mxu0 0.0
  %4328 = vmatpush1.msra.mxu0 0.0
  %4329 = vmatprep.subr.mxu0 0.0
  %4330 = vmatpush1.msra.mxu0 0.0
  %4331 = vmatprep.subr.mxu0 0.0
  %4332 = vmatpush1.msra.mxu0 0.0
  %4333 = vmatprep.mubr.f32.mxu0 0.0
  %4334 = vmatmul.mubr.f32.gmra.mrb[0].mxu0 %v3788
  %v4335 = vpop.f32.mrb[0].mxu0
  %v4336 = vadd.f32 %v4268, %v4335
  %v4337 = vpop.f32.mrb[0].mxu0
  %4338 = vmatprep.mubr.f32.mxu0 0.0
  %4339 = vmatmul.mubr.f32.gmra.mrb[0].mxu0 %v3791
  %v4340 = vpop.f32.mrb[0].mxu0
  %v4341 = vadd.f32 %v4268, %v4340
  %v4342 = vpop.f32.mrb[0].mxu0
  %4343 = vmatprep.mubr.f32.mxu0 0.0
  %4344 = vmatmul.mubr.f32.gmra.mrb[0].mxu0 %v3794
  %v4345 = vpop.f32.mrb[0].mxu0
  %v4346 = vadd.f32 %v4268, %v4345
  %v4347 = vpop.f32.mrb[0].mxu0
  %4348 = vmatprep.mubr.f32.mxu0 0.0
  %4349 = vmatmul.mubr.f32.gmra.mrb[0].mxu0 %v3797
  %v4350 = vpop.f32.mrb[0].mxu0
  %v4351 = vadd.f32 %v4268, %v4350
  %v4352 = vpop.f32.mrb[0].mxu0
  %4353 = vdwg.mxu0
  %v4355 = vsel %vm168, %v3866, 0
  %v4358 = vsel %vm168, %v3871, 0
  %v4361 = vsel %vm168, %v4054, 0
  %v4364 = vsel %vm168, %v4059, 0
  %4366 = vmatprep.subr.mxu0 0.0
  %4367 = vmatpush1.xpose.msra.mxu0 %v4361
  %4368 = vmatprep.subr.mxu0 0.0
  %4369 = vmatpush1.xpose.msra.mxu0 %v4364
  %4370 = vmatprep.subr.mxu0 0.0
  %4371 = vmatpush1.xpose.msra.mxu0 0.0
  %4372 = vmatprep.subr.mxu0 0.0
  %4373 = vmatpush1.xpose.msra.mxu0 0.0
  %4374 = vmatprep.subr.mxu0 0.0
  %4375 = vmatpush1.xpose.msra.mxu0 0.0
  %4376 = vmatprep.subr.mxu0 0.0
  %4377 = vmatpush1.xpose.msra.mxu0 0.0
  %4378 = vmatprep.subr.mxu0 0.0
  %4379 = vmatpush1.xpose.msra.mxu0 0.0
  %4380 = vmatprep.subr.mxu0 0.0
  %4381 = vmatpush1.xpose.msra.mxu0 0.0
  %4382 = vmatprep.subr.mxu0 0.0
  %4383 = vmatpush1.xpose.msra.mxu0 0.0
  %4384 = vmatprep.subr.mxu0 0.0
  %4385 = vmatpush1.xpose.msra.mxu0 0.0
  %4386 = vmatprep.subr.mxu0 0.0
  %4387 = vmatpush1.xpose.msra.mxu0 0.0
  %4388 = vmatprep.subr.mxu0 0.0
  %4389 = vmatpush1.xpose.msra.mxu0 0.0
  %4390 = vmatprep.subr.mxu0 0.0
  %4391 = vmatpush1.xpose.msra.mxu0 0.0
  %4392 = vmatprep.subr.mxu0 0.0
  %4393 = vmatpush1.xpose.msra.mxu0 0.0
  %4394 = vmatprep.subr.mxu0 0.0
  %4395 = vmatpush1.xpose.msra.mxu0 0.0
  %4396 = vmatprep.subr.mxu0 0.0
  %4397 = vmatpush1.xpose.msra.mxu0 0.0
  %4398 = vmatprep.subr.mxu0 0.0
  %4399 = vmatpush1.xpose.msra.mxu0 0.0
  %4400 = vmatprep.subr.mxu0 0.0
  %4401 = vmatpush1.xpose.msra.mxu0 0.0
  %4402 = vmatprep.subr.mxu0 0.0
  %4403 = vmatpush1.xpose.msra.mxu0 0.0
  %4404 = vmatprep.subr.mxu0 0.0
  %4405 = vmatpush1.xpose.msra.mxu0 0.0
  %4406 = vmatprep.subr.mxu0 0.0
  %4407 = vmatpush1.xpose.msra.mxu0 0.0
  %4408 = vmatprep.subr.mxu0 0.0
  %4409 = vmatpush1.xpose.msra.mxu0 0.0
  %4410 = vmatprep.subr.mxu0 0.0
  %4411 = vmatpush1.xpose.msra.mxu0 0.0
  %4412 = vmatprep.subr.mxu0 0.0
  %4413 = vmatpush1.xpose.msra.mxu0 0.0
  %4414 = vmatprep.subr.mxu0 0.0
  %4415 = vmatpush1.xpose.msra.mxu0 0.0
  %4416 = vmatprep.subr.mxu0 0.0
  %4417 = vmatpush1.xpose.msra.mxu0 0.0
  %4418 = vmatprep.subr.mxu0 0.0
  %4419 = vmatpush1.xpose.msra.mxu0 0.0
  %4420 = vmatprep.subr.mxu0 0.0
  %4421 = vmatpush1.xpose.msra.mxu0 0.0
  %4422 = vmatprep.subr.mxu0 0.0
  %4423 = vmatpush1.xpose.msra.mxu0 0.0
  %4424 = vmatprep.subr.mxu0 0.0
  %4425 = vmatpush1.xpose.msra.mxu0 0.0
  %4426 = vmatprep.subr.mxu0 0.0
  %4427 = vmatpush1.xpose.msra.mxu0 0.0
  %4428 = vmatprep.subr.mxu0 0.0
  %4429 = vmatpush1.xpose.msra.mxu0 0.0
  %4430 = vmatprep.mubr.f32.mxu0 0.0
  %4431 = vmatmul.mubr.f32.gmra.mrb[0].mxu0 %v4355
  %v4432 = vpop.f32.mrb[0].mxu0
  %v4433 = vadd.f32 0.0, %v4432
  %v4434 = vpop.f32.mrb[0].mxu0
  %4435 = vmatprep.mubr.f32.mxu0 0.0
  %4436 = vmatmul.mubr.f32.gmra.mrb[0].mxu0 %v4358
  %v4437 = vpop.f32.mrb[0].mxu0
  %v4438 = vadd.f32 0.0, %v4437
  %v4439 = vpop.f32.mrb[0].mxu0
  %4440 = vdwg.mxu0
  %v4442 = vsel %vm168, %v3876, 0
  %v4445 = vsel %vm168, %v3881, 0
  %v4448 = vsel %vm168, %v4064, 0
  %v4451 = vsel %vm168, %v4069, 0
  %4453 = vmatprep.subr.mxu0 0.0
  %4454 = vmatpush1.xpose.msra.mxu0 %v4448
  %4455 = vmatprep.subr.mxu0 0.0
  %4456 = vmatpush1.xpose.msra.mxu0 %v4451
  %4457 = vmatprep.subr.mxu0 0.0
  %4458 = vmatpush1.xpose.msra.mxu0 0.0
  %4459 = vmatprep.subr.mxu0 0.0
  %4460 = vmatpush1.xpose.msra.mxu0 0.0
  %4461 = vmatprep.subr.mxu0 0.0
  %4462 = vmatpush1.xpose.msra.mxu0 0.0
  %4463 = vmatprep.subr.mxu0 0.0
  %4464 = vmatpush1.xpose.msra.mxu0 0.0
  %4465 = vmatprep.subr.mxu0 0.0
  %4466 = vmatpush1.xpose.msra.mxu0 0.0
  %4467 = vmatprep.subr.mxu0 0.0
  %4468 = vmatpush1.xpose.msra.mxu0 0.0
  %4469 = vmatprep.subr.mxu0 0.0
  %4470 = vmatpush1.xpose.msra.mxu0 0.0
  %4471 = vmatprep.subr.mxu0 0.0
  %4472 = vmatpush1.xpose.msra.mxu0 0.0
  %4473 = vmatprep.subr.mxu0 0.0
  %4474 = vmatpush1.xpose.msra.mxu0 0.0
  %4475 = vmatprep.subr.mxu0 0.0
  %4476 = vmatpush1.xpose.msra.mxu0 0.0
  %4477 = vmatprep.subr.mxu0 0.0
  %4478 = vmatpush1.xpose.msra.mxu0 0.0
  %4479 = vmatprep.subr.mxu0 0.0
  %4480 = vmatpush1.xpose.msra.mxu0 0.0
  %4481 = vmatprep.subr.mxu0 0.0
  %4482 = vmatpush1.xpose.msra.mxu0 0.0
  %4483 = vmatprep.subr.mxu0 0.0
  %4484 = vmatpush1.xpose.msra.mxu0 0.0
  %4485 = vmatprep.subr.mxu0 0.0
  %4486 = vmatpush1.xpose.msra.mxu0 0.0
  %4487 = vmatprep.subr.mxu0 0.0
  %4488 = vmatpush1.xpose.msra.mxu0 0.0
  %4489 = vmatprep.subr.mxu0 0.0
  %4490 = vmatpush1.xpose.msra.mxu0 0.0
  %4491 = vmatprep.subr.mxu0 0.0
  %4492 = vmatpush1.xpose.msra.mxu0 0.0
  %4493 = vmatprep.subr.mxu0 0.0
  %4494 = vmatpush1.xpose.msra.mxu0 0.0
  %4495 = vmatprep.subr.mxu0 0.0
  %4496 = vmatpush1.xpose.msra.mxu0 0.0
  %4497 = vmatprep.subr.mxu0 0.0
  %4498 = vmatpush1.xpose.msra.mxu0 0.0
  %4499 = vmatprep.subr.mxu0 0.0
  %4500 = vmatpush1.xpose.msra.mxu0 0.0
  %4501 = vmatprep.subr.mxu0 0.0
  %4502 = vmatpush1.xpose.msra.mxu0 0.0
  %4503 = vmatprep.subr.mxu0 0.0
  %4504 = vmatpush1.xpose.msra.mxu0 0.0
  %4505 = vmatprep.subr.mxu0 0.0
  %4506 = vmatpush1.xpose.msra.mxu0 0.0
  %4507 = vmatprep.subr.mxu0 0.0
  %4508 = vmatpush1.xpose.msra.mxu0 0.0
  %4509 = vmatprep.subr.mxu0 0.0
  %4510 = vmatpush1.xpose.msra.mxu0 0.0
  %4511 = vmatprep.subr.mxu0 0.0
  %4512 = vmatpush1.xpose.msra.mxu0 0.0
  %4513 = vmatprep.subr.mxu0 0.0
  %4514 = vmatpush1.xpose.msra.mxu0 0.0
  %4515 = vmatprep.subr.mxu0 0.0
  %4516 = vmatpush1.xpose.msra.mxu0 0.0
  %4517 = vmatprep.mubr.f32.mxu0 0.0
  %4518 = vmatmul.mubr.f32.gmra.mrb[0].mxu0 %v4442
  %v4519 = vpop.f32.mrb[0].mxu0
  %v4520 = vadd.f32 0.0, %v4519
  %v4521 = vpop.f32.mrb[0].mxu0
  %4522 = vmatprep.mubr.f32.mxu0 0.0
  %4523 = vmatmul.mubr.f32.gmra.mrb[0].mxu0 %v4445
  %v4524 = vpop.f32.mrb[0].mxu0
  %v4525 = vadd.f32 0.0, %v4524
  %v4526 = vpop.f32.mrb[0].mxu0
  %4527 = vdwg.mxu0
  %v4529 = vsel %vm168, %v3960, 0
  %v4532 = vsel %vm168, %v3965, 0
  %v4535 = vsel %vm168, %v4148, 0
  %v4538 = vsel %vm168, %v4153, 0
  %4540 = vmatprep.subr.mxu0 0.0
  %4541 = vmatpush1.xpose.msra.mxu0 %v4535
  %4542 = vmatprep.subr.mxu0 0.0
  %4543 = vmatpush1.xpose.msra.mxu0 %v4538
  %4544 = vmatprep.subr.mxu0 0.0
  %4545 = vmatpush1.xpose.msra.mxu0 0.0
  %4546 = vmatprep.subr.mxu0 0.0
  %4547 = vmatpush1.xpose.msra.mxu0 0.0
  %4548 = vmatprep.subr.mxu0 0.0
  %4549 = vmatpush1.xpose.msra.mxu0 0.0
  %4550 = vmatprep.subr.mxu0 0.0
  %4551 = vmatpush1.xpose.msra.mxu0 0.0
  %4552 = vmatprep.subr.mxu0 0.0
  %4553 = vmatpush1.xpose.msra.mxu0 0.0
  %4554 = vmatprep.subr.mxu0 0.0
  %4555 = vmatpush1.xpose.msra.mxu0 0.0
  %4556 = vmatprep.subr.mxu0 0.0
  %4557 = vmatpush1.xpose.msra.mxu0 0.0
  %4558 = vmatprep.subr.mxu0 0.0
  %4559 = vmatpush1.xpose.msra.mxu0 0.0
  %4560 = vmatprep.subr.mxu0 0.0
  %4561 = vmatpush1.xpose.msra.mxu0 0.0
  %4562 = vmatprep.subr.mxu0 0.0
  %4563 = vmatpush1.xpose.msra.mxu0 0.0
  %4564 = vmatprep.subr.mxu0 0.0
  %4565 = vmatpush1.xpose.msra.mxu0 0.0
  %4566 = vmatprep.subr.mxu0 0.0
  %4567 = vmatpush1.xpose.msra.mxu0 0.0
  %4568 = vmatprep.subr.mxu0 0.0
  %4569 = vmatpush1.xpose.msra.mxu0 0.0
  %4570 = vmatprep.subr.mxu0 0.0
  %4571 = vmatpush1.xpose.msra.mxu0 0.0
  %4572 = vmatprep.subr.mxu0 0.0
  %4573 = vmatpush1.xpose.msra.mxu0 0.0
  %4574 = vmatprep.subr.mxu0 0.0
  %4575 = vmatpush1.xpose.msra.mxu0 0.0
  %4576 = vmatprep.subr.mxu0 0.0
  %4577 = vmatpush1.xpose.msra.mxu0 0.0
  %4578 = vmatprep.subr.mxu0 0.0
  %4579 = vmatpush1.xpose.msra.mxu0 0.0
  %4580 = vmatprep.subr.mxu0 0.0
  %4581 = vmatpush1.xpose.msra.mxu0 0.0
  %4582 = vmatprep.subr.mxu0 0.0
  %4583 = vmatpush1.xpose.msra.mxu0 0.0
  %4584 = vmatprep.subr.mxu0 0.0
  %4585 = vmatpush1.xpose.msra.mxu0 0.0
  %4586 = vmatprep.subr.mxu0 0.0
  %4587 = vmatpush1.xpose.msra.mxu0 0.0
  %4588 = vmatprep.subr.mxu0 0.0
  %4589 = vmatpush1.xpose.msra.mxu0 0.0
  %4590 = vmatprep.subr.mxu0 0.0
  %4591 = vmatpush1.xpose.msra.mxu0 0.0
  %4592 = vmatprep.subr.mxu0 0.0
  %4593 = vmatpush1.xpose.msra.mxu0 0.0
  %4594 = vmatprep.subr.mxu0 0.0
  %4595 = vmatpush1.xpose.msra.mxu0 0.0
  %4596 = vmatprep.subr.mxu0 0.0
  %4597 = vmatpush1.xpose.msra.mxu0 0.0
  %4598 = vmatprep.subr.mxu0 0.0
  %4599 = vmatpush1.xpose.msra.mxu0 0.0
  %4600 = vmatprep.subr.mxu0 0.0
  %4601 = vmatpush1.xpose.msra.mxu0 0.0
  %4602 = vmatprep.subr.mxu0 0.0
  %4603 = vmatpush1.xpose.msra.mxu0 0.0
  %4604 = vmatprep.mubr.f32.mxu0 0.0
  %4605 = vmatmul.mubr.f32.gmra.mrb[0].mxu0 %v4529
  %v4606 = vpop.f32.mrb[0].mxu0
  %v4607 = vadd.f32 0.0, %v4606
  %v4608 = vpop.f32.mrb[0].mxu0
  %4609 = vmatprep.mubr.f32.mxu0 0.0
  %4610 = vmatmul.mubr.f32.gmra.mrb[0].mxu0 %v4532
  %v4611 = vpop.f32.mrb[0].mxu0
  %v4612 = vadd.f32 0.0, %v4611
  %v4613 = vpop.f32.mrb[0].mxu0
  %4614 = vdwg.mxu0
  %v4616 = vsel %vm168, %v3970, 0
  %v4619 = vsel %vm168, %v3975, 0
  %v4622 = vsel %vm168, %v4158, 0
  %v4625 = vsel %vm168, %v4163, 0
  %4627 = vmatprep.subr.mxu0 0.0
  %4628 = vmatpush1.xpose.msra.mxu0 %v4622
  %4629 = vmatprep.subr.mxu0 0.0
  %4630 = vmatpush1.xpose.msra.mxu0 %v4625
  %4631 = vmatprep.subr.mxu0 0.0
  %4632 = vmatpush1.xpose.msra.mxu0 0.0
  %4633 = vmatprep.subr.mxu0 0.0
  %4634 = vmatpush1.xpose.msra.mxu0 0.0
  %4635 = vmatprep.subr.mxu0 0.0
  %4636 = vmatpush1.xpose.msra.mxu0 0.0
  %4637 = vmatprep.subr.mxu0 0.0
  %4638 = vmatpush1.xpose.msra.mxu0 0.0
  %4639 = vmatprep.subr.mxu0 0.0
  %4640 = vmatpush1.xpose.msra.mxu0 0.0
  %4641 = vmatprep.subr.mxu0 0.0
  %4642 = vmatpush1.xpose.msra.mxu0 0.0
  %4643 = vmatprep.subr.mxu0 0.0
  %4644 = vmatpush1.xpose.msra.mxu0 0.0
  %4645 = vmatprep.subr.mxu0 0.0
  %4646 = vmatpush1.xpose.msra.mxu0 0.0
  %4647 = vmatprep.subr.mxu0 0.0
  %4648 = vmatpush1.xpose.msra.mxu0 0.0
  %4649 = vmatprep.subr.mxu0 0.0
  %4650 = vmatpush1.xpose.msra.mxu0 0.0
  %4651 = vmatprep.subr.mxu0 0.0
  %4652 = vmatpush1.xpose.msra.mxu0 0.0
  %4653 = vmatprep.subr.mxu0 0.0
  %4654 = vmatpush1.xpose.msra.mxu0 0.0
  %4655 = vmatprep.subr.mxu0 0.0
  %4656 = vmatpush1.xpose.msra.mxu0 0.0
  %4657 = vmatprep.subr.mxu0 0.0
  %4658 = vmatpush1.xpose.msra.mxu0 0.0
  %4659 = vmatprep.subr.mxu0 0.0
  %4660 = vmatpush1.xpose.msra.mxu0 0.0
  %4661 = vmatprep.subr.mxu0 0.0
  %4662 = vmatpush1.xpose.msra.mxu0 0.0
  %4663 = vmatprep.subr.mxu0 0.0
  %4664 = vmatpush1.xpose.msra.mxu0 0.0
  %4665 = vmatprep.subr.mxu0 0.0
  %4666 = vmatpush1.xpose.msra.mxu0 0.0
  %4667 = vmatprep.subr.mxu0 0.0
  %4668 = vmatpush1.xpose.msra.mxu0 0.0
  %4669 = vmatprep.subr.mxu0 0.0
  %4670 = vmatpush1.xpose.msra.mxu0 0.0
  %4671 = vmatprep.subr.mxu0 0.0
  %4672 = vmatpush1.xpose.msra.mxu0 0.0
  %4673 = vmatprep.subr.mxu0 0.0
  %4674 = vmatpush1.xpose.msra.mxu0 0.0
  %4675 = vmatprep.subr.mxu0 0.0
  %4676 = vmatpush1.xpose.msra.mxu0 0.0
  %4677 = vmatprep.subr.mxu0 0.0
  %4678 = vmatpush1.xpose.msra.mxu0 0.0
  %4679 = vmatprep.subr.mxu0 0.0
  %4680 = vmatpush1.xpose.msra.mxu0 0.0
  %4681 = vmatprep.subr.mxu0 0.0
  %4682 = vmatpush1.xpose.msra.mxu0 0.0
  %4683 = vmatprep.subr.mxu0 0.0
  %4684 = vmatpush1.xpose.msra.mxu0 0.0
  %4685 = vmatprep.subr.mxu0 0.0
  %4686 = vmatpush1.xpose.msra.mxu0 0.0
  %4687 = vmatprep.subr.mxu0 0.0
  %4688 = vmatpush1.xpose.msra.mxu0 0.0
  %4689 = vmatprep.subr.mxu0 0.0
  %4690 = vmatpush1.xpose.msra.mxu0 0.0
  %4691 = vmatprep.mubr.f32.mxu0 0.0
  %4692 = vmatmul.mubr.f32.gmra.mrb[0].mxu0 %v4616
  %v4693 = vpop.f32.mrb[0].mxu0
  %v4694 = vadd.f32 0.0, %v4693
  %v4695 = vpop.f32.mrb[0].mxu0
  %4696 = vmatprep.mubr.f32.mxu0 0.0
  %4697 = vmatmul.mubr.f32.gmra.mrb[0].mxu0 %v4619
  %v4698 = vpop.f32.mrb[0].mxu0
  %v4699 = vadd.f32 0.0, %v4698
  %v4700 = vpop.f32.mrb[0].mxu0
  %4701 = vdwg.mxu0
  %v4702 = vmul.f32 %v4433, 0.25
  %v4703 = vmul.f32 %v4438, 0.25
  %v4704 = vmul.f32 %v4520, 0.25
  %v4705 = vmul.f32 %v4525, 0.25
  %v4706 = vmul.f32 %v4607, 0.25
  %v4707 = vmul.f32 %v4612, 0.25
  %v4708 = vmul.f32 %v4694, 0.25
  %v4709 = vmul.f32 %v4699, 0.25
  %v4710 = vadd.f32 %v4702, %v2729
  %v4711 = vadd.f32 %v4703, %v2729
  %v4712 = vadd.f32 %v4704, %v2733
  %v4713 = vadd.f32 %v4705, %v2733
  %v4714 = vadd.f32 %v4706, %v2737
  %v4715 = vadd.f32 %v4707, %v2737
  %v4716 = vadd.f32 %v4708, %v2741
  %v4717 = vadd.f32 %v4709, %v2741
  %v4718 = vsel %vm2754, %v4710, -inf
  %4719 = vmax.xlane.f32.xlu0 %v4718
  %v4720 = vpop.xlane.xlu0 %4719
  %v4721 = vsel %vm2754, %v4711, -inf
  %4722 = vmax.xlane.f32.xlu0 %v4721
  %v4723 = vpop.xlane.xlu0 %4722
  %v4724 = vsel %vm2754, %v4712, -inf
  %4725 = vmax.xlane.f32.xlu0 %v4724
  %v4726 = vpop.xlane.xlu0 %4725
  %v4727 = vsel %vm2754, %v4713, -inf
  %4728 = vmax.xlane.f32.xlu0 %v4727
  %v4729 = vpop.xlane.xlu0 %4728
  %v4730 = vsel %vm2754, %v4714, -inf
  %4731 = vmax.xlane.f32.xlu0 %v4730
  %v4732 = vpop.xlane.xlu0 %4731
  %v4733 = vsel %vm2754, %v4715, -inf
  %4734 = vmax.xlane.f32.xlu0 %v4733
  %v4735 = vpop.xlane.xlu0 %4734
  %v4736 = vsel %vm2754, %v4716, -inf
  %4737 = vmax.xlane.f32.xlu0 %v4736
  %v4738 = vpop.xlane.xlu0 %4737
  %v4739 = vsel %vm2754, %v4717, -inf
  %4740 = vmax.xlane.f32.xlu0 %v4739
  %v4741 = vpop.xlane.xlu0 %4740
  %v4742 = vsub.f32 %v4710, %v4720
  %v4743 = vsub.f32 %v4711, %v4723
  %v4744 = vsub.f32 %v4712, %v4726
  %v4745 = vsub.f32 %v4713, %v4729
  %v4746 = vsub.f32 %v4714, %v4732
  %v4747 = vsub.f32 %v4715, %v4735
  %v4748 = vsub.f32 %v4716, %v4738
  %v4749 = vsub.f32 %v4717, %v4741
  %v4750 = vmul.f32 %v4742, 1.442695
  %v4751 = vpow.pop %v4750
  %v4752 = vmul.f32 %v4743, 1.442695
  %v4753 = vpow.pop %v4752
  %v4754 = vmul.f32 %v4744, 1.442695
  %v4755 = vpow.pop %v4754
  %v4756 = vmul.f32 %v4745, 1.442695
  %v4757 = vpow.pop %v4756
  %v4758 = vmul.f32 %v4746, 1.442695
  %v4759 = vpow.pop %v4758
  %v4760 = vmul.f32 %v4747, 1.442695
  %v4761 = vpow.pop %v4760
  %v4762 = vmul.f32 %v4748, 1.442695
  %v4763 = vpow.pop %v4762
  %v4764 = vmul.f32 %v4749, 1.442695
  %v4765 = vpow.pop %v4764
  %v4766 = vsel %vm2754, %v4751, 0.0
  %4767 = vadd.xlane.f32.xlu0 %v4766
  %v4768 = vpop.xlane.xlu0 %4767
  %v4769 = vsel %vm2754, %v4753, 0.0
  %4770 = vadd.xlane.f32.xlu0 %v4769
  %v4771 = vpop.xlane.xlu0 %4770
  %v4772 = vsel %vm2754, %v4755, 0.0
  %4773 = vadd.xlane.f32.xlu0 %v4772
  %v4774 = vpop.xlane.xlu0 %4773
  %v4775 = vsel %vm2754, %v4757, 0.0
  %4776 = vadd.xlane.f32.xlu0 %v4775
  %v4777 = vpop.xlane.xlu0 %4776
  %v4778 = vsel %vm2754, %v4759, 0.0
  %4779 = vadd.xlane.f32.xlu0 %v4778
  %v4780 = vpop.xlane.xlu0 %4779
  %v4781 = vsel %vm2754, %v4761, 0.0
  %4782 = vadd.xlane.f32.xlu0 %v4781
  %v4783 = vpop.xlane.xlu0 %4782
  %v4784 = vsel %vm2754, %v4763, 0.0
  %4785 = vadd.xlane.f32.xlu0 %v4784
  %v4786 = vpop.xlane.xlu0 %4785
  %v4787 = vsel %vm2754, %v4765, 0.0
  %4788 = vadd.xlane.f32.xlu0 %v4787
  %v4789 = vpop.xlane.xlu0 %4788
  %v4790 = vrcp.pop %v4768
  %v4791 = vrcp.pop %v4771
  %v4792 = vrcp.pop %v4774
  %v4793 = vrcp.pop %v4777
  %v4794 = vrcp.pop %v4780
  %v4795 = vrcp.pop %v4783
  %v4796 = vrcp.pop %v4786
  %v4797 = vrcp.pop %v4789
  %v4798 = vmul.f32 %v4751, %v4790
  %v4799 = vmul.f32 %v4753, %v4791
  %v4800 = vmul.f32 %v4755, %v4792
  %v4801 = vmul.f32 %v4757, %v4793
  %v4802 = vmul.f32 %v4759, %v4794
  %v4803 = vmul.f32 %v4761, %v4795
  %v4804 = vmul.f32 %v4763, %v4796
  %v4805 = vmul.f32 %v4765, %v4797
  %v4807 = vsel %vm2754, %v4798, 0
  %v4810 = vsel %vm2754, %v4799, 0
  %4812 = vmatprep.subr.mxu0 0.0
  %4813 = vmatpush1.msra.mxu0 %v4242
  %4814 = vmatprep.subr.mxu0 0.0
  %4815 = vmatpush1.msra.mxu0 %v4247
  %4816 = vmatprep.subr.mxu0 0.0
  %4817 = vmatpush1.msra.mxu0 0.0
  %4818 = vmatprep.subr.mxu0 0.0
  %4819 = vmatpush1.msra.mxu0 0.0
  %4820 = vmatprep.subr.mxu0 0.0
  %4821 = vmatpush1.msra.mxu0 0.0
  %4822 = vmatprep.subr.mxu0 0.0
  %4823 = vmatpush1.msra.mxu0 0.0
  %4824 = vmatprep.subr.mxu0 0.0
  %4825 = vmatpush1.msra.mxu0 0.0
  %4826 = vmatprep.subr.mxu0 0.0
  %4827 = vmatpush1.msra.mxu0 0.0
  %4828 = vmatprep.subr.mxu0 0.0
  %4829 = vmatpush1.msra.mxu0 0.0
  %4830 = vmatprep.subr.mxu0 0.0
  %4831 = vmatpush1.msra.mxu0 0.0
  %4832 = vmatprep.subr.mxu0 0.0
  %4833 = vmatpush1.msra.mxu0 0.0
  %4834 = vmatprep.subr.mxu0 0.0
  %4835 = vmatpush1.msra.mxu0 0.0
  %4836 = vmatprep.subr.mxu0 0.0
  %4837 = vmatpush1.msra.mxu0 0.0
  %4838 = vmatprep.subr.mxu0 0.0
  %4839 = vmatpush1.msra.mxu0 0.0
  %4840 = vmatprep.subr.mxu0 0.0
  %4841 = vmatpush1.msra.mxu0 0.0
  %4842 = vmatprep.subr.mxu0 0.0
  %4843 = vmatpush1.msra.mxu0 0.0
  %4844 = vmatprep.subr.mxu0 0.0
  %4845 = vmatpush1.msra.mxu0 0.0
  %4846 = vmatprep.subr.mxu0 0.0
  %4847 = vmatpush1.msra.mxu0 0.0
  %4848 = vmatprep.subr.mxu0 0.0
  %4849 = vmatpush1.msra.mxu0 0.0
  %4850 = vmatprep.subr.mxu0 0.0
  %4851 = vmatpush1.msra.mxu0 0.0
  %4852 = vmatprep.subr.mxu0 0.0
  %4853 = vmatpush1.msra.mxu0 0.0
  %4854 = vmatprep.subr.mxu0 0.0
  %4855 = vmatpush1.msra.mxu0 0.0
  %4856 = vmatprep.subr.mxu0 0.0
  %4857 = vmatpush1.msra.mxu0 0.0
  %4858 = vmatprep.subr.mxu0 0.0
  %4859 = vmatpush1.msra.mxu0 0.0
  %4860 = vmatprep.subr.mxu0 0.0
  %4861 = vmatpush1.msra.mxu0 0.0
  %4862 = vmatprep.subr.mxu0 0.0
  %4863 = vmatpush1.msra.mxu0 0.0
  %4864 = vmatprep.subr.mxu0 0.0
  %4865 = vmatpush1.msra.mxu0 0.0
  %4866 = vmatprep.subr.mxu0 0.0
  %4867 = vmatpush1.msra.mxu0 0.0
  %4868 = vmatprep.subr.mxu0 0.0
  %4869 = vmatpush1.msra.mxu0 0.0
  %4870 = vmatprep.subr.mxu0 0.0
  %4871 = vmatpush1.msra.mxu0 0.0
  %4872 = vmatprep.subr.mxu0 0.0
  %4873 = vmatpush1.msra.mxu0 0.0
  %4874 = vmatprep.subr.mxu0 0.0
  %4875 = vmatpush1.msra.mxu0 0.0
  %4876 = vmatprep.mubr.f32.mxu0 0.0
  %4877 = vmatmul.mubr.f32.gmra.mrb[0].mxu0 %v4807
  %v4878 = vpop.f32.mrb[0].mxu0
  %v4879 = vadd.f32 0.0, %v4878
  %v4880 = vpop.f32.mrb[0].mxu0
  %4881 = vmatprep.mubr.f32.mxu0 0.0
  %4882 = vmatmul.mubr.f32.gmra.mrb[0].mxu0 %v4810
  %v4883 = vpop.f32.mrb[0].mxu0
  %v4884 = vadd.f32 0.0, %v4883
  %v4885 = vpop.f32.mrb[0].mxu0
  %4886 = vdwg.mxu0
  %v4888 = vsel %vm2754, %v4800, 0
  %v4891 = vsel %vm2754, %v4801, 0
  %4893 = vmatprep.subr.mxu0 0.0
  %4894 = vmatpush1.msra.mxu0 %v4252
  %4895 = vmatprep.subr.mxu0 0.0
  %4896 = vmatpush1.msra.mxu0 %v4257
  %4897 = vmatprep.subr.mxu0 0.0
  %4898 = vmatpush1.msra.mxu0 0.0
  %4899 = vmatprep.subr.mxu0 0.0
  %4900 = vmatpush1.msra.mxu0 0.0
  %4901 = vmatprep.subr.mxu0 0.0
  %4902 = vmatpush1.msra.mxu0 0.0
  %4903 = vmatprep.subr.mxu0 0.0
  %4904 = vmatpush1.msra.mxu0 0.0
  %4905 = vmatprep.subr.mxu0 0.0
  %4906 = vmatpush1.msra.mxu0 0.0
  %4907 = vmatprep.subr.mxu0 0.0
  %4908 = vmatpush1.msra.mxu0 0.0
  %4909 = vmatprep.subr.mxu0 0.0
  %4910 = vmatpush1.msra.mxu0 0.0
  %4911 = vmatprep.subr.mxu0 0.0
  %4912 = vmatpush1.msra.mxu0 0.0
  %4913 = vmatprep.subr.mxu0 0.0
  %4914 = vmatpush1.msra.mxu0 0.0
  %4915 = vmatprep.subr.mxu0 0.0
  %4916 = vmatpush1.msra.mxu0 0.0
  %4917 = vmatprep.subr.mxu0 0.0
  %4918 = vmatpush1.msra.mxu0 0.0
  %4919 = vmatprep.subr.mxu0 0.0
  %4920 = vmatpush1.msra.mxu0 0.0
  %4921 = vmatprep.subr.mxu0 0.0
  %4922 = vmatpush1.msra.mxu0 0.0
  %4923 = vmatprep.subr.mxu0 0.0
  %4924 = vmatpush1.msra.mxu0 0.0
  %4925 = vmatprep.subr.mxu0 0.0
  %4926 = vmatpush1.msra.mxu0 0.0
  %4927 = vmatprep.subr.mxu0 0.0
  %4928 = vmatpush1.msra.mxu0 0.0
  %4929 = vmatprep.subr.mxu0 0.0
  %4930 = vmatpush1.msra.mxu0 0.0
  %4931 = vmatprep.subr.mxu0 0.0
  %4932 = vmatpush1.msra.mxu0 0.0
  %4933 = vmatprep.subr.mxu0 0.0
  %4934 = vmatpush1.msra.mxu0 0.0
  %4935 = vmatprep.subr.mxu0 0.0
  %4936 = vmatpush1.msra.mxu0 0.0
  %4937 = vmatprep.subr.mxu0 0.0
  %4938 = vmatpush1.msra.mxu0 0.0
  %4939 = vmatprep.subr.mxu0 0.0
  %4940 = vmatpush1.msra.mxu0 0.0
  %4941 = vmatprep.subr.mxu0 0.0
  %4942 = vmatpush1.msra.mxu0 0.0
  %4943 = vmatprep.subr.mxu0 0.0
  %4944 = vmatpush1.msra.mxu0 0.0
  %4945 = vmatprep.subr.mxu0 0.0
  %4946 = vmatpush1.msra.mxu0 0.0
  %4947 = vmatprep.subr.mxu0 0.0
  %4948 = vmatpush1.msra.mxu0 0.0
  %4949 = vmatprep.subr.mxu0 0.0
  %4950 = vmatpush1.msra.mxu0 0.0
  %4951 = vmatprep.subr.mxu0 0.0
  %4952 = vmatpush1.msra.mxu0 0.0
  %4953 = vmatprep.subr.mxu0 0.0
  %4954 = vmatpush1.msra.mxu0 0.0
  %4955 = vmatprep.subr.mxu0 0.0
  %4956 = vmatpush1.msra.mxu0 0.0
  %4957 = vmatprep.mubr.f32.mxu0 0.0
  %4958 = vmatmul.mubr.f32.gmra.mrb[0].mxu0 %v4888
  %v4959 = vpop.f32.mrb[0].mxu0
  %v4960 = vadd.f32 0.0, %v4959
  %v4961 = vpop.f32.mrb[0].mxu0
  %4962 = vmatprep.mubr.f32.mxu0 0.0
  %4963 = vmatmul.mubr.f32.gmra.mrb[0].mxu0 %v4891
  %v4964 = vpop.f32.mrb[0].mxu0
  %v4965 = vadd.f32 0.0, %v4964
  %v4966 = vpop.f32.mrb[0].mxu0
  %4967 = vdwg.mxu0
  %v4969 = vsel %vm2754, %v4802, 0
  %v4972 = vsel %vm2754, %v4803, 0
  %4974 = vmatprep.subr.mxu0 0.0
  %4975 = vmatpush1.msra.mxu0 %v4336
  %4976 = vmatprep.subr.mxu0 0.0
  %4977 = vmatpush1.msra.mxu0 %v4341
  %4978 = vmatprep.subr.mxu0 0.0
  %4979 = vmatpush1.msra.mxu0 0.0
  %4980 = vmatprep.subr.mxu0 0.0
  %4981 = vmatpush1.msra.mxu0 0.0
  %4982 = vmatprep.subr.mxu0 0.0
  %4983 = vmatpush1.msra.mxu0 0.0
  %4984 = vmatprep.subr.mxu0 0.0
  %4985 = vmatpush1.msra.mxu0 0.0
  %4986 = vmatprep.subr.mxu0 0.0
  %4987 = vmatpush1.msra.mxu0 0.0
  %4988 = vmatprep.subr.mxu0 0.0
  %4989 = vmatpush1.msra.mxu0 0.0
  %4990 = vmatprep.subr.mxu0 0.0
  %4991 = vmatpush1.msra.mxu0 0.0
  %4992 = vmatprep.subr.mxu0 0.0
  %4993 = vmatpush1.msra.mxu0 0.0
  %4994 = vmatprep.subr.mxu0 0.0
  %4995 = vmatpush1.msra.mxu0 0.0
  %4996 = vmatprep.subr.mxu0 0.0
  %4997 = vmatpush1.msra.mxu0 0.0
  %4998 = vmatprep.subr.mxu0 0.0
  %4999 = vmatpush1.msra.mxu0 0.0
  %5000 = vmatprep.subr.mxu0 0.0
  %5001 = vmatpush1.msra.mxu0 0.0
  %5002 = vmatprep.subr.mxu0 0.0
  %5003 = vmatpush1.msra.mxu0 0.0
  %5004 = vmatprep.subr.mxu0 0.0
  %5005 = vmatpush1.msra.mxu0 0.0
  %5006 = vmatprep.subr.mxu0 0.0
  %5007 = vmatpush1.msra.mxu0 0.0
  %5008 = vmatprep.subr.mxu0 0.0
  %5009 = vmatpush1.msra.mxu0 0.0
  %5010 = vmatprep.subr.mxu0 0.0
  %5011 = vmatpush1.msra.mxu0 0.0
  %5012 = vmatprep.subr.mxu0 0.0
  %5013 = vmatpush1.msra.mxu0 0.0
  %5014 = vmatprep.subr.mxu0 0.0
  %5015 = vmatpush1.msra.mxu0 0.0
  %5016 = vmatprep.subr.mxu0 0.0
  %5017 = vmatpush1.msra.mxu0 0.0
  %5018 = vmatprep.subr.mxu0 0.0
  %5019 = vmatpush1.msra.mxu0 0.0
  %5020 = vmatprep.subr.mxu0 0.0
  %5021 = vmatpush1.msra.mxu0 0.0
  %5022 = vmatprep.subr.mxu0 0.0
  %5023 = vmatpush1.msra.mxu0 0.0
  %5024 = vmatprep.subr.mxu0 0.0
  %5025 = vmatpush1.msra.mxu0 0.0
  %5026 = vmatprep.subr.mxu0 0.0
  %5027 = vmatpush1.msra.mxu0 0.0
  %5028 = vmatprep.subr.mxu0 0.0
  %5029 = vmatpush1.msra.mxu0 0.0
  %5030 = vmatprep.subr.mxu0 0.0
  %5031 = vmatpush1.msra.mxu0 0.0
  %5032 = vmatprep.subr.mxu0 0.0
  %5033 = vmatpush1.msra.mxu0 0.0
  %5034 = vmatprep.subr.mxu0 0.0
  %5035 = vmatpush1.msra.mxu0 0.0
  %5036 = vmatprep.subr.mxu0 0.0
  %5037 = vmatpush1.msra.mxu0 0.0
  %5038 = vmatprep.mubr.f32.mxu0 0.0
  %5039 = vmatmul.mubr.f32.gmra.mrb[0].mxu0 %v4969
  %v5040 = vpop.f32.mrb[0].mxu0
  %v5041 = vadd.f32 0.0, %v5040
  %v5042 = vpop.f32.mrb[0].mxu0
  %5043 = vmatprep.mubr.f32.mxu0 0.0
  %5044 = vmatmul.mubr.f32.gmra.mrb[0].mxu0 %v4972
  %v5045 = vpop.f32.mrb[0].mxu0
  %v5046 = vadd.f32 0.0, %v5045
  %v5047 = vpop.f32.mrb[0].mxu0
  %5048 = vdwg.mxu0
  %v5050 = vsel %vm2754, %v4804, 0
  %v5053 = vsel %vm2754, %v4805, 0
  %5055 = vmatprep.subr.mxu0 0.0
  %5056 = vmatpush1.msra.mxu0 %v4346
  %5057 = vmatprep.subr.mxu0 0.0
  %5058 = vmatpush1.msra.mxu0 %v4351
  %5059 = vmatprep.subr.mxu0 0.0
  %5060 = vmatpush1.msra.mxu0 0.0
  %5061 = vmatprep.subr.mxu0 0.0
  %5062 = vmatpush1.msra.mxu0 0.0
  %5063 = vmatprep.subr.mxu0 0.0
  %5064 = vmatpush1.msra.mxu0 0.0
  %5065 = vmatprep.subr.mxu0 0.0
  %5066 = vmatpush1.msra.mxu0 0.0
  %5067 = vmatprep.subr.mxu0 0.0
  %5068 = vmatpush1.msra.mxu0 0.0
  %5069 = vmatprep.subr.mxu0 0.0
  %5070 = vmatpush1.msra.mxu0 0.0
  %5071 = vmatprep.subr.mxu0 0.0
  %5072 = vmatpush1.msra.mxu0 0.0
  %5073 = vmatprep.subr.mxu0 0.0
  %5074 = vmatpush1.msra.mxu0 0.0
  %5075 = vmatprep.subr.mxu0 0.0
  %5076 = vmatpush1.msra.mxu0 0.0
  %5077 = vmatprep.subr.mxu0 0.0
  %5078 = vmatpush1.msra.mxu0 0.0
  %5079 = vmatprep.subr.mxu0 0.0
  %5080 = vmatpush1.msra.mxu0 0.0
  %5081 = vmatprep.subr.mxu0 0.0
  %5082 = vmatpush1.msra.mxu0 0.0
  %5083 = vmatprep.subr.mxu0 0.0
  %5084 = vmatpush1.msra.mxu0 0.0
  %5085 = vmatprep.subr.mxu0 0.0
  %5086 = vmatpush1.msra.mxu0 0.0
  %5087 = vmatprep.subr.mxu0 0.0
  %5088 = vmatpush1.msra.mxu0 0.0
  %5089 = vmatprep.subr.mxu0 0.0
  %5090 = vmatpush1.msra.mxu0 0.0
  %5091 = vmatprep.subr.mxu0 0.0
  %5092 = vmatpush1.msra.mxu0 0.0
  %5093 = vmatprep.subr.mxu0 0.0
  %5094 = vmatpush1.msra.mxu0 0.0
  %5095 = vmatprep.subr.mxu0 0.0
  %5096 = vmatpush1.msra.mxu0 0.0
  %5097 = vmatprep.subr.mxu0 0.0
  %5098 = vmatpush1.msra.mxu0 0.0
  %5099 = vmatprep.subr.mxu0 0.0
  %5100 = vmatpush1.msra.mxu0 0.0
  %5101 = vmatprep.subr.mxu0 0.0
  %5102 = vmatpush1.msra.mxu0 0.0
  %5103 = vmatprep.subr.mxu0 0.0
  %5104 = vmatpush1.msra.mxu0 0.0
  %5105 = vmatprep.subr.mxu0 0.0
  %5106 = vmatpush1.msra.mxu0 0.0
  %5107 = vmatprep.subr.mxu0 0.0
  %5108 = vmatpush1.msra.mxu0 0.0
  %5109 = vmatprep.subr.mxu0 0.0
  %5110 = vmatpush1.msra.mxu0 0.0
  %5111 = vmatprep.subr.mxu0 0.0
  %5112 = vmatpush1.msra.mxu0 0.0
  %5113 = vmatprep.subr.mxu0 0.0
  %5114 = vmatpush1.msra.mxu0 0.0
  %5115 = vmatprep.subr.mxu0 0.0
  %5116 = vmatpush1.msra.mxu0 0.0
  %5117 = vmatprep.subr.mxu0 0.0
  %5118 = vmatpush1.msra.mxu0 0.0
  %5119 = vmatprep.mubr.f32.mxu0 0.0
  %5120 = vmatmul.mubr.f32.gmra.mrb[0].mxu0 %v5050
  %v5121 = vpop.f32.mrb[0].mxu0
  %v5122 = vadd.f32 0.0, %v5121
  %v5123 = vpop.f32.mrb[0].mxu0
  %5124 = vmatprep.mubr.f32.mxu0 0.0
  %5125 = vmatmul.mubr.f32.gmra.mrb[0].mxu0 %v5053
  %v5126 = vpop.f32.mrb[0].mxu0
  %v5127 = vadd.f32 0.0, %v5126
  %v5128 = vpop.f32.mrb[0].mxu0
  %5129 = vdwg.mxu0
  %v5130 = vld [vmem:[%s6 + $0x316] sm:$0x1]
  %v5131 = vld [vmem:[%s6 + $0x250] sm:$0xff]
  %v5132 = vld [vmem:[%s6 + $0x258] sm:$0xff]
  %v5133 = vld [vmem:[%s6 + $0x260] sm:$0xff]
  %v5134 = vld [vmem:[%s6 + $0x268] sm:$0xff]
  %v5136 = vsel %vm168, %v4879, 0
  %v5139 = vsel %vm168, %v4884, 0
  %v5142 = vsel %vm168, %v4960, 0
  %v5145 = vsel %vm168, %v4965, 0
  %5147 = vmatprep.subr.mxu0 0.0
  %5148 = vmatpush1.msra.mxu0 %v5131
  %5149 = vmatprep.subr.mxu0 0.0
  %5150 = vmatpush1.msra.mxu0 %v5132
  %5151 = vmatprep.subr.mxu0 0.0
  %5152 = vmatpush1.msra.mxu0 %v5133
  %5153 = vmatprep.subr.mxu0 0.0
  %5154 = vmatpush1.msra.mxu0 %v5134
  %5155 = vmatprep.subr.mxu0 0.0
  %5156 = vmatpush1.msra.mxu0 0.0
  %5157 = vmatprep.subr.mxu0 0.0
  %5158 = vmatpush1.msra.mxu0 0.0
  %5159 = vmatprep.subr.mxu0 0.0
  %5160 = vmatpush1.msra.mxu0 0.0
  %5161 = vmatprep.subr.mxu0 0.0
  %5162 = vmatpush1.msra.mxu0 0.0
  %5163 = vmatprep.subr.mxu0 0.0
  %5164 = vmatpush1.msra.mxu0 0.0
  %5165 = vmatprep.subr.mxu0 0.0
  %5166 = vmatpush1.msra.mxu0 0.0
  %5167 = vmatprep.subr.mxu0 0.0
  %5168 = vmatpush1.msra.mxu0 0.0
  %5169 = vmatprep.subr.mxu0 0.0
  %5170 = vmatpush1.msra.mxu0 0.0
  %5171 = vmatprep.subr.mxu0 0.0
  %5172 = vmatpush1.msra.mxu0 0.0
  %5173 = vmatprep.subr.mxu0 0.0
  %5174 = vmatpush1.msra.mxu0 0.0
  %5175 = vmatprep.subr.mxu0 0.0
  %5176 = vmatpush1.msra.mxu0 0.0
  %5177 = vmatprep.subr.mxu0 0.0
  %5178 = vmatpush1.msra.mxu0 0.0
  %5179 = vmatprep.subr.mxu0 0.0
  %5180 = vmatpush1.msra.mxu0 0.0
  %5181 = vmatprep.subr.mxu0 0.0
  %5182 = vmatpush1.msra.mxu0 0.0
  %5183 = vmatprep.subr.mxu0 0.0
  %5184 = vmatpush1.msra.mxu0 0.0
  %5185 = vmatprep.subr.mxu0 0.0
  %5186 = vmatpush1.msra.mxu0 0.0
  %5187 = vmatprep.subr.mxu0 0.0
  %5188 = vmatpush1.msra.mxu0 0.0
  %5189 = vmatprep.subr.mxu0 0.0
  %5190 = vmatpush1.msra.mxu0 0.0
  %5191 = vmatprep.subr.mxu0 0.0
  %5192 = vmatpush1.msra.mxu0 0.0
  %5193 = vmatprep.subr.mxu0 0.0
  %5194 = vmatpush1.msra.mxu0 0.0
  %5195 = vmatprep.subr.mxu0 0.0
  %5196 = vmatpush1.msra.mxu0 0.0
  %5197 = vmatprep.subr.mxu0 0.0
  %5198 = vmatpush1.msra.mxu0 0.0
  %5199 = vmatprep.subr.mxu0 0.0
  %5200 = vmatpush1.msra.mxu0 0.0
  %5201 = vmatprep.subr.mxu0 0.0
  %5202 = vmatpush1.msra.mxu0 0.0
  %5203 = vmatprep.subr.mxu0 0.0
  %5204 = vmatpush1.msra.mxu0 0.0
  %5205 = vmatprep.subr.mxu0 0.0
  %5206 = vmatpush1.msra.mxu0 0.0
  %5207 = vmatprep.subr.mxu0 0.0
  %5208 = vmatpush1.msra.mxu0 0.0
  %5209 = vmatprep.subr.mxu0 0.0
  %5210 = vmatpush1.msra.mxu0 0.0
  %5211 = vmatprep.mubr.f32.mxu0 0.0
  %5212 = vmatmul.mubr.f32.gmra.mrb[0].mxu0 %v5136
  %v5213 = vpop.f32.mrb[0].mxu0
  %v5214 = vadd.f32 0.0, %v5213
  %v5215 = vpop.f32.mrb[0].mxu0
  %5216 = vmatprep.mubr.f32.mxu0 0.0
  %5217 = vmatmul.mubr.f32.gmra.mrb[0].mxu0 %v5139
  %v5218 = vpop.f32.mrb[0].mxu0
  %v5219 = vadd.f32 0.0, %v5218
  %v5220 = vpop.f32.mrb[0].mxu0
  %5221 = vmatprep.mubr.f32.mxu0 0.0
  %5222 = vmatmul.mubr.f32.gmra.mrb[0].mxu0 %v5142
  %v5223 = vpop.f32.mrb[0].mxu0
  %v5224 = vadd.f32 0.0, %v5223
  %v5225 = vpop.f32.mrb[0].mxu0
  %5226 = vmatprep.mubr.f32.mxu0 0.0
  %5227 = vmatmul.mubr.f32.gmra.mrb[0].mxu0 %v5145
  %v5228 = vpop.f32.mrb[0].mxu0
  %v5229 = vadd.f32 0.0, %v5228
  %v5230 = vpop.f32.mrb[0].mxu0
  %5231 = vdwg.mxu0
  %v5232 = vlaneseq
  %v5233 = vshrl.u32 %v5232, 7
  %v5234 = vsub.s32 0, %v5233
  %v5235 = vrot.slane %v5130, %v5234
  %v5236 = vadd.f32 %v5235, %v5214
  %v5237 = vadd.f32 %v5235, %v5219
  %v5238 = vadd.f32 %v5235, %v5224
  %v5239 = vadd.f32 %v5235, %v5229
  %v5240 = vld [vmem:[%s6 + $0x270] sm:$0xff]
  %v5241 = vld [vmem:[%s6 + $0x278] sm:$0xff]
  %v5242 = vld [vmem:[%s6 + $0x280] sm:$0xff]
  %v5243 = vld [vmem:[%s6 + $0x288] sm:$0xff]
  %v5245 = vsel %vm168, %v5041, 0
  %v5248 = vsel %vm168, %v5046, 0
  %v5251 = vsel %vm168, %v5122, 0
  %v5254 = vsel %vm168, %v5127, 0
  %5256 = vmatprep.subr.mxu0 0.0
  %5257 = vmatpush1.msra.mxu0 %v5240
  %5258 = vmatprep.subr.mxu0 0.0
  %5259 = vmatpush1.msra.mxu0 %v5241
  %5260 = vmatprep.subr.mxu0 0.0
  %5261 = vmatpush1.msra.mxu0 %v5242
  %5262 = vmatprep.subr.mxu0 0.0
  %5263 = vmatpush1.msra.mxu0 %v5243
  %5264 = vmatprep.subr.mxu0 0.0
  %5265 = vmatpush1.msra.mxu0 0.0
  %5266 = vmatprep.subr.mxu0 0.0
  %5267 = vmatpush1.msra.mxu0 0.0
  %5268 = vmatprep.subr.mxu0 0.0
  %5269 = vmatpush1.msra.mxu0 0.0
  %5270 = vmatprep.subr.mxu0 0.0
  %5271 = vmatpush1.msra.mxu0 0.0
  %5272 = vmatprep.subr.mxu0 0.0
  %5273 = vmatpush1.msra.mxu0 0.0
  %5274 = vmatprep.subr.mxu0 0.0
  %5275 = vmatpush1.msra.mxu0 0.0
  %5276 = vmatprep.subr.mxu0 0.0
  %5277 = vmatpush1.msra.mxu0 0.0
  %5278 = vmatprep.subr.mxu0 0.0
  %5279 = vmatpush1.msra.mxu0 0.0
  %5280 = vmatprep.subr.mxu0 0.0
  %5281 = vmatpush1.msra.mxu0 0.0
  %5282 = vmatprep.subr.mxu0 0.0
  %5283 = vmatpush1.msra.mxu0 0.0
  %5284 = vmatprep.subr.mxu0 0.0
  %5285 = vmatpush1.msra.mxu0 0.0
  %5286 = vmatprep.subr.mxu0 0.0
  %5287 = vmatpush1.msra.mxu0 0.0
  %5288 = vmatprep.subr.mxu0 0.0
  %5289 = vmatpush1.msra.mxu0 0.0
  %5290 = vmatprep.subr.mxu0 0.0
  %5291 = vmatpush1.msra.mxu0 0.0
  %5292 = vmatprep.subr.mxu0 0.0
  %5293 = vmatpush1.msra.mxu0 0.0
  %5294 = vmatprep.subr.mxu0 0.0
  %5295 = vmatpush1.msra.mxu0 0.0
  %5296 = vmatprep.subr.mxu0 0.0
  %5297 = vmatpush1.msra.mxu0 0.0
  %5298 = vmatprep.subr.mxu0 0.0
  %5299 = vmatpush1.msra.mxu0 0.0
  %5300 = vmatprep.subr.mxu0 0.0
  %5301 = vmatpush1.msra.mxu0 0.0
  %5302 = vmatprep.subr.mxu0 0.0
  %5303 = vmatpush1.msra.mxu0 0.0
  %5304 = vmatprep.subr.mxu0 0.0
  %5305 = vmatpush1.msra.mxu0 0.0
  %5306 = vmatprep.subr.mxu0 0.0
  %5307 = vmatpush1.msra.mxu0 0.0
  %5308 = vmatprep.subr.mxu0 0.0
  %5309 = vmatpush1.msra.mxu0 0.0
  %5310 = vmatprep.subr.mxu0 0.0
  %5311 = vmatpush1.msra.mxu0 0.0
  %5312 = vmatprep.subr.mxu0 0.0
  %5313 = vmatpush1.msra.mxu0 0.0
  %5314 = vmatprep.subr.mxu0 0.0
  %5315 = vmatpush1.msra.mxu0 0.0
  %5316 = vmatprep.subr.mxu0 0.0
  %5317 = vmatpush1.msra.mxu0 0.0
  %5318 = vmatprep.subr.mxu0 0.0
  %5319 = vmatpush1.msra.mxu0 0.0
  %5320 = vmatprep.mubr.f32.mxu0 0.0
  %5321 = vmatmul.mubr.f32.gmra.mrb[0].mxu0 %v5245
  %v5322 = vpop.f32.mrb[0].mxu0
  %v5323 = vadd.f32 0.0, %v5322
  %v5324 = vpop.f32.mrb[0].mxu0
  %5325 = vmatprep.mubr.f32.mxu0 0.0
  %5326 = vmatmul.mubr.f32.gmra.mrb[0].mxu0 %v5248
  %v5327 = vpop.f32.mrb[0].mxu0
  %v5328 = vadd.f32 0.0, %v5327
  %v5329 = vpop.f32.mrb[0].mxu0
  %5330 = vmatprep.mubr.f32.mxu0 0.0
  %5331 = vmatmul.mubr.f32.gmra.mrb[0].mxu0 %v5251
  %v5332 = vpop.f32.mrb[0].mxu0
  %v5333 = vadd.f32 0.0, %v5332
  %v5334 = vpop.f32.mrb[0].mxu0
  %5335 = vmatprep.mubr.f32.mxu0 0.0
  %5336 = vmatmul.mubr.f32.gmra.mrb[0].mxu0 %v5254
  %v5337 = vpop.f32.mrb[0].mxu0
  %v5338 = vadd.f32 0.0, %v5337
  %v5339 = vpop.f32.mrb[0].mxu0
  %5340 = vdwg.mxu0
  %v5341 = vadd.f32 %v5236, %v5323
  %v5342 = vadd.f32 %v5237, %v5328
  %v5343 = vadd.f32 %v5238, %v5333
  %v5344 = vadd.f32 %v5239, %v5338
  %v5345 = vadd.f32 %v3774, %v5341
  %v5346 = vadd.f32 %v3775, %v5342
  %v5347 = vadd.f32 %v3776, %v5343
  %v5348 = vadd.f32 %v3777, %v5344
  %v5349 = vld [vmem:[%s6 + $0x317] sm:$0x1]
  %v5350 = vld [vmem:[%s6 + $0x318] sm:$0x1]
  %v5351 = vsel %vm168, %v5345, 0.0
  %5352 = vadd.xlane.f32.xlu0 %v5351
  %v5353 = vpop.xlane.xlu0 %5352
  %v5354 = vsel %vm168, %v5346, 0.0
  %5355 = vadd.xlane.f32.xlu0 %v5354
  %v5356 = vpop.xlane.xlu0 %5355
  %v5357 = vsel %vm168, %v5347, 0.0
  %5358 = vadd.xlane.f32.xlu0 %v5357
  %v5359 = vpop.xlane.xlu0 %5358
  %v5360 = vsel %vm168, %v5348, 0.0
  %5361 = vadd.xlane.f32.xlu0 %v5360
  %v5362 = vpop.xlane.xlu0 %5361
  %v5363 = vmul.f32 %v5353, %v175
  %v5364 = vmul.f32 %v5356, %v175
  %v5365 = vmul.f32 %v5359, %v175
  %v5366 = vmul.f32 %v5362, %v175
  %v5367 = vsub.f32 %v5345, %v5363
  %v5368 = vsub.f32 %v5346, %v5364
  %v5369 = vsub.f32 %v5347, %v5365
  %v5370 = vsub.f32 %v5348, %v5366
  %v5371 = vmul.f32 %v5367, %v5367
  %v5372 = vmul.f32 %v5368, %v5368
  %v5373 = vmul.f32 %v5369, %v5369
  %v5374 = vmul.f32 %v5370, %v5370
  %v5375 = vsel %vm168, %v5371, 0.0
  %5376 = vadd.xlane.f32.xlu0 %v5375
  %v5377 = vpop.xlane.xlu0 %5376
  %v5378 = vsel %vm168, %v5372, 0.0
  %5379 = vadd.xlane.f32.xlu0 %v5378
  %v5380 = vpop.xlane.xlu0 %5379
  %v5381 = vsel %vm168, %v5373, 0.0
  %5382 = vadd.xlane.f32.xlu0 %v5381
  %v5383 = vpop.xlane.xlu0 %5382
  %v5384 = vsel %vm168, %v5374, 0.0
  %5385 = vadd.xlane.f32.xlu0 %v5384
  %v5386 = vpop.xlane.xlu0 %5385
  %v5387 = vmul.f32 %v5377, %v175
  %v5388 = vmul.f32 %v5380, %v175
  %v5389 = vmul.f32 %v5383, %v175
  %v5390 = vmul.f32 %v5386, %v175
  %v5391 = vadd.f32 %v5387, 1e-12
  %v5392 = vadd.f32 %v5388, 1e-12
  %v5393 = vadd.f32 %v5389, 1e-12
  %v5394 = vadd.f32 %v5390, 1e-12
  %v5395 = vrsqrt.pop %v5391
  %v5396 = vrsqrt.pop %v5392
  %v5397 = vrsqrt.pop %v5393
  %v5398 = vrsqrt.pop %v5394
  %v5399 = vmul.f32 %v5367, %v5395
  %v5400 = vmul.f32 %v5368, %v5396
  %v5401 = vmul.f32 %v5369, %v5397
  %v5402 = vmul.f32 %v5370, %v5398
  %v5403 = vlaneseq
  %v5404 = vshrl.u32 %v5403, 7
  %v5405 = vsub.s32 0, %v5404
  %v5406 = vrot.slane %v5349, %v5405
  %v5407 = vmul.f32 %v5399, %v5406
  %v5408 = vmul.f32 %v5400, %v5406
  %v5409 = vmul.f32 %v5401, %v5406
  %v5410 = vmul.f32 %v5402, %v5406
  %v5411 = vlaneseq
  %v5412 = vshrl.u32 %v5411, 7
  %v5413 = vsub.s32 0, %v5412
  %v5414 = vrot.slane %v5350, %v5413
  %v5415 = vadd.f32 %v5407, %v5414
  %v5416 = vadd.f32 %v5408, %v5414
  %v5417 = vadd.f32 %v5409, %v5414
  %v5418 = vadd.f32 %v5410, %v5414
  %v5419 = vld [vmem:[%s7 + $0x28] sm:$0xff]
  %v5420 = vld [vmem:[%s7 + $0x30] sm:$0xff]
  %v5421 = vld [vmem:[%s7 + $0x38] sm:$0xff]
  %v5422 = vld [vmem:[%s7 + $0x40] sm:$0xff]
  %v5423 = vld [vmem:[%s7 + $0x48] sm:$0x1]
  %v5424 = vlaneseq
  %v5425 = vshrl.u32 %v5424, 7
  %v5426 = vsub.s32 0, %v5425
  %v5427 = vrot.slane %v5423, %v5426
  %v5429 = vsel %vm168, %v5415, 0
  %v5432 = vsel %vm168, %v5416, 0
  %v5435 = vsel %vm168, %v5417, 0
  %v5438 = vsel %vm168, %v5418, 0
  %5440 = vmatprep.subr.mxu0 0.0
  %5441 = vmatpush1.msra.mxu0 %v5419
  %5442 = vmatprep.subr.mxu0 0.0
  %5443 = vmatpush1.msra.mxu0 %v5420
  %5444 = vmatprep.subr.mxu0 0.0
  %5445 = vmatpush1.msra.mxu0 %v5421
  %5446 = vmatprep.subr.mxu0 0.0
  %5447 = vmatpush1.msra.mxu0 %v5422
  %5448 = vmatprep.subr.mxu0 0.0
  %5449 = vmatpush1.msra.mxu0 0.0
  %5450 = vmatprep.subr.mxu0 0.0
  %5451 = vmatpush1.msra.mxu0 0.0
  %5452 = vmatprep.subr.mxu0 0.0
  %5453 = vmatpush1.msra.mxu0 0.0
  %5454 = vmatprep.subr.mxu0 0.0
  %5455 = vmatpush1.msra.mxu0 0.0
  %5456 = vmatprep.subr.mxu0 0.0
  %5457 = vmatpush1.msra.mxu0 0.0
  %5458 = vmatprep.subr.mxu0 0.0
  %5459 = vmatpush1.msra.mxu0 0.0
  %5460 = vmatprep.subr.mxu0 0.0
  %5461 = vmatpush1.msra.mxu0 0.0
  %5462 = vmatprep.subr.mxu0 0.0
  %5463 = vmatpush1.msra.mxu0 0.0
  %5464 = vmatprep.subr.mxu0 0.0
  %5465 = vmatpush1.msra.mxu0 0.0
  %5466 = vmatprep.subr.mxu0 0.0
  %5467 = vmatpush1.msra.mxu0 0.0
  %5468 = vmatprep.subr.mxu0 0.0
  %5469 = vmatpush1.msra.mxu0 0.0
  %5470 = vmatprep.subr.mxu0 0.0
  %5471 = vmatpush1.msra.mxu0 0.0
  %5472 = vmatprep.subr.mxu0 0.0
  %5473 = vmatpush1.msra.mxu0 0.0
  %5474 = vmatprep.subr.mxu0 0.0
  %5475 = vmatpush1.msra.mxu0 0.0
  %5476 = vmatprep.subr.mxu0 0.0
  %5477 = vmatpush1.msra.mxu0 0.0
  %5478 = vmatprep.subr.mxu0 0.0
  %5479 = vmatpush1.msra.mxu0 0.0
  %5480 = vmatprep.subr.mxu0 0.0
  %5481 = vmatpush1.msra.mxu0 0.0
  %5482 = vmatprep.subr.mxu0 0.0
  %5483 = vmatpush1.msra.mxu0 0.0
  %5484 = vmatprep.subr.mxu0 0.0
  %5485 = vmatpush1.msra.mxu0 0.0
  %5486 = vmatprep.subr.mxu0 0.0
  %5487 = vmatpush1.msra.mxu0 0.0
  %5488 = vmatprep.subr.mxu0 0.0
  %5489 = vmatpush1.msra.mxu0 0.0
  %5490 = vmatprep.subr.mxu0 0.0
  %5491 = vmatpush1.msra.mxu0 0.0
  %5492 = vmatprep.subr.mxu0 0.0
  %5493 = vmatpush1.msra.mxu0 0.0
  %5494 = vmatprep.subr.mxu0 0.0
  %5495 = vmatpush1.msra.mxu0 0.0
  %5496 = vmatprep.subr.mxu0 0.0
  %5497 = vmatpush1.msra.mxu0 0.0
  %5498 = vmatprep.subr.mxu0 0.0
  %5499 = vmatpush1.msra.mxu0 0.0
  %5500 = vmatprep.subr.mxu0 0.0
  %5501 = vmatpush1.msra.mxu0 0.0
  %5502 = vmatprep.subr.mxu0 0.0
  %5503 = vmatpush1.msra.mxu0 0.0
  %5504 = vmatprep.mubr.f32.mxu0 0.0
  %5505 = vmatmul.mubr.f32.gmra.mrb[0].mxu0 %v5429
  %v5506 = vpop.f32.mrb[0].mxu0
  %v5507 = vadd.f32 %v5427, %v5506
  %v5508 = vpop.f32.mrb[0].mxu0
  %5509 = vmatprep.mubr.f32.mxu0 0.0
  %5510 = vmatmul.mubr.f32.gmra.mrb[0].mxu0 %v5432
  %v5511 = vpop.f32.mrb[0].mxu0
  %v5512 = vadd.f32 %v5427, %v5511
  %v5513 = vpop.f32.mrb[0].mxu0
  %5514 = vmatprep.mubr.f32.mxu0 0.0
  %5515 = vmatmul.mubr.f32.gmra.mrb[0].mxu0 %v5435
  %v5516 = vpop.f32.mrb[0].mxu0
  %v5517 = vadd.f32 %v5427, %v5516
  %v5518 = vpop.f32.mrb[0].mxu0
  %5519 = vmatprep.mubr.f32.mxu0 0.0
  %5520 = vmatmul.mubr.f32.gmra.mrb[0].mxu0 %v5438
  %v5521 = vpop.f32.mrb[0].mxu0
  %v5522 = vadd.f32 %v5427, %v5521
  %v5523 = vpop.f32.mrb[0].mxu0
  %5524 = vdwg.mxu0
  %v5525 = vmul.f32 %v5507, %v5507
  %v5526 = vmul.f32 %v5512, %v5512
  %v5527 = vmul.f32 %v5517, %v5517
  %v5528 = vmul.f32 %v5522, %v5522
  %v5529 = vmul.f32 %v5507, %v5525
  %v5530 = vmul.f32 %v5512, %v5526
  %v5531 = vmul.f32 %v5517, %v5527
  %v5532 = vmul.f32 %v5522, %v5528
  %v5533 = vmul.f32 %v5529, 0.044715
  %v5534 = vmul.f32 %v5530, 0.044715
  %v5535 = vmul.f32 %v5531, 0.044715
  %v5536 = vmul.f32 %v5532, 0.044715
  %v5537 = vadd.f32 %v5507, %v5533
  %v5538 = vadd.f32 %v5512, %v5534
  %v5539 = vadd.f32 %v5517, %v5535
  %v5540 = vadd.f32 %v5522, %v5536
  %v5541 = vmul.f32 %v5537, 0.7978846
  %v5542 = vmul.f32 %v5538, 0.7978846
  %v5543 = vmul.f32 %v5539, 0.7978846
  %v5544 = vmul.f32 %v5540, 0.7978846
  %v5545 = vtanh.pop %v5541
  %v5546 = vtanh.pop %v5542
  %v5547 = vtanh.pop %v5543
  %v5548 = vtanh.pop %v5544
  %v5549 = vadd.f32 %v5545, 1.0
  %v5550 = vadd.f32 %v5546, 1.0
  %v5551 = vadd.f32 %v5547, 1.0
  %v5552 = vadd.f32 %v5548, 1.0
  %v5553 = vmul.f32 %v5549, 0.5
  %v5554 = vmul.f32 %v5550, 0.5
  %v5555 = vmul.f32 %v5551, 0.5
  %v5556 = vmul.f32 %v5552, 0.5
  %v5557 = vmul.f32 %v5507, %v5553
  %v5558 = vmul.f32 %v5512, %v5554
  %v5559 = vmul.f32 %v5517, %v5555
  %v5560 = vmul.f32 %v5522, %v5556
  %v5561 = vld [vmem:[%s6 + $0x290] sm:$0xff]
  %v5562 = vld [vmem:[%s6 + $0x298] sm:$0xff]
  %v5563 = vld [vmem:[%s6 + $0x2a0] sm:$0xff]
  %v5564 = vld [vmem:[%s6 + $0x2a8] sm:$0xff]
  %v5565 = vld [vmem:[%s6 + $0x2b0] sm:$0xff]
  %v5566 = vld [vmem:[%s6 + $0x2b8] sm:$0xff]
  %v5567 = vld [vmem:[%s6 + $0x2c0] sm:$0xff]
  %v5568 = vld [vmem:[%s6 + $0x2c8] sm:$0xff]
  %v5569 = vld [vmem:[%s6 + $0x2d0] sm:$0xff]
  %v5570 = vld [vmem:[%s6 + $0x2d8] sm:$0xff]
  %v5571 = vld [vmem:[%s6 + $0x2e0] sm:$0xff]
  %v5572 = vld [vmem:[%s6 + $0x2e8] sm:$0xff]
  %v5573 = vld [vmem:[%s6 + $0x2f0] sm:$0xff]
  %v5574 = vld [vmem:[%s6 + $0x2f8] sm:$0xff]
  %v5575 = vld [vmem:[%s6 + $0x300] sm:$0xff]
  %v5576 = vld [vmem:[%s6 + $0x308] sm:$0xff]
  %v5577 = vld [vmem:[%s6 + $0x319] sm:$0x1]
  %v5578 = vlaneseq
  %v5579 = vshrl.u32 %v5578, 7
  %v5580 = vsub.s32 0, %v5579
  %v5581 = vrot.slane %v5577, %v5580
  %5582 = vmatprep.subr.mxu0 0.0
  %5583 = vmatpush1.msra.mxu0 %v5561
  %5584 = vmatprep.subr.mxu0 0.0
  %5585 = vmatpush1.msra.mxu0 %v5562
  %5586 = vmatprep.subr.mxu0 0.0
  %5587 = vmatpush1.msra.mxu0 %v5563
  %5588 = vmatprep.subr.mxu0 0.0
  %5589 = vmatpush1.msra.mxu0 %v5564
  %5590 = vmatprep.subr.mxu0 0.0
  %5591 = vmatpush1.msra.mxu0 %v5565
  %5592 = vmatprep.subr.mxu0 0.0
  %5593 = vmatpush1.msra.mxu0 %v5566
  %5594 = vmatprep.subr.mxu0 0.0
  %5595 = vmatpush1.msra.mxu0 %v5567
  %5596 = vmatprep.subr.mxu0 0.0
  %5597 = vmatpush1.msra.mxu0 %v5568
  %5598 = vmatprep.subr.mxu0 0.0
  %5599 = vmatpush1.msra.mxu0 %v5569
  %5600 = vmatprep.subr.mxu0 0.0
  %5601 = vmatpush1.msra.mxu0 %v5570
  %5602 = vmatprep.subr.mxu0 0.0
  %5603 = vmatpush1.msra.mxu0 %v5571
  %5604 = vmatprep.subr.mxu0 0.0
  %5605 = vmatpush1.msra.mxu0 %v5572
  %5606 = vmatprep.subr.mxu0 0.0
  %5607 = vmatpush1.msra.mxu0 %v5573
  %5608 = vmatprep.subr.mxu0 0.0
  %5609 = vmatpush1.msra.mxu0 %v5574
  %5610 = vmatprep.subr.mxu0 0.0
  %5611 = vmatpush1.msra.mxu0 %v5575
  %5612 = vmatprep.subr.mxu0 0.0
  %5613 = vmatpush1.msra.mxu0 %v5576
  %5614 = vmatprep.subr.mxu0 0.0
  %5615 = vmatpush1.msra.mxu0 0.0
  %5616 = vmatprep.subr.mxu0 0.0
  %5617 = vmatpush1.msra.mxu0 0.0
  %5618 = vmatprep.subr.mxu0 0.0
  %5619 = vmatpush1.msra.mxu0 0.0
  %5620 = vmatprep.subr.mxu0 0.0
  %5621 = vmatpush1.msra.mxu0 0.0
  %5622 = vmatprep.subr.mxu0 0.0
  %5623 = vmatpush1.msra.mxu0 0.0
  %5624 = vmatprep.subr.mxu0 0.0
  %5625 = vmatpush1.msra.mxu0 0.0
  %5626 = vmatprep.subr.mxu0 0.0
  %5627 = vmatpush1.msra.mxu0 0.0
  %5628 = vmatprep.subr.mxu0 0.0
  %5629 = vmatpush1.msra.mxu0 0.0
  %5630 = vmatprep.subr.mxu0 0.0
  %5631 = vmatpush1.msra.mxu0 0.0
  %5632 = vmatprep.subr.mxu0 0.0
  %5633 = vmatpush1.msra.mxu0 0.0
  %5634 = vmatprep.subr.mxu0 0.0
  %5635 = vmatpush1.msra.mxu0 0.0
  %5636 = vmatprep.subr.mxu0 0.0
  %5637 = vmatpush1.msra.mxu0 0.0
  %5638 = vmatprep.subr.mxu0 0.0
  %5639 = vmatpush1.msra.mxu0 0.0
  %5640 = vmatprep.subr.mxu0 0.0
  %5641 = vmatpush1.msra.mxu0 0.0
  %5642 = vmatprep.subr.mxu0 0.0
  %5643 = vmatpush1.msra.mxu0 0.0
  %5644 = vmatprep.subr.mxu0 0.0
  %5645 = vmatpush1.msra.mxu0 0.0
  %5646 = vmatprep.mubr.f32.mxu0 0.0
  %5647 = vmatmul.mubr.f32.gmra.mrb[0].mxu0 %v5557
  %v5648 = vpop.f32.mrb[0].mxu0
  %v5649 = vadd.f32 %v5581, %v5648
  %v5650 = vpop.f32.mrb[0].mxu0
  %5651 = vmatprep.mubr.f32.mxu0 0.0
  %5652 = vmatmul.mubr.f32.gmra.mrb[0].mxu0 %v5558
  %v5653 = vpop.f32.mrb[0].mxu0
  %v5654 = vpop.f32.mrb[0].mxu0
  %5655 = vmatprep.mubr.f32.mxu0 0.0
  %5656 = vmatmul.mubr.f32.gmra.mrb[0].mxu0 %v5559
  %v5657 = vpop.f32.mrb[0].mxu0
  %v5658 = vadd.f32 %v5581, %v5657
  %v5659 = vpop.f32.mrb[0].mxu0
  %5660 = vmatprep.mubr.f32.mxu0 0.0
  %5661 = vmatmul.mubr.f32.gmra.mrb[0].mxu0 %v5560
  %v5662 = vpop.f32.mrb[0].mxu0
  %v5663 = vpop.f32.mrb[0].mxu0
  %5664 = vdwg.mxu0
  %v5665 = vadd.f32 %v5415, %v5649
  %v5666 = vadd.f32 %v5417, %v5658
  %v5667 = vld [vmem:[%s6 + $0x31a] sm:$0x1]
  %v5668 = vld [vmem:[%s6 + $0x31b] sm:$0x1]
  %v5669 = vsel %vm168, %v5665, 0.0
  %5670 = vadd.xlane.f32.xlu0 %v5669
  %v5671 = vpop.xlane.xlu0 %5670
  %v5672 = vsel %vm168, %v5666, 0.0
  %5673 = vadd.xlane.f32.xlu0 %v5672
  %v5674 = vpop.xlane.xlu0 %5673
  %v5675 = vmul.f32 %v5671, %v175
  %v5676 = vmul.f32 %v5674, %v175
  %v5677 = vsub.f32 %v5665, %v5675
  %v5678 = vsub.f32 %v5666, %v5676
  %v5679 = vmul.f32 %v5677, %v5677
  %v5680 = vmul.f32 %v5678, %v5678
  %v5681 = vsel %vm168, %v5679, 0.0
  %5682 = vadd.xlane.f32.xlu0 %v5681
  %v5683 = vpop.xlane.xlu0 %5682
  %v5684 = vsel %vm168, %v5680, 0.0
  %5685 = vadd.xlane.f32.xlu0 %v5684
  %v5686 = vpop.xlane.xlu0 %5685
  %v5687 = vmul.f32 %v5683, %v175
  %v5688 = vmul.f32 %v5686, %v175
  %v5689 = vadd.f32 %v5687, 1e-12
  %v5690 = vadd.f32 %v5688, 1e-12
  %v5691 = vrsqrt.pop %v5689
  %v5692 = vrsqrt.pop %v5690
  %v5693 = vmul.f32 %v5677, %v5691
  %v5694 = vmul.f32 %v5678, %v5692
  %v5695 = vlaneseq
  %v5696 = vshrl.u32 %v5695, 7
  %v5697 = vsub.s32 0, %v5696
  %v5698 = vrot.slane %v5667, %v5697
  %v5699 = vmul.f32 %v5693, %v5698
  %v5700 = vmul.f32 %v5694, %v5698
  %v5701 = vlaneseq
  %v5702 = vshrl.u32 %v5701, 7
  %v5703 = vsub.s32 0, %v5702
  %v5704 = vrot.slane %v5668, %v5703
  %v5705 = vadd.f32 %v5699, %v5704
  %v5706 = vadd.f32 %v5700, %v5704
  %v5707 = vld [vmem:[%s5 + $0x98] sm:$0xff]
  %v5708 = vld [vmem:[%s5 + $0xa0] sm:$0xff]
  %v5709 = vld [vmem:[%s5 + $0xa8] sm:$0xff]
  %v5710 = vld [vmem:[%s5 + $0xb0] sm:$0xff]
  %v5711 = vld [vmem:[%s5 + $0x95] sm:$0x1]
  %v5712 = vlaneseq
  %v5713 = vshrl.u32 %v5712, 7
  %v5714 = vsub.s32 0, %v5713
  %v5715 = vrot.slane %v5711, %v5714
  %v5718 = vrot.slane %v5706, 7
  %vm5719 = vcmask 1041409
  %v5720 = vsel %vm5719, %v5718, %v5705
  %v5721 = vsel %vm168, %v5720, 0
  %5723 = vmatprep.subr.mxu0 0.0
  %5724 = vmatpush1.msra.mxu0 %v5707
  %5725 = vmatprep.subr.mxu0 0.0
  %5726 = vmatpush1.msra.mxu0 %v5708
  %5727 = vmatprep.subr.mxu0 0.0
  %5728 = vmatpush1.msra.mxu0 %v5709
  %5729 = vmatprep.subr.mxu0 0.0
  %5730 = vmatpush1.msra.mxu0 %v5710
  %5731 = vmatprep.subr.mxu0 0.0
  %5732 = vmatpush1.msra.mxu0 0.0
  %5733 = vmatprep.subr.mxu0 0.0
  %5734 = vmatpush1.msra.mxu0 0.0
  %5735 = vmatprep.subr.mxu0 0.0
  %5736 = vmatpush1.msra.mxu0 0.0
  %5737 = vmatprep.subr.mxu0 0.0
  %5738 = vmatpush1.msra.mxu0 0.0
  %5739 = vmatprep.subr.mxu0 0.0
  %5740 = vmatpush1.msra.mxu0 0.0
  %5741 = vmatprep.subr.mxu0 0.0
  %5742 = vmatpush1.msra.mxu0 0.0
  %5743 = vmatprep.subr.mxu0 0.0
  %5744 = vmatpush1.msra.mxu0 0.0
  %5745 = vmatprep.subr.mxu0 0.0
  %5746 = vmatpush1.msra.mxu0 0.0
  %5747 = vmatprep.subr.mxu0 0.0
  %5748 = vmatpush1.msra.mxu0 0.0
  %5749 = vmatprep.subr.mxu0 0.0
  %5750 = vmatpush1.msra.mxu0 0.0
  %5751 = vmatprep.subr.mxu0 0.0
  %5752 = vmatpush1.msra.mxu0 0.0
  %5753 = vmatprep.subr.mxu0 0.0
  %5754 = vmatpush1.msra.mxu0 0.0
  %5755 = vmatprep.subr.mxu0 0.0
  %5756 = vmatpush1.msra.mxu0 0.0
  %5757 = vmatprep.subr.mxu0 0.0
  %5758 = vmatpush1.msra.mxu0 0.0
  %5759 = vmatprep.subr.mxu0 0.0
  %5760 = vmatpush1.msra.mxu0 0.0
  %5761 = vmatprep.subr.mxu0 0.0
  %5762 = vmatpush1.msra.mxu0 0.0
  %5763 = vmatprep.subr.mxu0 0.0
  %5764 = vmatpush1.msra.mxu0 0.0
  %5765 = vmatprep.subr.mxu0 0.0
  %5766 = vmatpush1.msra.mxu0 0.0
  %5767 = vmatprep.subr.mxu0 0.0
  %5768 = vmatpush1.msra.mxu0 0.0
  %5769 = vmatprep.subr.mxu0 0.0
  %5770 = vmatpush1.msra.mxu0 0.0
  %5771 = vmatprep.subr.mxu0 0.0
  %5772 = vmatpush1.msra.mxu0 0.0
  %5773 = vmatprep.subr.mxu0 0.0
  %5774 = vmatpush1.msra.mxu0 0.0
  %5775 = vmatprep.subr.mxu0 0.0
  %5776 = vmatpush1.msra.mxu0 0.0
  %5777 = vmatprep.subr.mxu0 0.0
  %5778 = vmatpush1.msra.mxu0 0.0
  %5779 = vmatprep.subr.mxu0 0.0
  %5780 = vmatpush1.msra.mxu0 0.0
  %5781 = vmatprep.subr.mxu0 0.0
  %5782 = vmatpush1.msra.mxu0 0.0
  %5783 = vmatprep.subr.mxu0 0.0
  %5784 = vmatpush1.msra.mxu0 0.0
  %5785 = vmatprep.subr.mxu0 0.0
  %5786 = vmatpush1.msra.mxu0 0.0
  %5787 = vmatprep.mubr.f32.mxu0 0.0
  %5788 = vmatmul.mubr.f32.gmra.mrb[0].mxu0 %v5721
  %v5789 = vpop.f32.mrb[0].mxu0
  %v5790 = vadd.f32 %v5715, %v5789
  %v5791 = vpop.f32.mrb[0].mxu0
  %5792 = vdwg.mxu0
  %v5793 = vtanh.pop %v5790
  %v5794 = vld [vmem:[%s5 + $0xb8] sm:$0xff]
  %v5795 = vld [vmem:[%s5 + $0xc0] sm:$0xff]
  %v5796 = vld [vmem:[%s5 + $0xc8] sm:$0xff]
  %v5797 = vld [vmem:[%s5 + $0xd0] sm:$0xff]
  %v5798 = vld [vmem:[%s5 + $0x96] sm:$0x1]
  %v5799 = vlaneseq
  %v5800 = vshrl.u32 %v5799, 7
  %v5801 = vsub.s32 0, %v5800
  %v5802 = vrot.slane %v5798, %v5801
  %v5804 = vsel %vm168, %v5793, 0
  %5806 = vmatprep.subr.mxu0 0.0
  %5807 = vmatpush1.msra.mxu0 %v5794
  %5808 = vmatprep.subr.mxu0 0.0
  %5809 = vmatpush1.msra.mxu0 %v5795
  %5810 = vmatprep.subr.mxu0 0.0
  %5811 = vmatpush1.msra.mxu0 %v5796
  %5812 = vmatprep.subr.mxu0 0.0
  %5813 = vmatpush1.msra.mxu0 %v5797
  %5814 = vmatprep.subr.mxu0 0.0
  %5815 = vmatpush1.msra.mxu0 0.0
  %5816 = vmatprep.subr.mxu0 0.0
  %5817 = vmatpush1.msra.mxu0 0.0
  %5818 = vmatprep.subr.mxu0 0.0
  %5819 = vmatpush1.msra.mxu0 0.0
  %5820 = vmatprep.subr.mxu0 0.0
  %5821 = vmatpush1.msra.mxu0 0.0
  %5822 = vmatprep.subr.mxu0 0.0
  %5823 = vmatpush1.msra.mxu0 0.0
  %5824 = vmatprep.subr.mxu0 0.0
  %5825 = vmatpush1.msra.mxu0 0.0
  %5826 = vmatprep.subr.mxu0 0.0
  %5827 = vmatpush1.msra.mxu0 0.0
  %5828 = vmatprep.subr.mxu0 0.0
  %5829 = vmatpush1.msra.mxu0 0.0
  %5830 = vmatprep.subr.mxu0 0.0
  %5831 = vmatpush1.msra.mxu0 0.0
  %5832 = vmatprep.subr.mxu0 0.0
  %5833 = vmatpush1.msra.mxu0 0.0
  %5834 = vmatprep.subr.mxu0 0.0
  %5835 = vmatpush1.msra.mxu0 0.0
  %5836 = vmatprep.subr.mxu0 0.0
  %5837 = vmatpush1.msra.mxu0 0.0
  %5838 = vmatprep.subr.mxu0 0.0
  %5839 = vmatpush1.msra.mxu0 0.0
  %5840 = vmatprep.subr.mxu0 0.0
  %5841 = vmatpush1.msra.mxu0 0.0
  %5842 = vmatprep.subr.mxu0 0.0
  %5843 = vmatpush1.msra.mxu0 0.0
  %5844 = vmatprep.subr.mxu0 0.0
  %5845 = vmatpush1.msra.mxu0 0.0
  %5846 = vmatprep.subr.mxu0 0.0
  %5847 = vmatpush1.msra.mxu0 0.0
  %5848 = vmatprep.subr.mxu0 0.0
  %5849 = vmatpush1.msra.mxu0 0.0
  %5850 = vmatprep.subr.mxu0 0.0
  %5851 = vmatpush1.msra.mxu0 0.0
  %5852 = vmatprep.subr.mxu0 0.0
  %5853 = vmatpush1.msra.mxu0 0.0
  %5854 = vmatprep.subr.mxu0 0.0
  %5855 = vmatpush1.msra.mxu0 0.0
  %5856 = vmatprep.subr.mxu0 0.0
  %5857 = vmatpush1.msra.mxu0 0.0
  %5858 = vmatprep.subr.mxu0 0.0
  %5859 = vmatpush1.msra.mxu0 0.0
  %5860 = vmatprep.subr.mxu0 0.0
  %5861 = vmatpush1.msra.mxu0 0.0
  %5862 = vmatprep.subr.mxu0 0.0
  %5863 = vmatpush1.msra.mxu0 0.0
  %5864 = vmatprep.subr.mxu0 0.0
  %5865 = vmatpush1.msra.mxu0 0.0
  %5866 = vmatprep.subr.mxu0 0.0
  %5867 = vmatpush1.msra.mxu0 0.0
  %5868 = vmatprep.subr.mxu0 0.0
  %5869 = vmatpush1.msra.mxu0 0.0
  %5870 = vmatprep.mubr.f32.mxu0 0.0
  %5871 = vmatmul.mubr.f32.gmra.mrb[0].mxu0 %v5804
  %v5872 = vpop.f32.mrb[0].mxu0
  %v5873 = vadd.f32 %v5802, %v5872
  %v5874 = vpop.f32.mrb[0].mxu0
  %5875 = vdwg.mxu0
  %vm5876 = vcmask 9216
  %5877 = vst.msk [vmem:[%s8] sm:$0x3] %vm5876, %v5873
  // Predicated region
  $region34: #{vinvl_forward.1} parent=0 // pred_check
    _
  $region35: #{vinvl_forward.1} parent=0 // pred_check_branch
    %5879 = sbr.rel (0) target = $region37
  $region36: #{vinvl_forward.1} parent=0 // pred_region
    _
  $region37: #{vinvl_forward.1} parent=0 // pred_fallthru
    _
  // Predicated region
  $region38: #{vinvl_forward.1} parent=0 // pred_check
    _
  $region39: #{vinvl_forward.1} parent=0 // pred_check_branch
    %5881 = sbr.rel (0) target = $region41
  $region40: #{vinvl_forward.1} parent=0 // pred_region
    _
  $region41: #{vinvl_forward.1} parent=0 // pred_fallthru
    _

</llo_original>
